<compile_context>
chip_gen: v6e
topology: v6e:2x2x1
jax: 0.10.0
libtpu: 0.0.40
codegen_flags: <defaults>
</compile_context>

<pallas_src>
import jax
import jax.numpy as jnp
from jax import lax
from jax.experimental import pallas as pl
from jax.experimental.pallas import tpu as pltpu


# ----------------------------- Pallas kernel -------------------------------


def _layer_norm(v, gamma, beta, eps=1e-5):
    mu = jnp.mean(v, axis=-1, keepdims=True)
    var = jnp.mean((v - mu) ** 2, axis=-1, keepdims=True)
    return (v - mu) * lax.rsqrt(var + eps) * gamma + beta


def _gelu_exact(v):
    # torch.nn.GELU default = exact erf formulation (kept in f32 on the VPU).
    return 0.5 * v * (1.0 + lax.erf(v * 0.7071067811865476))


def mixer_kernel(
    patches_ref,      # (TB, P, K)    bf16
    ew_ref,           # (K, C)        bf16  patch-embed weight (resident)
    eb_ref,           # (1, C)        f32
    ln_g_ref,         # (1, 1, C)     f32   block d LayerNorm gamma
    ln_b_ref,         # (1, 1, C)     f32   block d LayerNorm beta
    tw1_ref,          # (1, P, Ph)    bf16  token-mix fc1
    tb1_ref,          # (1, 1, Ph)    f32
    tw2_ref,          # (1, Ph, P)    bf16  token-mix fc2
    tb2_ref,          # (1, 1, P)     f32
    cw1_ref,          # (1, C, Ch)    bf16  channel-mix fc1
    cb1_ref,          # (1, 1, Ch)    f32
    cw2_ref,          # (1, Ch, C)    bf16  channel-mix fc2
    cb2_ref,          # (1, 1, C)     f32
    fg_ref,           # (1, C)        f32   final LayerNorm gamma (resident)
    fb_ref,           # (1, C)        f32
    clw_ref,          # (C, NCpad)    bf16  classifier weight, lane-padded
    clb_ref,          # (1, NCpad)    f32
    o_ref,            # (TB, NCpad)   f32   lane-dense logits output
    x_ref,            # scratch VMEM (TB, P, C) f32: residual carried across d
):
    d = pl.program_id(1)
    TB, P, C = x_ref.shape
    K = patches_ref.shape[-1]
    bf16 = jnp.bfloat16
    f32 = jnp.float32

    # ---- patch embedding (Conv2d stride==kernel as one (TB*P, K) matmul) ----
    @pl.when(d == 0)
    def _embed():
        p2 = patches_ref[...].reshape(TB * P, K)                    # bf16
        x0 = jnp.dot(p2, ew_ref[...], preferred_element_type=f32) + eb_ref[...]
        x_ref[...] = x0.reshape(TB, P, C)

    # ---- mixer block d (weights for this d only are resident) ----
    x = x_ref[...]                                                  # (TB, P, C) f32
    g = ln_g_ref[0]                                                 # (1, C)
    b = ln_b_ref[0]

    # token mixing: batch folded into M -> (TB*C, P) @ (P, Ph)
    xln = _layer_norm(x, g, b)
    xt = jnp.swapaxes(xln, 1, 2).reshape(TB * C, P).astype(bf16)
    h = jnp.dot(xt, tw1_ref[0], preferred_element_type=f32) + tb1_ref[0]
    h = _gelu_exact(h)
    h = jnp.dot(h.astype(bf16), tw2_ref[0], preferred_element_type=f32) + tb2_ref[0]
    x = x + jnp.swapaxes(h.reshape(TB, C, P), 1, 2)

    # channel mixing: (TB*P, C) @ (C, Ch).  Same LN params as the token branch,
    # matching the PyTorch module's single shared self.layer_norm per block.
    x2 = _layer_norm(x, g, b).reshape(TB * P, C).astype(bf16)
    h2 = jnp.dot(x2, cw1_ref[0], preferred_element_type=f32) + cb1_ref[0]
    h2 = _gelu_exact(h2)
    h2 = jnp.dot(h2.astype(bf16), cw2_ref[0], preferred_element_type=f32) + cb2_ref[0]
    x = x + h2.reshape(TB, P, C)

    x_ref[...] = x

    # ---- final LayerNorm + global average pool + classifier ----
    @pl.when(d == pl.num_programs(1) - 1)
    def _head():
        xf = _layer_norm(x, fg_ref[...], fb_ref[...])               # (TB, P, C)
        pooled = jnp.mean(xf, axis=1)                               # (TB, C)
        logits = jnp.dot(pooled.astype(bf16), clw_ref[...],
                         preferred_element_type=f32) + clb_ref[...]
        o_ref[...] = logits                                          # full 128-lane store


# ------------------------------ JAX wrapper ---------------------------------


def extract_patches(x_img, patch_size):
    """NCHW image -> (B, P, 3*ps*ps), patch pixels ordered (c, i, j)."""
    B, C, H, W = x_img.shape
    ps = patch_size
    hp, wp = H // ps, W // ps
    x = x_img.reshape(B, C, hp, ps, wp, ps)
    x = jnp.transpose(x, (0, 2, 4, 1, 3, 5))        # (B, hp, wp, C, ps, ps)
    return x.reshape(B, hp * wp, C * ps * ps)


def mlp_mixer_forward(x_img, params, patch_size, batch_tile=None):
    patches = extract_patches(x_img, patch_size)
    B, P, K = patches.shape
    depth = params["ln_g"].shape[0]
    C = params["ew"].shape[1]
    Ph = params["tw1"].shape[2]
    Ch = params["cw1"].shape[2]
    NC = params["clw"].shape[1]
    NCpad = ((NC + 127) // 128) * 128               # lane-dense logits slab

    # Batch tile: fold TB images into the matmul M dimension.  For real
    # workloads pick TB a multiple of 8 and an even number of batch tiles so
    # both v7x TensorCores are used; for this small demo one tile covers B.
    if batch_tile is None:
        batch_tile = B if B <= 64 else 64
    TB = batch_tile
    assert B % TB == 0, "batch must be divisible by the batch tile"
    n_bt = B // TB

    bf16 = jnp.bfloat16
    patches_bf = patches.astype(bf16)               # halves HBM->VMEM DMA bytes
    ew = params["ew"].astype(bf16)
    tw1 = params["tw1"].astype(bf16)
    tw2 = params["tw2"].astype(bf16)
    cw1 = params["cw1"].astype(bf16)
    cw2 = params["cw2"].astype(bf16)
    clw_pad = jnp.pad(params["clw"], ((0, 0), (0, NCpad - NC))).astype(bf16)
    clb_pad = jnp.pad(params["clb"], ((0, 0), (0, NCpad - NC)))   # f32

    # Resident (constant block index -> DMA'd once, stays in VMEM).
    fixed2 = lambda shape: pl.BlockSpec(shape, lambda i, d: (0, 0))
    # Per-depth weights (indexed by the "arbitrary" depth grid axis -> only one
    # block's weights in VMEM at a time, double-buffered by the pipeline).
    per_d = lambda shape: pl.BlockSpec((1,) + shape, lambda i, d: (d, 0, 0))

    out = pl.pallas_call(
        mixer_kernel,
        out_shape=jax.ShapeDtypeStruct((B, NCpad), jnp.float32),
        grid=(n_bt, depth),
        in_specs=[
            pl.BlockSpec((TB, P, K), lambda i, d: (i, 0, 0)),   # patches (per batch tile)
            fixed2((K, C)),                                     # ew
            fixed2((1, C)),                                     # eb
            per_d((1, C)),                                      # ln_g
            per_d((1, C)),                                      # ln_b
            per_d((P, Ph)),                                     # tw1
            per_d((1, Ph)),                                     # tb1
            per_d((Ph, P)),                                     # tw2
            per_d((1, P)),                                      # tb2
            per_d((C, Ch)),                                     # cw1
            per_d((1, Ch)),                                     # cb1
            per_d((Ch, C)),                                     # cw2
            per_d((1, C)),                                      # cb2
            fixed2((1, C)),                                     # fg
            fixed2((1, C)),                                     # fb
            fixed2((C, NCpad)),                                 # clw (padded)
            fixed2((1, NCpad)),                                 # clb (padded)
        ],
        out_specs=pl.BlockSpec((TB, NCpad), lambda i, d: (i, 0)),
        scratch_shapes=[pltpu.VMEM((TB, P, C), jnp.float32)],   # residual carry
        compiler_params=pltpu.CompilerParams(
            dimension_semantics=("parallel", "arbitrary"),
            # Raise the scoped VMEM limit above the 16/32 MiB defaults so
            # larger configs with resident embed/classifier weights still fit
            # (kept below v7x's 64 MiB physical VMEM).
            vmem_limit_bytes=48 * 1024 * 1024,
        ),
    )(
        patches_bf,
        ew, params["eb"],
        params["ln_g"], params["ln_b"],
        tw1, params["tb1"], tw2, params["tb2"],
        cw1, params["cb1"], cw2, params["cb2"],
        params["fg"], params["fb"],
        clw_pad, clb_pad,
    )
    return out[:, :NC]


# --------------------------- plain-JAX reference ----------------------------


def reference_forward(x_img, params, patch_size, matmul_dtype=jnp.float32):
    """Reference forward.  matmul_dtype=bf16 mirrors the kernel's precision
    (bf16 matmul operands, f32 accumulation, f32 LN/GELU/residual)."""
    md = matmul_dtype

    def mm(spec, a, b):
        return jnp.einsum(spec, a.astype(md), b.astype(md),
                          preferred_element_type=jnp.float32)

    def ln(v, g, b):
        mu = jnp.mean(v, axis=-1, keepdims=True)
        var = jnp.mean((v - mu) ** 2, axis=-1, keepdims=True)
        return (v - mu) * lax.rsqrt(var + 1e-5) * g + b

    gelu = lambda v: 0.5 * v * (1.0 + lax.erf(v * 0.7071067811865476))

    patches = extract_patches(x_img, patch_size).astype(jnp.float32)
    x = mm("bpk,kc->bpc", patches, params["ew"]) + params["eb"]

    depth = params["ln_g"].shape[0]
    for d in range(depth):
        g, b = params["ln_g"][d], params["ln_b"][d]
        x1 = ln(x, g, b)
        x1 = jnp.swapaxes(x1, 1, 2)                                   # (B, C, P)
        h = gelu(mm("bcp,ph->bch", x1, params["tw1"][d]) + params["tb1"][d])
        h = mm("bch,hp->bcp", h, params["tw2"][d]) + params["tb2"][d]
        x = x + jnp.swapaxes(h, 1, 2)
        x2 = ln(x, g, b)
        h2 = gelu(mm("bpc,ch->bph", x2, params["cw1"][d]) + params["cb1"][d])
        h2 = mm("bph,hc->bpc", h2, params["cw2"][d]) + params["cb2"][d]
        x = x + h2

    x = ln(x, params["fg"], params["fb"])
    pooled = jnp.mean(x, axis=1)                                      # (B, C)
    return (jnp.dot(pooled.astype(md), params["clw"].astype(md),
                    preferred_element_type=jnp.float32) + params["clb"])


# ------------------------------- param init ---------------------------------


def init_params(key, img_size, patch_size, feature_dim, expansion_ratio,
                depth, n_classes):
    P = (img_size // patch_size) ** 2
    K = 3 * patch_size * patch_size
    C = feature_dim
    Ph = int(expansion_ratio * P)
    Ch = int(expansion_ratio * C)

    keys = iter(jax.random.split(key, 64))
    nrm = lambda shape: (0.02 * jax.random.normal(next(keys), shape)).astype(jnp.float32)

    return {
        "ew": nrm((K, C)),
        "eb": nrm((1, C)),
        "ln_g": jnp.ones((depth, 1, C), jnp.float32),
        "ln_b": jnp.zeros((depth, 1, C), jnp.float32),
        "tw1": nrm((depth, P, Ph)),
        "tb1": nrm((depth, 1, Ph)),
        "tw2": nrm((depth, Ph, P)),
        "tb2": nrm((depth, 1, P)),
        "cw1": nrm((depth, C, Ch)),
        "cb1": nrm((depth, 1, Ch)),
        "cw2": nrm((depth, Ch, C)),
        "cb2": nrm((depth, 1, C)),
        "fg": jnp.ones((1, C), jnp.float32),
        "fb": jnp.zeros((1, C), jnp.float32),
        "clw": nrm((C, n_classes)),
        "clb": nrm((1, n_classes)),
    }


# ---------------------------------- main -------------------------------------


if __name__ == "__main__":
    img_size = 16
    patch_size = 4          # -> n_patches P = 16
    feature_dim = 32
    expansion_ratio = 2
    depth = 2
    n_classes = 10
    batch = 8               # batch folded into the matmul M dim (TB*P = 128 rows)

    key = jax.random.PRNGKey(0)
    k_x, k_p = jax.random.split(key)
    x_img = jax.random.normal(k_x, (batch, 3, img_size, img_size), jnp.float32)  # NCHW
    params = init_params(k_p, img_size, patch_size, feature_dim,
                         expansion_ratio, depth, n_classes)

    out = jax.block_until_ready(mlp_mixer_forward(x_img, params, patch_size))
    assert out.shape == (batch, n_classes), out.shape

    # Tight check vs. a reference that mirrors the kernel's bf16-matmul / f32-
    # accumulate precision, plus a loose semantic check vs. the pure-f32
    # (PyTorch-semantics) forward.
    ref_bf16 = jax.block_until_ready(
        reference_forward(x_img, params, patch_size, matmul_dtype=jnp.bfloat16))
    ref_f32 = jax.block_until_ready(
        reference_forward(x_img, params, patch_size, matmul_dtype=jnp.float32))

    if not jnp.allclose(out, ref_bf16, atol=1e-3, rtol=1e-3):
        raise AssertionError(
            f"bf16-mirrored mismatch: max abs err {jnp.max(jnp.abs(out - ref_bf16))}")
    if not jnp.allclose(out, ref_f32, atol=5e-2, rtol=5e-2):
        raise AssertionError(
            f"f32 reference mismatch: max abs err {jnp.max(jnp.abs(out - ref_f32))}")

    print("KERNEL_OK")
</pallas_src>

<mosaic_0001>
module attributes {stable_mosaic.version = 11 : i64} {
  func.func @mixer_kernel(%arg0: i32, %arg1: i32, %arg2: memref<8x16x48xbf16, #tpu.memory_space<vmem>>, %arg3: memref<48x32xbf16, #tpu.memory_space<vmem>>, %arg4: memref<1x32xf32, #tpu.memory_space<vmem>>, %arg5: memref<1x1x32xf32, #tpu.memory_space<vmem>>, %arg6: memref<1x1x32xf32, #tpu.memory_space<vmem>>, %arg7: memref<1x16x32xbf16, #tpu.memory_space<vmem>>, %arg8: memref<1x1x32xf32, #tpu.memory_space<vmem>>, %arg9: memref<1x32x16xbf16, #tpu.memory_space<vmem>>, %arg10: memref<1x1x16xf32, #tpu.memory_space<vmem>>, %arg11: memref<1x32x64xbf16, #tpu.memory_space<vmem>>, %arg12: memref<1x1x64xf32, #tpu.memory_space<vmem>>, %arg13: memref<1x64x32xbf16, #tpu.memory_space<vmem>>, %arg14: memref<1x1x32xf32, #tpu.memory_space<vmem>>, %arg15: memref<1x32xf32, #tpu.memory_space<vmem>>, %arg16: memref<1x32xf32, #tpu.memory_space<vmem>>, %arg17: memref<32x128xbf16, #tpu.memory_space<vmem>>, %arg18: memref<1x128xf32, #tpu.memory_space<vmem>>, %arg19: memref<8x128xf32, #tpu.memory_space<vmem>>, %arg20: memref<8x16x32xf32, #tpu.memory_space<vmem>>) attributes {dimension_semantics = [#tpu.dimension_semantics<parallel>, #tpu.dimension_semantics<arbitrary>], iteration_bounds = array<i64: 1, 2>, scalar_prefetch = 0 : i64, scratch_operands = 1 : i64, tpu.core_type = #tpu.core_type<tc>, window_params = [{transform_indices = @transform_0, window_bounds = array<i64: 8, 16, 48>}, {pipeline_mode = #tpu.pipeline_mode<synchronous>, transform_indices = @transform_1, window_bounds = array<i64: 48, 32>}, {pipeline_mode = #tpu.pipeline_mode<synchronous>, transform_indices = @transform_2, window_bounds = array<i64: 1, 32>}, {transform_indices = @transform_3, window_bounds = array<i64: 1, 1, 32>}, {transform_indices = @transform_4, window_bounds = array<i64: 1, 1, 32>}, {transform_indices = @transform_5, window_bounds = array<i64: 1, 16, 32>}, {transform_indices = @transform_6, window_bounds = array<i64: 1, 1, 32>}, {transform_indices = @transform_7, window_bounds = array<i64: 1, 32, 16>}, {transform_indices = @transform_8, window_bounds = array<i64: 1, 1, 16>}, {transform_indices = @transform_9, window_bounds = array<i64: 1, 32, 64>}, {transform_indices = @transform_10, window_bounds = array<i64: 1, 1, 64>}, {transform_indices = @transform_11, window_bounds = array<i64: 1, 64, 32>}, {transform_indices = @transform_12, window_bounds = array<i64: 1, 1, 32>}, {pipeline_mode = #tpu.pipeline_mode<synchronous>, transform_indices = @transform_13, window_bounds = array<i64: 1, 32>}, {pipeline_mode = #tpu.pipeline_mode<synchronous>, transform_indices = @transform_14, window_bounds = array<i64: 1, 32>}, {pipeline_mode = #tpu.pipeline_mode<synchronous>, transform_indices = @transform_15, window_bounds = array<i64: 32, 128>}, {pipeline_mode = #tpu.pipeline_mode<synchronous>, transform_indices = @transform_16, window_bounds = array<i64: 1, 128>}, {transform_indices = @transform_17, window_bounds = array<i64: 8, 128>}]} {
    %c0_i32 = arith.constant 0 : i32
    %0 = arith.cmpi eq, %arg1, %c0_i32 : i32
    %1 = arith.extui %0 : i1 to i32
    %c0_i32_0 = arith.constant 0 : i32
    %2 = arith.cmpi ne, %1, %c0_i32_0 : i32
    scf.if %2 {
      %c0_56 = arith.constant 0 : index
      %c0_57 = arith.constant 0 : index
      %c0_58 = arith.constant 0 : index
      %116 = vector.load %arg2[%c0_56, %c0_57, %c0_58] : memref<8x16x48xbf16, #tpu.memory_space<vmem>>, vector<8x16x48xbf16>
      %117 = vector.shape_cast %116 : vector<8x16x48xbf16> to vector<128x48xbf16>
      %c0_59 = arith.constant 0 : index
      %c0_60 = arith.constant 0 : index
      %118 = vector.load %arg3[%c0_59, %c0_60] : memref<48x32xbf16, #tpu.memory_space<vmem>>, vector<48x32xbf16>
      %cst_61 = arith.constant dense<0.000000e+00> : vector<128x32xf32>
      %119 = tpu.matmul %117, %118, %cst_61 {dimension_numbers = #tpu.dot_dimension_numbers<[1], [0], [0], [1], [0, 0, 1, 1], [], []>} : vector<128x48xbf16>, vector<48x32xbf16>, vector<128x32xf32> -> vector<128x32xf32>
      %c0_62 = arith.constant 0 : index
      %c0_63 = arith.constant 0 : index
      %120 = vector.load %arg4[%c0_62, %c0_63] : memref<1x32xf32, #tpu.memory_space<vmem>>, vector<1x32xf32>
      %121 = vector.broadcast %120 : vector<1x32xf32> to vector<128x32xf32>
      %122 = arith.addf %119, %121 : vector<128x32xf32>
      %123 = vector.shape_cast %122 : vector<128x32xf32> to vector<8x16x32xf32>
      %c0_64 = arith.constant 0 : index
      %c0_65 = arith.constant 0 : index
      %c0_66 = arith.constant 0 : index
      %124 = vector.load %arg20[%c0_64, %c0_65, %c0_66] : memref<8x16x32xf32, #tpu.memory_space<vmem>>, vector<8x16x32xf32>
      tpu.vector_store %arg20[%c0_64, %c0_65, %c0_66], %123 {strides = array<i32>} : memref<8x16x32xf32, #tpu.memory_space<vmem>>, vector<8x16x32xf32>,
    } else {
    }
    %c0 = arith.constant 0 : index
    %c0_1 = arith.constant 0 : index
    %c0_2 = arith.constant 0 : index
    %3 = vector.load %arg20[%c0, %c0_1, %c0_2] : memref<8x16x32xf32, #tpu.memory_space<vmem>>, vector<8x16x32xf32>
    %c0_3 = arith.constant 0 : index
    %c0_4 = arith.constant 0 : index
    %c0_5 = arith.constant 0 : index
    %4 = vector.load %arg5[%c0_3, %c0_4, %c0_5] : memref<1x1x32xf32, #tpu.memory_space<vmem>>, vector<1x1x32xf32>
    %5 = vector.shape_cast %4 : vector<1x1x32xf32> to vector<1x32xf32>
    %c0_6 = arith.constant 0 : index
    %c0_7 = arith.constant 0 : index
    %c0_8 = arith.constant 0 : index
    %6 = vector.load %arg6[%c0_6, %c0_7, %c0_8] : memref<1x1x32xf32, #tpu.memory_space<vmem>>, vector<1x1x32xf32>
    %7 = vector.shape_cast %6 : vector<1x1x32xf32> to vector<1x32xf32>
    %cst = arith.constant dense<0.000000e+00> : vector<8x16xf32>
    %8 = vector.multi_reduction <add>, %3, %cst [2] : vector<8x16x32xf32> to vector<8x16xf32>
    %9 = vector.shape_cast %8 : vector<8x16xf32> to vector<8x16x1xf32>
    %cst_9 = arith.constant 3.200000e+01 : f32
    %10 = vector.broadcast %cst_9 : f32 to vector<8x16x1xf32>
    %11 = arith.divf %9, %10 : vector<8x16x1xf32>
    %12 = vector.broadcast %11 : vector<8x16x1xf32> to vector<8x16x32xf32>
    %13 = arith.subf %3, %12 : vector<8x16x32xf32>
    %14 = arith.mulf %13, %13 : vector<8x16x32xf32>
    %cst_10 = arith.constant dense<0.000000e+00> : vector<8x16xf32>
    %15 = vector.multi_reduction <add>, %14, %cst_10 [2] : vector<8x16x32xf32> to vector<8x16xf32>
    %16 = vector.shape_cast %15 : vector<8x16xf32> to vector<8x16x1xf32>
    %cst_11 = arith.constant 3.200000e+01 : f32
    %17 = vector.broadcast %cst_11 : f32 to vector<8x16x1xf32>
    %18 = arith.divf %16, %17 : vector<8x16x1xf32>
    %19 = vector.broadcast %11 : vector<8x16x1xf32> to vector<8x16x32xf32>
    %20 = arith.subf %3, %19 : vector<8x16x32xf32>
    %cst_12 = arith.constant 9.99999974E-6 : f32
    %21 = vector.broadcast %cst_12 : f32 to vector<8x16x1xf32>
    %22 = arith.addf %18, %21 : vector<8x16x1xf32>
    %23 = math.rsqrt %22 : vector<8x16x1xf32>
    %24 = vector.broadcast %23 : vector<8x16x1xf32> to vector<8x16x32xf32>
    %25 = arith.mulf %20, %24 : vector<8x16x32xf32>
    %26 = vector.shape_cast %5 : vector<1x32xf32> to vector<1x1x32xf32>
    %27 = vector.broadcast %26 : vector<1x1x32xf32> to vector<8x16x32xf32>
    %28 = arith.mulf %25, %27 : vector<8x16x32xf32>
    %29 = vector.shape_cast %7 : vector<1x32xf32> to vector<1x1x32xf32>
    %30 = vector.broadcast %29 : vector<1x1x32xf32> to vector<8x16x32xf32>
    %31 = arith.addf %28, %30 : vector<8x16x32xf32>
    %32 = tpu.transpose %31, [0, 2, 1] : vector<8x16x32xf32> -> vector<8x32x16xf32>
    %33 = vector.shape_cast %32 : vector<8x32x16xf32> to vector<256x16xf32>
    %34 = arith.truncf %33 : vector<256x16xf32> to vector<256x16xbf16>
    %c0_13 = arith.constant 0 : index
    %c0_14 = arith.constant 0 : index
    %c0_15 = arith.constant 0 : index
    %35 = vector.load %arg7[%c0_13, %c0_14, %c0_15] : memref<1x16x32xbf16, #tpu.memory_space<vmem>>, vector<1x16x32xbf16>
    %36 = vector.shape_cast %35 : vector<1x16x32xbf16> to vector<16x32xbf16>
    %cst_16 = arith.constant dense<0.000000e+00> : vector<256x32xf32>
    %37 = tpu.matmul %34, %36, %cst_16 {dimension_numbers = #tpu.dot_dimension_numbers<[1], [0], [0], [1], [0, 0, 1, 1], [], []>} : vector<256x16xbf16>, vector<16x32xbf16>, vector<256x32xf32> -> vector<256x32xf32>
    %c0_17 = arith.constant 0 : index
    %c0_18 = arith.constant 0 : index
    %c0_19 = arith.constant 0 : index
    %38 = vector.load %arg8[%c0_17, %c0_18, %c0_19] : memref<1x1x32xf32, #tpu.memory_space<vmem>>, vector<1x1x32xf32>
    %39 = vector.shape_cast %38 : vector<1x1x32xf32> to vector<1x32xf32>
    %40 = vector.broadcast %39 : vector<1x32xf32> to vector<256x32xf32>
    %41 = arith.addf %37, %40 : vector<256x32xf32>
    %cst_20 = arith.constant 5.000000e-01 : f32
    %42 = vector.broadcast %cst_20 : f32 to vector<256x32xf32>
    %43 = arith.mulf %42, %41 : vector<256x32xf32>
    %cst_21 = arith.constant 0.707106769 : f32
    %44 = vector.broadcast %cst_21 : f32 to vector<256x32xf32>
    %45 = arith.mulf %41, %44 : vector<256x32xf32>
    %46 = math.erf %45 : vector<256x32xf32>
    %cst_22 = arith.constant 1.000000e+00 : f32
    %47 = vector.broadcast %cst_22 : f32 to vector<256x32xf32>
    %48 = arith.addf %47, %46 : vector<256x32xf32>
    %49 = arith.mulf %43, %48 : vector<256x32xf32>
    %50 = arith.truncf %49 : vector<256x32xf32> to vector<256x32xbf16>
    %c0_23 = arith.constant 0 : index
    %c0_24 = arith.constant 0 : index
    %c0_25 = arith.constant 0 : index
    %51 = vector.load %arg9[%c0_23, %c0_24, %c0_25] : memref<1x32x16xbf16, #tpu.memory_space<vmem>>, vector<1x32x16xbf16>
    %52 = vector.shape_cast %51 : vector<1x32x16xbf16> to vector<32x16xbf16>
    %cst_26 = arith.constant dense<0.000000e+00> : vector<256x16xf32>
    %53 = tpu.matmul %50, %52, %cst_26 {dimension_numbers = #tpu.dot_dimension_numbers<[1], [0], [0], [1], [0, 0, 1, 1], [], []>} : vector<256x32xbf16>, vector<32x16xbf16>, vector<256x16xf32> -> vector<256x16xf32>
    %c0_27 = arith.constant 0 : index
    %c0_28 = arith.constant 0 : index
    %c0_29 = arith.constant 0 : index
    %54 = vector.load %arg10[%c0_27, %c0_28, %c0_29] : memref<1x1x16xf32, #tpu.memory_space<vmem>>, vector<1x1x16xf32>
    %55 = vector.shape_cast %54 : vector<1x1x16xf32> to vector<1x16xf32>
    %56 = vector.broadcast %55 : vector<1x16xf32> to vector<256x16xf32>
    %57 = arith.addf %53, %56 : vector<256x16xf32>
    %58 = vector.shape_cast %57 : vector<256x16xf32> to vector<8x32x16xf32>
    %59 = tpu.transpose %58, [0, 2, 1] : vector<8x32x16xf32> -> vector<8x16x32xf32>
    %60 = arith.addf %3, %59 : vector<8x16x32xf32>
    %cst_30 = arith.constant dense<0.000000e+00> : vector<8x16xf32>
    %61 = vector.multi_reduction <add>, %60, %cst_30 [2] : vector<8x16x32xf32> to vector<8x16xf32>
    %62 = vector.shape_cast %61 : vector<8x16xf32> to vector<8x16x1xf32>
    %cst_31 = arith.constant 3.200000e+01 : f32
    %63 = vector.broadcast %cst_31 : f32 to vector<8x16x1xf32>
    %64 = arith.divf %62, %63 : vector<8x16x1xf32>
    %65 = vector.broadcast %64 : vector<8x16x1xf32> to vector<8x16x32xf32>
    %66 = arith.subf %60, %65 : vector<8x16x32xf32>
    %67 = arith.mulf %66, %66 : vector<8x16x32xf32>
    %cst_32 = arith.constant dense<0.000000e+00> : vector<8x16xf32>
    %68 = vector.multi_reduction <add>, %67, %cst_32 [2] : vector<8x16x32xf32> to vector<8x16xf32>
    %69 = vector.shape_cast %68 : vector<8x16xf32> to vector<8x16x1xf32>
    %cst_33 = arith.constant 3.200000e+01 : f32
    %70 = vector.broadcast %cst_33 : f32 to vector<8x16x1xf32>
    %71 = arith.divf %69, %70 : vector<8x16x1xf32>
    %72 = vector.broadcast %64 : vector<8x16x1xf32> to vector<8x16x32xf32>
    %73 = arith.subf %60, %72 : vector<8x16x32xf32>
    %cst_34 = arith.constant 9.99999974E-6 : f32
    %74 = vector.broadcast %cst_34 : f32 to vector<8x16x1xf32>
    %75 = arith.addf %71, %74 : vector<8x16x1xf32>
    %76 = math.rsqrt %75 : vector<8x16x1xf32>
    %77 = vector.broadcast %76 : vector<8x16x1xf32> to vector<8x16x32xf32>
    %78 = arith.mulf %73, %77 : vector<8x16x32xf32>
    %79 = vector.shape_cast %5 : vector<1x32xf32> to vector<1x1x32xf32>
    %80 = vector.broadcast %79 : vector<1x1x32xf32> to vector<8x16x32xf32>
    %81 = arith.mulf %78, %80 : vector<8x16x32xf32>
    %82 = vector.shape_cast %7 : vector<1x32xf32> to vector<1x1x32xf32>
    %83 = vector.broadcast %82 : vector<1x1x32xf32> to vector<8x16x32xf32>
    %84 = arith.addf %81, %83 : vector<8x16x32xf32>
    %85 = vector.shape_cast %84 : vector<8x16x32xf32> to vector<128x32xf32>
    %86 = arith.truncf %85 : vector<128x32xf32> to vector<128x32xbf16>
    %c0_35 = arith.constant 0 : index
    %c0_36 = arith.constant 0 : index
    %c0_37 = arith.constant 0 : index
    %87 = vector.load %arg11[%c0_35, %c0_36, %c0_37] : memref<1x32x64xbf16, #tpu.memory_space<vmem>>, vector<1x32x64xbf16>
    %88 = vector.shape_cast %87 : vector<1x32x64xbf16> to vector<32x64xbf16>
    %cst_38 = arith.constant dense<0.000000e+00> : vector<128x64xf32>
    %89 = tpu.matmul %86, %88, %cst_38 {dimension_numbers = #tpu.dot_dimension_numbers<[1], [0], [0], [1], [0, 0, 1, 1], [], []>} : vector<128x32xbf16>, vector<32x64xbf16>, vector<128x64xf32> -> vector<128x64xf32>
    %c0_39 = arith.constant 0 : index
    %c0_40 = arith.constant 0 : index
    %c0_41 = arith.constant 0 : index
    %90 = vector.load %arg12[%c0_39, %c0_40, %c0_41] : memref<1x1x64xf32, #tpu.memory_space<vmem>>, vector<1x1x64xf32>
    %91 = vector.shape_cast %90 : vector<1x1x64xf32> to vector<1x64xf32>
    %92 = vector.broadcast %91 : vector<1x64xf32> to vector<128x64xf32>
    %93 = arith.addf %89, %92 : vector<128x64xf32>
    %cst_42 = arith.constant 5.000000e-01 : f32
    %94 = vector.broadcast %cst_42 : f32 to vector<128x64xf32>
    %95 = arith.mulf %94, %93 : vector<128x64xf32>
    %cst_43 = arith.constant 0.707106769 : f32
    %96 = vector.broadcast %cst_43 : f32 to vector<128x64xf32>
    %97 = arith.mulf %93, %96 : vector<128x64xf32>
    %98 = math.erf %97 : vector<128x64xf32>
    %cst_44 = arith.constant 1.000000e+00 : f32
    %99 = vector.broadcast %cst_44 : f32 to vector<128x64xf32>
    %100 = arith.addf %99, %98 : vector<128x64xf32>
    %101 = arith.mulf %95, %100 : vector<128x64xf32>
    %102 = arith.truncf %101 : vector<128x64xf32> to vector<128x64xbf16>
    %c0_45 = arith.constant 0 : index
    %c0_46 = arith.constant 0 : index
    %c0_47 = arith.constant 0 : index
    %103 = vector.load %arg13[%c0_45, %c0_46, %c0_47] : memref<1x64x32xbf16, #tpu.memory_space<vmem>>, vector<1x64x32xbf16>
    %104 = vector.shape_cast %103 : vector<1x64x32xbf16> to vector<64x32xbf16>
    %cst_48 = arith.constant dense<0.000000e+00> : vector<128x32xf32>
    %105 = tpu.matmul %102, %104, %cst_48 {dimension_numbers = #tpu.dot_dimension_numbers<[1], [0], [0], [1], [0, 0, 1, 1], [], []>} : vector<128x64xbf16>, vector<64x32xbf16>, vector<128x32xf32> -> vector<128x32xf32>
    %c0_49 = arith.constant 0 : index
    %c0_50 = arith.constant 0 : index
    %c0_51 = arith.constant 0 : index
    %106 = vector.load %arg14[%c0_49, %c0_50, %c0_51] : memref<1x1x32xf32, #tpu.memory_space<vmem>>, vector<1x1x32xf32>
    %107 = vector.shape_cast %106 : vector<1x1x32xf32> to vector<1x32xf32>
    %108 = vector.broadcast %107 : vector<1x32xf32> to vector<128x32xf32>
    %109 = arith.addf %105, %108 : vector<128x32xf32>
    %110 = vector.shape_cast %109 : vector<128x32xf32> to vector<8x16x32xf32>
    %111 = arith.addf %60, %110 : vector<8x16x32xf32>
    %c0_52 = arith.constant 0 : index
    %c0_53 = arith.constant 0 : index
    %c0_54 = arith.constant 0 : index
    %112 = vector.load %arg20[%c0_52, %c0_53, %c0_54] : memref<8x16x32xf32, #tpu.memory_space<vmem>>, vector<8x16x32xf32>
    tpu.vector_store %arg20[%c0_52, %c0_53, %c0_54], %111 {strides = array<i32>} : memref<8x16x32xf32, #tpu.memory_space<vmem>>, vector<8x16x32xf32>,
    %c1_i32 = arith.constant 1 : i32
    %113 = arith.cmpi eq, %arg1, %c1_i32 : i32
    %114 = arith.extui %113 : i1 to i32
    %c0_i32_55 = arith.constant 0 : i32
    %115 = arith.cmpi ne, %114, %c0_i32_55 : i32
    scf.if %115 {
      %c0_56 = arith.constant 0 : index
      %c0_57 = arith.constant 0 : index
      %116 = vector.load %arg15[%c0_56, %c0_57] : memref<1x32xf32, #tpu.memory_space<vmem>>, vector<1x32xf32>
      %c0_58 = arith.constant 0 : index
      %c0_59 = arith.constant 0 : index
      %117 = vector.load %arg16[%c0_58, %c0_59] : memref<1x32xf32, #tpu.memory_space<vmem>>, vector<1x32xf32>
      %cst_60 = arith.constant dense<0.000000e+00> : vector<8x16xf32>
      %118 = vector.multi_reduction <add>, %111, %cst_60 [2] : vector<8x16x32xf32> to vector<8x16xf32>
      %119 = vector.shape_cast %118 : vector<8x16xf32> to vector<8x16x1xf32>
      %cst_61 = arith.constant 3.200000e+01 : f32
      %120 = vector.broadcast %cst_61 : f32 to vector<8x16x1xf32>
      %121 = arith.divf %119, %120 : vector<8x16x1xf32>
      %122 = vector.broadcast %121 : vector<8x16x1xf32> to vector<8x16x32xf32>
      %123 = arith.subf %111, %122 : vector<8x16x32xf32>
      %124 = arith.mulf %123, %123 : vector<8x16x32xf32>
      %cst_62 = arith.constant dense<0.000000e+00> : vector<8x16xf32>
      %125 = vector.multi_reduction <add>, %124, %cst_62 [2] : vector<8x16x32xf32> to vector<8x16xf32>
      %126 = vector.shape_cast %125 : vector<8x16xf32> to vector<8x16x1xf32>
      %cst_63 = arith.constant 3.200000e+01 : f32
      %127 = vector.broadcast %cst_63 : f32 to vector<8x16x1xf32>
      %128 = arith.divf %126, %127 : vector<8x16x1xf32>
      %129 = vector.broadcast %121 : vector<8x16x1xf32> to vector<8x16x32xf32>
      %130 = arith.subf %111, %129 : vector<8x16x32xf32>
      %cst_64 = arith.constant 9.99999974E-6 : f32
      %131 = vector.broadcast %cst_64 : f32 to vector<8x16x1xf32>
      %132 = arith.addf %128, %131 : vector<8x16x1xf32>
      %133 = math.rsqrt %132 : vector<8x16x1xf32>
      %134 = vector.broadcast %133 : vector<8x16x1xf32> to vector<8x16x32xf32>
      %135 = arith.mulf %130, %134 : vector<8x16x32xf32>
      %136 = vector.shape_cast %116 : vector<1x32xf32> to vector<1x1x32xf32>
      %137 = vector.broadcast %136 : vector<1x1x32xf32> to vector<8x16x32xf32>
      %138 = arith.mulf %135, %137 : vector<8x16x32xf32>
      %139 = vector.shape_cast %117 : vector<1x32xf32> to vector<1x1x32xf32>
      %140 = vector.broadcast %139 : vector<1x1x32xf32> to vector<8x16x32xf32>
      %141 = arith.addf %138, %140 : vector<8x16x32xf32>
      %cst_65 = arith.constant dense<0.000000e+00> : vector<8x32xf32>
      %142 = vector.multi_reduction <add>, %141, %cst_65 [1] : vector<8x16x32xf32> to vector<8x32xf32>
      %cst_66 = arith.constant 1.600000e+01 : f32
      %143 = vector.broadcast %cst_66 : f32 to vector<8x32xf32>
      %144 = arith.divf %142, %143 : vector<8x32xf32>
      %145 = arith.truncf %144 : vector<8x32xf32> to vector<8x32xbf16>
      %c0_67 = arith.constant 0 : index
      %c0_68 = arith.constant 0 : index
      %146 = vector.load %arg17[%c0_67, %c0_68] : memref<32x128xbf16, #tpu.memory_space<vmem>>, vector<32x128xbf16>
      %cst_69 = arith.constant dense<0.000000e+00> : vector<8x128xf32>
      %147 = tpu.matmul %145, %146, %cst_69 {dimension_numbers = #tpu.dot_dimension_numbers<[1], [0], [0], [1], [0, 0, 1, 1], [], []>} : vector<8x32xbf16>, vector<32x128xbf16>, vector<8x128xf32> -> vector<8x128xf32>
      %c0_70 = arith.constant 0 : index
      %c0_71 = arith.constant 0 : index
      %148 = vector.load %arg18[%c0_70, %c0_71] : memref<1x128xf32, #tpu.memory_space<vmem>>, vector<1x128xf32>
      %149 = vector.broadcast %148 : vector<1x128xf32> to vector<8x128xf32>
      %150 = arith.addf %147, %149 : vector<8x128xf32>
      %c0_72 = arith.constant 0 : index
      %c0_73 = arith.constant 0 : index
      %151 = vector.load %arg19[%c0_72, %c0_73] : memref<8x128xf32, #tpu.memory_space<vmem>>, vector<8x128xf32>
      tpu.vector_store %arg19[%c0_72, %c0_73], %150 {strides = array<i32>} : memref<8x128xf32, #tpu.memory_space<vmem>>, vector<8x128xf32>,
    } else {
    }
    return
  }
  func.func @transform_0(%arg0: i32, %arg1: i32) -> (i32, i32, i32) {
    %c0_i32 = arith.constant 0 : i32
    %c0_i32_0 = arith.constant 0 : i32
    %c0_i32_1 = arith.constant 0 : i32
    return %arg0, %c0_i32, %c0_i32_0 : i32, i32, i32
  }
  func.func @transform_1(%arg0: i32, %arg1: i32) -> (i32, i32) {
    %c0_i32 = arith.constant 0 : i32
    %c0_i32_0 = arith.constant 0 : i32
    %c0_i32_1 = arith.constant 0 : i32
    return %c0_i32, %c0_i32_0 : i32, i32
  }
  func.func @transform_2(%arg0: i32, %arg1: i32) -> (i32, i32) {
    %c0_i32 = arith.constant 0 : i32
    %c0_i32_0 = arith.constant 0 : i32
    %c0_i32_1 = arith.constant 0 : i32
    return %c0_i32, %c0_i32_0 : i32, i32
  }
  func.func @transform_3(%arg0: i32, %arg1: i32) -> (i32, i32, i32) {
    %c0_i32 = arith.constant 0 : i32
    %c0_i32_0 = arith.constant 0 : i32
    %c0_i32_1 = arith.constant 0 : i32
    return %arg1, %c0_i32, %c0_i32_0 : i32, i32, i32
  }
  func.func @transform_4(%arg0: i32, %arg1: i32) -> (i32, i32, i32) {
    %c0_i32 = arith.constant 0 : i32
    %c0_i32_0 = arith.constant 0 : i32
    %c0_i32_1 = arith.constant 0 : i32
    return %arg1, %c0_i32, %c0_i32_0 : i32, i32, i32
  }
  func.func @transform_5(%arg0: i32, %arg1: i32) -> (i32, i32, i32) {
    %c0_i32 = arith.constant 0 : i32
    %c0_i32_0 = arith.constant 0 : i32
    %c0_i32_1 = arith.constant 0 : i32
    return %arg1, %c0_i32, %c0_i32_0 : i32, i32, i32
  }
  func.func @transform_6(%arg0: i32, %arg1: i32) -> (i32, i32, i32) {
    %c0_i32 = arith.constant 0 : i32
    %c0_i32_0 = arith.constant 0 : i32
    %c0_i32_1 = arith.constant 0 : i32
    return %arg1, %c0_i32, %c0_i32_0 : i32, i32, i32
  }
  func.func @transform_7(%arg0: i32, %arg1: i32) -> (i32, i32, i32) {
    %c0_i32 = arith.constant 0 : i32
    %c0_i32_0 = arith.constant 0 : i32
    %c0_i32_1 = arith.constant 0 : i32
    return %arg1, %c0_i32, %c0_i32_0 : i32, i32, i32
  }
  func.func @transform_8(%arg0: i32, %arg1: i32) -> (i32, i32, i32) {
    %c0_i32 = arith.constant 0 : i32
    %c0_i32_0 = arith.constant 0 : i32
    %c0_i32_1 = arith.constant 0 : i32
    return %arg1, %c0_i32, %c0_i32_0 : i32, i32, i32
  }
  func.func @transform_9(%arg0: i32, %arg1: i32) -> (i32, i32, i32) {
    %c0_i32 = arith.constant 0 : i32
    %c0_i32_0 = arith.constant 0 : i32
    %c0_i32_1 = arith.constant 0 : i32
    return %arg1, %c0_i32, %c0_i32_0 : i32, i32, i32
  }
  func.func @transform_10(%arg0: i32, %arg1: i32) -> (i32, i32, i32) {
    %c0_i32 = arith.constant 0 : i32
    %c0_i32_0 = arith.constant 0 : i32
    %c0_i32_1 = arith.constant 0 : i32
    return %arg1, %c0_i32, %c0_i32_0 : i32, i32, i32
  }
  func.func @transform_11(%arg0: i32, %arg1: i32) -> (i32, i32, i32) {
    %c0_i32 = arith.constant 0 : i32
    %c0_i32_0 = arith.constant 0 : i32
    %c0_i32_1 = arith.constant 0 : i32
    return %arg1, %c0_i32, %c0_i32_0 : i32, i32, i32
  }
  func.func @transform_12(%arg0: i32, %arg1: i32) -> (i32, i32, i32) {
    %c0_i32 = arith.constant 0 : i32
    %c0_i32_0 = arith.constant 0 : i32
    %c0_i32_1 = arith.constant 0 : i32
    return %arg1, %c0_i32, %c0_i32_0 : i32, i32, i32
  }
  func.func @transform_13(%arg0: i32, %arg1: i32) -> (i32, i32) {
    %c0_i32 = arith.constant 0 : i32
    %c0_i32_0 = arith.constant 0 : i32
    %c0_i32_1 = arith.constant 0 : i32
    return %c0_i32, %c0_i32_0 : i32, i32
  }
  func.func @transform_14(%arg0: i32, %arg1: i32) -> (i32, i32) {
    %c0_i32 = arith.constant 0 : i32
    %c0_i32_0 = arith.constant 0 : i32
    %c0_i32_1 = arith.constant 0 : i32
    return %c0_i32, %c0_i32_0 : i32, i32
  }
  func.func @transform_15(%arg0: i32, %arg1: i32) -> (i32, i32) {
    %c0_i32 = arith.constant 0 : i32
    %c0_i32_0 = arith.constant 0 : i32
    %c0_i32_1 = arith.constant 0 : i32
    return %c0_i32, %c0_i32_0 : i32, i32
  }
  func.func @transform_16(%arg0: i32, %arg1: i32) -> (i32, i32) {
    %c0_i32 = arith.constant 0 : i32
    %c0_i32_0 = arith.constant 0 : i32
    %c0_i32_1 = arith.constant 0 : i32
    return %c0_i32, %c0_i32_0 : i32, i32
  }
  func.func @transform_17(%arg0: i32, %arg1: i32) -> (i32, i32) {
    %c0_i32 = arith.constant 0 : i32
    %c0_i32_0 = arith.constant 0 : i32
    return %arg0, %c0_i32 : i32, i32
  }
}

</mosaic_0001>

<llo_original>
// kernel: tpu_custom_call.1
$region0: #{tpu_custom_call.1}
  #allocation0 [shape = 'u32[]', space=smem, size = 0x4, offset = 0x4, fixed_abs, tag = 'smem constant byte address 0x4 - core index']
  #allocation1 [shape = 'u32[144,128]{1,0:T(1,128)}', space=vmem, size = 0x12000, scoped, tag = 'internal scratch']
  #allocation2 [shape = 'f32[8,16,32]{2,1,0:T(8,128)}', space=vmem, size = 0x10000, scoped, tag = 'scratch operand']
  %s0 = inlined_call_operand.vmem [shape: bf16[8,16,48], index: 0, kind: input, shape index: {}]
  %s1 = inlined_call_operand.vmem [shape: bf16[48,32], index: 1, kind: input, shape index: {}]
  %s2 = inlined_call_operand.vmem [shape: f32[1,32], index: 2, kind: input, shape index: {}]
  %s3 = inlined_call_operand.vmem [shape: f32[2,1,32], index: 3, kind: input, shape index: {}]
  %s4 = inlined_call_operand.vmem [shape: f32[2,1,32], index: 4, kind: input, shape index: {}]
  %s5 = inlined_call_operand.vmem [shape: bf16[2,16,32], index: 5, kind: input, shape index: {}]
  %s6 = inlined_call_operand.vmem [shape: f32[2,1,32], index: 6, kind: input, shape index: {}]
  %s7 = inlined_call_operand.vmem [shape: bf16[2,32,16], index: 7, kind: input, shape index: {}]
  %s8 = inlined_call_operand.vmem [shape: f32[2,1,16], index: 8, kind: input, shape index: {}]
  %s9 = inlined_call_operand.vmem [shape: bf16[2,32,64], index: 9, kind: input, shape index: {}]
  %s10 = inlined_call_operand.vmem [shape: f32[2,1,64], index: 10, kind: input, shape index: {}]
  %s11 = inlined_call_operand.vmem [shape: bf16[2,64,32], index: 11, kind: input, shape index: {}]
  %s12 = inlined_call_operand.vmem [shape: f32[2,1,32], index: 12, kind: input, shape index: {}]
  %s13 = inlined_call_operand.vmem [shape: f32[1,32], index: 13, kind: input, shape index: {}]
  %s14 = inlined_call_operand.vmem [shape: f32[1,32], index: 14, kind: input, shape index: {}]
  %s15 = inlined_call_operand.vmem [shape: bf16[32,128], index: 15, kind: input, shape index: {}]
  %s16 = inlined_call_operand.vmem [shape: f32[1,128], index: 16, kind: input, shape index: {}]
  %s17 = inlined_call_operand.hbm [shape: f32[8,128], index: 17, kind: output, shape index: {}]
  %s18 = sld [smem:[#allocation0]]
  $region109: #{tpu_custom_call.1} parent=0
    _
  %s20 = ssub.s32 1, %s18
  %s21 = scalar_select 0, %s20, %s18
  $region1: #{tpu_custom_call.1} parent=0
    #allocation3 [shape = 'u8[4096]{0}', space=vmem, size = 0x1000, scoped, tag = 'output window, operand 0, single buffered']
    #allocation4 [shape = 's32[2]{0}', space=sflag, size = 0x8, scoped, tag = 'scoped memory for tpu_custom_call.1']
    %22 = vsyncpa [#allocation4], 0
    loop: start=0, step=1, limit=4
    $region2: #{tpu_custom_call.1} parent=1 // loop_pre_header
      _
    $region3: #{tpu_custom_call.1} parent=1 // loop_header
      %s24 = sphi 0, %s28
      %p25 = scmp.ge.s32.totalorder %s24, 4
      %s31 = sphi 0, %s43
      %s32 = sphi 0, %s39
      %s33 = sphi 0, %s31
      %s34 = sphi 0, %s32
      %s35 = sphi 0, %s33
      %s36 = sphi 0, %s34
      %s46 = sphi 0, %s48
      %s49 = sphi 0, %s46
      %s50 = sphi 0, %s49
      %s66 = sphi 0, %s50
      %s70 = sphi 0, %s70
      %s72 = sphi 0, %s70
      %s73 = sphi 0, %s72
      %s87 = sphi 0, %s73
      %s91 = sphi 0, %s91
      %s93 = sphi 0, %s91
      %s94 = sphi 0, %s93
      %s108 = sphi 0, %s94
      %s114 = sphi 0, %s116
      %s117 = sphi 0, %s114
      %s118 = sphi 0, %s117
      %s134 = sphi 0, %s118
      %s140 = sphi 0, %s142
      %s143 = sphi 0, %s140
      %s144 = sphi 0, %s143
      %s160 = sphi 0, %s144
      %s166 = sphi 0, %s168
      %s169 = sphi 0, %s166
      %s170 = sphi 0, %s169
      %s186 = sphi 0, %s170
      %s192 = sphi 0, %s194
      %s195 = sphi 0, %s192
      %s196 = sphi 0, %s195
      %s212 = sphi 0, %s196
      %s218 = sphi 0, %s220
      %s221 = sphi 0, %s218
      %s222 = sphi 0, %s221
      %s238 = sphi 0, %s222
      %s244 = sphi 0, %s246
      %s247 = sphi 0, %s244
      %s248 = sphi 0, %s247
      %s264 = sphi 0, %s248
      %s270 = sphi 0, %s272
      %s273 = sphi 0, %s270
      %s274 = sphi 0, %s273
      %s290 = sphi 0, %s274
      %s296 = sphi 0, %s298
      %s299 = sphi 0, %s296
      %s300 = sphi 0, %s299
      %s316 = sphi 0, %s300
      %s322 = sphi 0, %s324
      %s325 = sphi 0, %s322
      %s326 = sphi 0, %s325
      %s342 = sphi 0, %s326
      %s348 = sphi 0, %s350
      %s351 = sphi 0, %s348
      %s352 = sphi 0, %s351
      %s368 = sphi 0, %s352
      %s372 = sphi 0, %s372
      %s374 = sphi 0, %s372
      %s375 = sphi 0, %s374
      %s389 = sphi 0, %s375
      %s393 = sphi 0, %s393
      %s395 = sphi 0, %s393
      %s396 = sphi 0, %s395
      %s410 = sphi 0, %s396
      %s414 = sphi 0, %s414
      %s416 = sphi 0, %s414
      %s417 = sphi 0, %s416
      %s431 = sphi 0, %s417
      %s435 = sphi 0, %s435
      %s437 = sphi 0, %s435
      %s438 = sphi 0, %s437
      %s452 = sphi 0, %s438
      %s458 = sphi 0, %s460
      %s461 = sphi 0, %s458
      %s462 = sphi 0, %s461
      %s478 = sphi 0, %s462
    $region4: #{tpu_custom_call.1} parent=1 // loop_header_branch
      %27 = sbr.rel (%p25) target = $region8
    $region5: #{tpu_custom_call.1} parent=1 // loop_body
      %s29 = ssub.s32 %s24, 1
      %s30 = ssub.s32 %s24, 2
      %s37 = sadd.s32 1, %s32
      %p38 = scmp.ge.s32.totalorder %s37, 2
      %s39 = scalar_select %p38, 0, %s37
      %s40 = sadd.s32 1, %s31
      %s41 = scalar_select %p38, %s40, %s31
      %p42 = scmp.ge.s32.totalorder %s41, 1
      %s43 = scalar_select %p42, 0, %s41
      %s44 = ssub.s32 %s31, %s43
      %p45 = scmp.eq.s32.totalorder %s44, 0
      %s47 = sadd.s32 %s46, 1
      %s48 = scalar_select %p45, %s46, %s47
      %p51 = pneg %p45
      %p52 = scmp.eq.s32.totalorder %s24, 1
      %p53 = por %p51, %p52
      %p54 = scmp.ne.s32.totalorder %s46, %s49
      %p55 = scmp.eq.s32.totalorder %s24, 0
      %p56 = por %p54, %p55
      %p57 = scmp.ne.s32.totalorder %s46, %s49
      %p58 = scmp.eq.s32.totalorder %s29, 1
      %p59 = por %p57, %p58
      %p60 = scmp.ne.s32.totalorder %s49, %s50
      %p61 = scmp.eq.s32.totalorder %s29, 0
      %p62 = por %p60, %p61
      %p63 = scmp.ne.s32.totalorder %s49, %s50
      %p64 = scmp.eq.s32.totalorder %s30, 1
      %p65 = por %p63, %p64
      %p67 = scmp.ne.s32.totalorder %s50, %s66
      %p68 = scmp.eq.s32.totalorder %s30, 0
      %p69 = por %p67, %p68
      %s71 = sadd.s32 %s70, 1
      %p74 = scmp.eq.s32.totalorder %s24, 1
      %p75 = scmp.ne.s32.totalorder %s70, %s72
      %p76 = scmp.eq.s32.totalorder %s24, 0
      %p77 = por %p75, %p76
      %p78 = scmp.ne.s32.totalorder %s70, %s72
      %p79 = scmp.eq.s32.totalorder %s29, 1
      %p80 = por %p78, %p79
      %p81 = scmp.ne.s32.totalorder %s72, %s73
      %p82 = scmp.eq.s32.totalorder %s29, 0
      %p83 = por %p81, %p82
      %p84 = scmp.ne.s32.totalorder %s72, %s73
      %p85 = scmp.eq.s32.totalorder %s30, 1
      %p86 = por %p84, %p85
      %p88 = scmp.ne.s32.totalorder %s73, %s87
      %p89 = scmp.eq.s32.totalorder %s30, 0
      %p90 = por %p88, %p89
      %s92 = sadd.s32 %s91, 1
      %p95 = scmp.eq.s32.totalorder %s24, 1
      %p96 = scmp.ne.s32.totalorder %s91, %s93
      %p97 = scmp.eq.s32.totalorder %s24, 0
      %p98 = por %p96, %p97
      %p99 = scmp.ne.s32.totalorder %s91, %s93
      %p100 = scmp.eq.s32.totalorder %s29, 1
      %p101 = por %p99, %p100
      %p102 = scmp.ne.s32.totalorder %s93, %s94
      %p103 = scmp.eq.s32.totalorder %s29, 0
      %p104 = por %p102, %p103
      %p105 = scmp.ne.s32.totalorder %s93, %s94
      %p106 = scmp.eq.s32.totalorder %s30, 1
      %p107 = por %p105, %p106
      %p109 = scmp.ne.s32.totalorder %s94, %s108
      %p110 = scmp.eq.s32.totalorder %s30, 0
      %p111 = por %p109, %p110
      %s112 = ssub.s32 %s32, %s39
      %p113 = scmp.eq.s32.totalorder %s112, 0
      %s115 = sadd.s32 %s114, 1
      %s116 = scalar_select %p113, %s114, %s115
      %p119 = pneg %p113
      %p120 = scmp.eq.s32.totalorder %s24, 1
      %p121 = por %p119, %p120
      %p122 = scmp.ne.s32.totalorder %s114, %s117
      %p123 = scmp.eq.s32.totalorder %s24, 0
      %p124 = por %p122, %p123
      %p125 = scmp.ne.s32.totalorder %s114, %s117
      %p126 = scmp.eq.s32.totalorder %s29, 1
      %p127 = por %p125, %p126
      %p128 = scmp.ne.s32.totalorder %s117, %s118
      %p129 = scmp.eq.s32.totalorder %s29, 0
      %p130 = por %p128, %p129
      %p131 = scmp.ne.s32.totalorder %s117, %s118
      %p132 = scmp.eq.s32.totalorder %s30, 1
      %p133 = por %p131, %p132
      %p135 = scmp.ne.s32.totalorder %s118, %s134
      %p136 = scmp.eq.s32.totalorder %s30, 0
      %p137 = por %p135, %p136
      %s138 = ssub.s32 %s32, %s39
      %p139 = scmp.eq.s32.totalorder %s138, 0
      %s141 = sadd.s32 %s140, 1
      %s142 = scalar_select %p139, %s140, %s141
      %p145 = pneg %p139
      %p146 = scmp.eq.s32.totalorder %s24, 1
      %p147 = por %p145, %p146
      %p148 = scmp.ne.s32.totalorder %s140, %s143
      %p149 = scmp.eq.s32.totalorder %s24, 0
      %p150 = por %p148, %p149
      %p151 = scmp.ne.s32.totalorder %s140, %s143
      %p152 = scmp.eq.s32.totalorder %s29, 1
      %p153 = por %p151, %p152
      %p154 = scmp.ne.s32.totalorder %s143, %s144
      %p155 = scmp.eq.s32.totalorder %s29, 0
      %p156 = por %p154, %p155
      %p157 = scmp.ne.s32.totalorder %s143, %s144
      %p158 = scmp.eq.s32.totalorder %s30, 1
      %p159 = por %p157, %p158
      %p161 = scmp.ne.s32.totalorder %s144, %s160
      %p162 = scmp.eq.s32.totalorder %s30, 0
      %p163 = por %p161, %p162
      %s164 = ssub.s32 %s32, %s39
      %p165 = scmp.eq.s32.totalorder %s164, 0
      %s167 = sadd.s32 %s166, 1
      %s168 = scalar_select %p165, %s166, %s167
      %p171 = pneg %p165
      %p172 = scmp.eq.s32.totalorder %s24, 1
      %p173 = por %p171, %p172
      %p174 = scmp.ne.s32.totalorder %s166, %s169
      %p175 = scmp.eq.s32.totalorder %s24, 0
      %p176 = por %p174, %p175
      %p177 = scmp.ne.s32.totalorder %s166, %s169
      %p178 = scmp.eq.s32.totalorder %s29, 1
      %p179 = por %p177, %p178
      %p180 = scmp.ne.s32.totalorder %s169, %s170
      %p181 = scmp.eq.s32.totalorder %s29, 0
      %p182 = por %p180, %p181
      %p183 = scmp.ne.s32.totalorder %s169, %s170
      %p184 = scmp.eq.s32.totalorder %s30, 1
      %p185 = por %p183, %p184
      %p187 = scmp.ne.s32.totalorder %s170, %s186
      %p188 = scmp.eq.s32.totalorder %s30, 0
      %p189 = por %p187, %p188
      %s190 = ssub.s32 %s32, %s39
      %p191 = scmp.eq.s32.totalorder %s190, 0
      %s193 = sadd.s32 %s192, 1
      %s194 = scalar_select %p191, %s192, %s193
      %p197 = pneg %p191
      %p198 = scmp.eq.s32.totalorder %s24, 1
      %p199 = por %p197, %p198
      %p200 = scmp.ne.s32.totalorder %s192, %s195
      %p201 = scmp.eq.s32.totalorder %s24, 0
      %p202 = por %p200, %p201
      %p203 = scmp.ne.s32.totalorder %s192, %s195
      %p204 = scmp.eq.s32.totalorder %s29, 1
      %p205 = por %p203, %p204
      %p206 = scmp.ne.s32.totalorder %s195, %s196
      %p207 = scmp.eq.s32.totalorder %s29, 0
      %p208 = por %p206, %p207
      %p209 = scmp.ne.s32.totalorder %s195, %s196
      %p210 = scmp.eq.s32.totalorder %s30, 1
      %p211 = por %p209, %p210
      %p213 = scmp.ne.s32.totalorder %s196, %s212
      %p214 = scmp.eq.s32.totalorder %s30, 0
      %p215 = por %p213, %p214
      %s216 = ssub.s32 %s32, %s39
      %p217 = scmp.eq.s32.totalorder %s216, 0
      %s219 = sadd.s32 %s218, 1
      %s220 = scalar_select %p217, %s218, %s219
      %p223 = pneg %p217
      %p224 = scmp.eq.s32.totalorder %s24, 1
      %p225 = por %p223, %p224
      %p226 = scmp.ne.s32.totalorder %s218, %s221
      %p227 = scmp.eq.s32.totalorder %s24, 0
      %p228 = por %p226, %p227
      %p229 = scmp.ne.s32.totalorder %s218, %s221
      %p230 = scmp.eq.s32.totalorder %s29, 1
      %p231 = por %p229, %p230
      %p232 = scmp.ne.s32.totalorder %s221, %s222
      %p233 = scmp.eq.s32.totalorder %s29, 0
      %p234 = por %p232, %p233
      %p235 = scmp.ne.s32.totalorder %s221, %s222
      %p236 = scmp.eq.s32.totalorder %s30, 1
      %p237 = por %p235, %p236
      %p239 = scmp.ne.s32.totalorder %s222, %s238
      %p240 = scmp.eq.s32.totalorder %s30, 0
      %p241 = por %p239, %p240
      %s242 = ssub.s32 %s32, %s39
      %p243 = scmp.eq.s32.totalorder %s242, 0
      %s245 = sadd.s32 %s244, 1
      %s246 = scalar_select %p243, %s244, %s245
      %p249 = pneg %p243
      %p250 = scmp.eq.s32.totalorder %s24, 1
      %p251 = por %p249, %p250
      %p252 = scmp.ne.s32.totalorder %s244, %s247
      %p253 = scmp.eq.s32.totalorder %s24, 0
      %p254 = por %p252, %p253
      %p255 = scmp.ne.s32.totalorder %s244, %s247
      %p256 = scmp.eq.s32.totalorder %s29, 1
      %p257 = por %p255, %p256
      %p258 = scmp.ne.s32.totalorder %s247, %s248
      %p259 = scmp.eq.s32.totalorder %s29, 0
      %p260 = por %p258, %p259
      %p261 = scmp.ne.s32.totalorder %s247, %s248
      %p262 = scmp.eq.s32.totalorder %s30, 1
      %p263 = por %p261, %p262
      %p265 = scmp.ne.s32.totalorder %s248, %s264
      %p266 = scmp.eq.s32.totalorder %s30, 0
      %p267 = por %p265, %p266
      %s268 = ssub.s32 %s32, %s39
      %p269 = scmp.eq.s32.totalorder %s268, 0
      %s271 = sadd.s32 %s270, 1
      %s272 = scalar_select %p269, %s270, %s271
      %p275 = pneg %p269
      %p276 = scmp.eq.s32.totalorder %s24, 1
      %p277 = por %p275, %p276
      %p278 = scmp.ne.s32.totalorder %s270, %s273
      %p279 = scmp.eq.s32.totalorder %s24, 0
      %p280 = por %p278, %p279
      %p281 = scmp.ne.s32.totalorder %s270, %s273
      %p282 = scmp.eq.s32.totalorder %s29, 1
      %p283 = por %p281, %p282
      %p284 = scmp.ne.s32.totalorder %s273, %s274
      %p285 = scmp.eq.s32.totalorder %s29, 0
      %p286 = por %p284, %p285
      %p287 = scmp.ne.s32.totalorder %s273, %s274
      %p288 = scmp.eq.s32.totalorder %s30, 1
      %p289 = por %p287, %p288
      %p291 = scmp.ne.s32.totalorder %s274, %s290
      %p292 = scmp.eq.s32.totalorder %s30, 0
      %p293 = por %p291, %p292
      %s294 = ssub.s32 %s32, %s39
      %p295 = scmp.eq.s32.totalorder %s294, 0
      %s297 = sadd.s32 %s296, 1
      %s298 = scalar_select %p295, %s296, %s297
      %p301 = pneg %p295
      %p302 = scmp.eq.s32.totalorder %s24, 1
      %p303 = por %p301, %p302
      %p304 = scmp.ne.s32.totalorder %s296, %s299
      %p305 = scmp.eq.s32.totalorder %s24, 0
      %p306 = por %p304, %p305
      %p307 = scmp.ne.s32.totalorder %s296, %s299
      %p308 = scmp.eq.s32.totalorder %s29, 1
      %p309 = por %p307, %p308
      %p310 = scmp.ne.s32.totalorder %s299, %s300
      %p311 = scmp.eq.s32.totalorder %s29, 0
      %p312 = por %p310, %p311
      %p313 = scmp.ne.s32.totalorder %s299, %s300
      %p314 = scmp.eq.s32.totalorder %s30, 1
      %p315 = por %p313, %p314
      %p317 = scmp.ne.s32.totalorder %s300, %s316
      %p318 = scmp.eq.s32.totalorder %s30, 0
      %p319 = por %p317, %p318
      %s320 = ssub.s32 %s32, %s39
      %p321 = scmp.eq.s32.totalorder %s320, 0
      %s323 = sadd.s32 %s322, 1
      %s324 = scalar_select %p321, %s322, %s323
      %p327 = pneg %p321
      %p328 = scmp.eq.s32.totalorder %s24, 1
      %p329 = por %p327, %p328
      %p330 = scmp.ne.s32.totalorder %s322, %s325
      %p331 = scmp.eq.s32.totalorder %s24, 0
      %p332 = por %p330, %p331
      %p333 = scmp.ne.s32.totalorder %s322, %s325
      %p334 = scmp.eq.s32.totalorder %s29, 1
      %p335 = por %p333, %p334
      %p336 = scmp.ne.s32.totalorder %s325, %s326
      %p337 = scmp.eq.s32.totalorder %s29, 0
      %p338 = por %p336, %p337
      %p339 = scmp.ne.s32.totalorder %s325, %s326
      %p340 = scmp.eq.s32.totalorder %s30, 1
      %p341 = por %p339, %p340
      %p343 = scmp.ne.s32.totalorder %s326, %s342
      %p344 = scmp.eq.s32.totalorder %s30, 0
      %p345 = por %p343, %p344
      %s346 = ssub.s32 %s32, %s39
      %p347 = scmp.eq.s32.totalorder %s346, 0
      %s349 = sadd.s32 %s348, 1
      %s350 = scalar_select %p347, %s348, %s349
      %p353 = pneg %p347
      %p354 = scmp.eq.s32.totalorder %s24, 1
      %p355 = por %p353, %p354
      %p356 = scmp.ne.s32.totalorder %s348, %s351
      %p357 = scmp.eq.s32.totalorder %s24, 0
      %p358 = por %p356, %p357
      %p359 = scmp.ne.s32.totalorder %s348, %s351
      %p360 = scmp.eq.s32.totalorder %s29, 1
      %p361 = por %p359, %p360
      %p362 = scmp.ne.s32.totalorder %s351, %s352
      %p363 = scmp.eq.s32.totalorder %s29, 0
      %p364 = por %p362, %p363
      %p365 = scmp.ne.s32.totalorder %s351, %s352
      %p366 = scmp.eq.s32.totalorder %s30, 1
      %p367 = por %p365, %p366
      %p369 = scmp.ne.s32.totalorder %s352, %s368
      %p370 = scmp.eq.s32.totalorder %s30, 0
      %p371 = por %p369, %p370
      %s373 = sadd.s32 %s372, 1
      %p376 = scmp.eq.s32.totalorder %s24, 1
      %p377 = scmp.ne.s32.totalorder %s372, %s374
      %p378 = scmp.eq.s32.totalorder %s24, 0
      %p379 = por %p377, %p378
      %p380 = scmp.ne.s32.totalorder %s372, %s374
      %p381 = scmp.eq.s32.totalorder %s29, 1
      %p382 = por %p380, %p381
      %p383 = scmp.ne.s32.totalorder %s374, %s375
      %p384 = scmp.eq.s32.totalorder %s29, 0
      %p385 = por %p383, %p384
      %p386 = scmp.ne.s32.totalorder %s374, %s375
      %p387 = scmp.eq.s32.totalorder %s30, 1
      %p388 = por %p386, %p387
      %p390 = scmp.ne.s32.totalorder %s375, %s389
      %p391 = scmp.eq.s32.totalorder %s30, 0
      %p392 = por %p390, %p391
      %s394 = sadd.s32 %s393, 1
      %p397 = scmp.eq.s32.totalorder %s24, 1
      %p398 = scmp.ne.s32.totalorder %s393, %s395
      %p399 = scmp.eq.s32.totalorder %s24, 0
      %p400 = por %p398, %p399
      %p401 = scmp.ne.s32.totalorder %s393, %s395
      %p402 = scmp.eq.s32.totalorder %s29, 1
      %p403 = por %p401, %p402
      %p404 = scmp.ne.s32.totalorder %s395, %s396
      %p405 = scmp.eq.s32.totalorder %s29, 0
      %p406 = por %p404, %p405
      %p407 = scmp.ne.s32.totalorder %s395, %s396
      %p408 = scmp.eq.s32.totalorder %s30, 1
      %p409 = por %p407, %p408
      %p411 = scmp.ne.s32.totalorder %s396, %s410
      %p412 = scmp.eq.s32.totalorder %s30, 0
      %p413 = por %p411, %p412
      %s415 = sadd.s32 %s414, 1
      %p418 = scmp.eq.s32.totalorder %s24, 1
      %p419 = scmp.ne.s32.totalorder %s414, %s416
      %p420 = scmp.eq.s32.totalorder %s24, 0
      %p421 = por %p419, %p420
      %p422 = scmp.ne.s32.totalorder %s414, %s416
      %p423 = scmp.eq.s32.totalorder %s29, 1
      %p424 = por %p422, %p423
      %p425 = scmp.ne.s32.totalorder %s416, %s417
      %p426 = scmp.eq.s32.totalorder %s29, 0
      %p427 = por %p425, %p426
      %p428 = scmp.ne.s32.totalorder %s416, %s417
      %p429 = scmp.eq.s32.totalorder %s30, 1
      %p430 = por %p428, %p429
      %p432 = scmp.ne.s32.totalorder %s417, %s431
      %p433 = scmp.eq.s32.totalorder %s30, 0
      %p434 = por %p432, %p433
      %s436 = sadd.s32 %s435, 1
      %p439 = scmp.eq.s32.totalorder %s24, 1
      %p440 = scmp.ne.s32.totalorder %s435, %s437
      %p441 = scmp.eq.s32.totalorder %s24, 0
      %p442 = por %p440, %p441
      %p443 = scmp.ne.s32.totalorder %s435, %s437
      %p444 = scmp.eq.s32.totalorder %s29, 1
      %p445 = por %p443, %p444
      %p446 = scmp.ne.s32.totalorder %s437, %s438
      %p447 = scmp.eq.s32.totalorder %s29, 0
      %p448 = por %p446, %p447
      %p449 = scmp.ne.s32.totalorder %s437, %s438
      %p450 = scmp.eq.s32.totalorder %s30, 1
      %p451 = por %p449, %p450
      %p453 = scmp.ne.s32.totalorder %s438, %s452
      %p454 = scmp.eq.s32.totalorder %s30, 0
      %p455 = por %p453, %p454
      %s456 = ssub.s32 %s31, %s43
      %p457 = scmp.eq.s32.totalorder %s456, 0
      %s459 = sadd.s32 %s458, 1
      %s460 = scalar_select %p457, %s458, %s459
      %p463 = pneg %p457
      %p464 = scmp.eq.s32.totalorder %s24, 1
      %p465 = por %p463, %p464
      %p466 = scmp.ne.s32.totalorder %s458, %s461
      %p467 = scmp.eq.s32.totalorder %s24, 0
      %p468 = por %p466, %p467
      %p469 = scmp.ne.s32.totalorder %s458, %s461
      %p470 = scmp.eq.s32.totalorder %s29, 1
      %p471 = por %p469, %p470
      %p472 = scmp.ne.s32.totalorder %s461, %s462
      %p473 = scmp.eq.s32.totalorder %s29, 0
      %p474 = por %p472, %p473
      %p475 = scmp.ne.s32.totalorder %s461, %s462
      %p476 = scmp.eq.s32.totalorder %s30, 1
      %p477 = por %p475, %p476
      %p479 = scmp.ne.s32.totalorder %s462, %s478
      %p480 = scmp.eq.s32.totalorder %s30, 0
      %p481 = por %p479, %p480
      %p482 = scmp.le.s32.totalorder 1, %s24
      %p483 = scmp.lt.s32.totalorder %s24, 3
      %p484 = pnand %p482, %p483
      %p485 = pneg %p484
      // Predicated region
      $region9: #{tpu_custom_call.1} parent=5 // pred_check
        _
      $region10: #{tpu_custom_call.1} parent=5 // pred_check_branch
        %487 = sbr.rel (%p484) target = $region12
      $region11: #{tpu_custom_call.1} parent=5 // pred_region
        %s488 = ssub.s32 %s24, 1
        // Predicated region
        $region13: #{tpu_custom_call.1} parent=11 // pred_check
          %p489 = pneg %p62
        $region14: #{tpu_custom_call.1} parent=11 // pred_check_branch
          %491 = sbr.rel (%p489) target = $region16
        $region15: #{tpu_custom_call.1} parent=11 // pred_region
          %s492 = smul.u32 8, %s33
          %p493 = scmp.lt.s32.totalorder %s492, 7
          %s494 = scalar_select %p493, %s492, 7
          %s495 = smul.addr %s494, 2
          %s496 = smul.addr %s495, 4
          %s497 = scalar_lea.vmem %s0, %s496
          %s498 = smul.u32 8, %s33
        $region16: #{tpu_custom_call.1} parent=11 // pred_fallthru
          _
        // Predicated region
        $region17: #{tpu_custom_call.1} parent=11 // pred_check
          %p499 = pneg %p83
        $region18: #{tpu_custom_call.1} parent=11 // pred_check_branch
          %501 = sbr.rel (%p499) target = $region20
        $region19: #{tpu_custom_call.1} parent=11 // pred_region
          _
        $region20: #{tpu_custom_call.1} parent=11 // pred_fallthru
          _
        // Predicated region
        $region21: #{tpu_custom_call.1} parent=11 // pred_check
          %p502 = pneg %p104
        $region22: #{tpu_custom_call.1} parent=11 // pred_check_branch
          %504 = sbr.rel (%p502) target = $region24
        $region23: #{tpu_custom_call.1} parent=11 // pred_region
          _
        $region24: #{tpu_custom_call.1} parent=11 // pred_fallthru
          _
        // Predicated region
        $region25: #{tpu_custom_call.1} parent=11 // pred_check
          %p505 = pneg %p385
        $region26: #{tpu_custom_call.1} parent=11 // pred_check_branch
          %507 = sbr.rel (%p505) target = $region28
        $region27: #{tpu_custom_call.1} parent=11 // pred_region
          _
        $region28: #{tpu_custom_call.1} parent=11 // pred_fallthru
          _
        // Predicated region
        $region29: #{tpu_custom_call.1} parent=11 // pred_check
          %p508 = pneg %p406
        $region30: #{tpu_custom_call.1} parent=11 // pred_check_branch
          %510 = sbr.rel (%p508) target = $region32
        $region31: #{tpu_custom_call.1} parent=11 // pred_region
          _
        $region32: #{tpu_custom_call.1} parent=11 // pred_fallthru
          _
        // Predicated region
        $region33: #{tpu_custom_call.1} parent=11 // pred_check
          %p511 = pneg %p427
        $region34: #{tpu_custom_call.1} parent=11 // pred_check_branch
          %513 = sbr.rel (%p511) target = $region36
        $region35: #{tpu_custom_call.1} parent=11 // pred_region
          _
        $region36: #{tpu_custom_call.1} parent=11 // pred_fallthru
          _
        // Predicated region
        $region37: #{tpu_custom_call.1} parent=11 // pred_check
          %p514 = pneg %p448
        $region38: #{tpu_custom_call.1} parent=11 // pred_check_branch
          %516 = sbr.rel (%p514) target = $region40
        $region39: #{tpu_custom_call.1} parent=11 // pred_region
          _
        $region40: #{tpu_custom_call.1} parent=11 // pred_fallthru
          _
      $region12: #{tpu_custom_call.1} parent=5 // pred_fallthru
        _
      %p517 = scmp.lt.s32.totalorder %s24, 2
      // Predicated region
      $region41: #{tpu_custom_call.1} parent=5 // pred_check
        %p518 = pneg %p517
      $region42: #{tpu_custom_call.1} parent=5 // pred_check_branch
        %520 = sbr.rel (%p518) target = $region44
      $region43: #{tpu_custom_call.1} parent=5 // pred_region
        // Predicated region
        $region45: #{tpu_custom_call.1} parent=43 // pred_check
          %p521 = pneg %p124
        $region46: #{tpu_custom_call.1} parent=43 // pred_check_branch
          %523 = sbr.rel (%p521) target = $region48
        $region47: #{tpu_custom_call.1} parent=43 // pred_region
          %p524 = scmp.lt.s32.totalorder %s32, 1
          %s525 = scalar_select %p524, %s32, 1
          %s526 = scalar_lea.vmem %s3, %s525
        $region48: #{tpu_custom_call.1} parent=43 // pred_fallthru
          _
        // Predicated region
        $region49: #{tpu_custom_call.1} parent=43 // pred_check
          %p527 = pneg %p150
        $region50: #{tpu_custom_call.1} parent=43 // pred_check_branch
          %529 = sbr.rel (%p527) target = $region52
        $region51: #{tpu_custom_call.1} parent=43 // pred_region
          %p530 = scmp.lt.s32.totalorder %s32, 1
          %s531 = scalar_select %p530, %s32, 1
          %s532 = scalar_lea.vmem %s4, %s531
        $region52: #{tpu_custom_call.1} parent=43 // pred_fallthru
          _
        // Predicated region
        $region53: #{tpu_custom_call.1} parent=43 // pred_check
          %p533 = pneg %p176
        $region54: #{tpu_custom_call.1} parent=43 // pred_check_branch
          %535 = sbr.rel (%p533) target = $region56
        $region55: #{tpu_custom_call.1} parent=43 // pred_region
          %p536 = scmp.lt.s32.totalorder %s32, 1
          %s537 = scalar_select %p536, %s32, 1
          %s538 = smul.addr %s537, 2
          %s539 = smul.addr %s538, 4
          %s540 = scalar_lea.vmem %s5, %s539
        $region56: #{tpu_custom_call.1} parent=43 // pred_fallthru
          _
        // Predicated region
        $region57: #{tpu_custom_call.1} parent=43 // pred_check
          %p541 = pneg %p202
        $region58: #{tpu_custom_call.1} parent=43 // pred_check_branch
          %543 = sbr.rel (%p541) target = $region60
        $region59: #{tpu_custom_call.1} parent=43 // pred_region
          %p544 = scmp.lt.s32.totalorder %s32, 1
          %s545 = scalar_select %p544, %s32, 1
          %s546 = scalar_lea.vmem %s6, %s545
        $region60: #{tpu_custom_call.1} parent=43 // pred_fallthru
          _
        // Predicated region
        $region61: #{tpu_custom_call.1} parent=43 // pred_check
          %p547 = pneg %p228
        $region62: #{tpu_custom_call.1} parent=43 // pred_check_branch
          %549 = sbr.rel (%p547) target = $region64
        $region63: #{tpu_custom_call.1} parent=43 // pred_region
          %p550 = scmp.lt.s32.totalorder %s32, 1
          %s551 = scalar_select %p550, %s32, 1
          %s552 = smul.addr %s551, 4
          %s553 = smul.addr %s552, 4
          %s554 = scalar_lea.vmem %s7, %s553
        $region64: #{tpu_custom_call.1} parent=43 // pred_fallthru
          _
        // Predicated region
        $region65: #{tpu_custom_call.1} parent=43 // pred_check
          %p555 = pneg %p254
        $region66: #{tpu_custom_call.1} parent=43 // pred_check_branch
          %557 = sbr.rel (%p555) target = $region68
        $region67: #{tpu_custom_call.1} parent=43 // pred_region
          %p558 = scmp.lt.s32.totalorder %s32, 1
          %s559 = scalar_select %p558, %s32, 1
          %s560 = scalar_lea.vmem %s8, %s559
        $region68: #{tpu_custom_call.1} parent=43 // pred_fallthru
          _
        // Predicated region
        $region69: #{tpu_custom_call.1} parent=43 // pred_check
          %p561 = pneg %p280
        $region70: #{tpu_custom_call.1} parent=43 // pred_check_branch
          %563 = sbr.rel (%p561) target = $region72
        $region71: #{tpu_custom_call.1} parent=43 // pred_region
          %p564 = scmp.lt.s32.totalorder %s32, 1
          %s565 = scalar_select %p564, %s32, 1
          %s566 = smul.addr %s565, 4
          %s567 = smul.addr %s566, 4
          %s568 = scalar_lea.vmem %s9, %s567
        $region72: #{tpu_custom_call.1} parent=43 // pred_fallthru
          _
        // Predicated region
        $region73: #{tpu_custom_call.1} parent=43 // pred_check
          %p569 = pneg %p306
        $region74: #{tpu_custom_call.1} parent=43 // pred_check_branch
          %571 = sbr.rel (%p569) target = $region76
        $region75: #{tpu_custom_call.1} parent=43 // pred_region
          %p572 = scmp.lt.s32.totalorder %s32, 1
          %s573 = scalar_select %p572, %s32, 1
          %s574 = scalar_lea.vmem %s10, %s573
        $region76: #{tpu_custom_call.1} parent=43 // pred_fallthru
          _
        // Predicated region
        $region77: #{tpu_custom_call.1} parent=43 // pred_check
          %p575 = pneg %p332
        $region78: #{tpu_custom_call.1} parent=43 // pred_check_branch
          %577 = sbr.rel (%p575) target = $region80
        $region79: #{tpu_custom_call.1} parent=43 // pred_region
          %p578 = scmp.lt.s32.totalorder %s32, 1
          %s579 = scalar_select %p578, %s32, 1
          %s580 = smul.addr %s579, 8
          %s581 = smul.addr %s580, 4
          %s582 = scalar_lea.vmem %s11, %s581
        $region80: #{tpu_custom_call.1} parent=43 // pred_fallthru
          _
        // Predicated region
        $region81: #{tpu_custom_call.1} parent=43 // pred_check
          %p583 = pneg %p358
        $region82: #{tpu_custom_call.1} parent=43 // pred_check_branch
          %585 = sbr.rel (%p583) target = $region84
        $region83: #{tpu_custom_call.1} parent=43 // pred_region
          %p586 = scmp.lt.s32.totalorder %s32, 1
          %s587 = scalar_select %p586, %s32, 1
          %s588 = scalar_lea.vmem %s12, %s587
        $region84: #{tpu_custom_call.1} parent=43 // pred_fallthru
          _
      $region44: #{tpu_custom_call.1} parent=5 // pred_fallthru
        _
      %p589 = scmp.le.s32.totalorder 1, %s24
      %p590 = scmp.lt.s32.totalorder %s24, 3
      %p591 = pnand %p589, %p590
      %p592 = pneg %p591
      // Predicated region
      $region85: #{tpu_custom_call.1} parent=5 // pred_check
        _
      $region86: #{tpu_custom_call.1} parent=5 // pred_check_branch
        %594 = sbr.rel (%p591) target = $region88
      $region87: #{tpu_custom_call.1} parent=5 // pred_region
        %s595 = ssub.s32 %s24, 1
        %s596 = smul.u32 8, %s33
        %p597 = scmp.lt.s32.totalorder %s596, 7
        %s598 = scalar_select %p597, %s596, 7
        %s599 = smul.addr %s598, 2
        %s600 = smul.addr %s599, 4
        %s601 = scalar_lea.vmem %s0, %s600
        %p602 = pneg %p62
        %p603 = pneg %p59
        %p604 = pneg %p83
        %p605 = pneg %p80
        %p606 = pneg %p104
        %p607 = pneg %p101
        %p608 = scmp.lt.s32.totalorder %s34, 1
        %s609 = scalar_select %p608, %s34, 1
        %s610 = scalar_lea.vmem %s3, %s609
        %p611 = pneg %p130
        %p612 = pneg %p127
        %p613 = scmp.lt.s32.totalorder %s34, 1
        %s614 = scalar_select %p613, %s34, 1
        %s615 = scalar_lea.vmem %s4, %s614
        %p616 = pneg %p156
        %p617 = pneg %p153
        %p618 = scmp.lt.s32.totalorder %s34, 1
        %s619 = scalar_select %p618, %s34, 1
        %s620 = smul.addr %s619, 2
        %s621 = smul.addr %s620, 4
        %s622 = scalar_lea.vmem %s5, %s621
        %p623 = pneg %p182
        %p624 = pneg %p179
        %p625 = scmp.lt.s32.totalorder %s34, 1
        %s626 = scalar_select %p625, %s34, 1
        %s627 = scalar_lea.vmem %s6, %s626
        %p628 = pneg %p208
        %p629 = pneg %p205
        %p630 = scmp.lt.s32.totalorder %s34, 1
        %s631 = scalar_select %p630, %s34, 1
        %s632 = smul.addr %s631, 4
        %s633 = smul.addr %s632, 4
        %s634 = scalar_lea.vmem %s7, %s633
        %p635 = pneg %p234
        %p636 = pneg %p231
        %p637 = scmp.lt.s32.totalorder %s34, 1
        %s638 = scalar_select %p637, %s34, 1
        %s639 = scalar_lea.vmem %s8, %s638
        %p640 = pneg %p260
        %p641 = pneg %p257
        %p642 = scmp.lt.s32.totalorder %s34, 1
        %s643 = scalar_select %p642, %s34, 1
        %s644 = smul.addr %s643, 4
        %s645 = smul.addr %s644, 4
        %s646 = scalar_lea.vmem %s9, %s645
        %p647 = pneg %p286
        %p648 = pneg %p283
        %p649 = scmp.lt.s32.totalorder %s34, 1
        %s650 = scalar_select %p649, %s34, 1
        %s651 = scalar_lea.vmem %s10, %s650
        %p652 = pneg %p312
        %p653 = pneg %p309
        %p654 = scmp.lt.s32.totalorder %s34, 1
        %s655 = scalar_select %p654, %s34, 1
        %s656 = smul.addr %s655, 8
        %s657 = smul.addr %s656, 4
        %s658 = scalar_lea.vmem %s11, %s657
        %p659 = pneg %p338
        %p660 = pneg %p335
        %p661 = scmp.lt.s32.totalorder %s34, 1
        %s662 = scalar_select %p661, %s34, 1
        %s663 = scalar_lea.vmem %s12, %s662
        %p664 = pneg %p364
        %p665 = pneg %p361
        %p666 = pneg %p385
        %p667 = pneg %p382
        %p668 = pneg %p406
        %p669 = pneg %p403
        %p670 = pneg %p427
        %p671 = pneg %p424
        %p672 = pneg %p448
        %p673 = pneg %p445
        %p674 = pneg %p474
        %p675 = pneg %p471
        %s676 = smul.u32 8, %s33
        %p677 = scmp.lt.s32.totalorder %s676, 7
        %s678 = scalar_select %p677, %s676, 7
        %s679 = smul.addr %s678, 2
        %s680 = smul.addr %s679, 4
        %s681 = scalar_lea.vmem %s0, %s680
        %s682 = smul.u32 8, %s33
        %p683 = scmp.lt.s32.totalorder %s34, 1
        %s684 = scalar_select %p683, %s34, 1
        %s685 = scalar_lea.vmem %s3, %s684
        %p686 = scmp.lt.s32.totalorder %s34, 1
        %s687 = scalar_select %p686, %s34, 1
        %s688 = scalar_lea.vmem %s4, %s687
        %p689 = scmp.lt.s32.totalorder %s34, 1
        %s690 = scalar_select %p689, %s34, 1
        %s691 = smul.addr %s690, 2
        %s692 = smul.addr %s691, 4
        %s693 = scalar_lea.vmem %s5, %s692
        %p694 = scmp.lt.s32.totalorder %s34, 1
        %s695 = scalar_select %p694, %s34, 1
        %s696 = scalar_lea.vmem %s6, %s695
        %p697 = scmp.lt.s32.totalorder %s34, 1
        %s698 = scalar_select %p697, %s34, 1
        %s699 = smul.addr %s698, 4
        %s700 = smul.addr %s699, 4
        %s701 = scalar_lea.vmem %s7, %s700
        %p702 = scmp.lt.s32.totalorder %s34, 1
        %s703 = scalar_select %p702, %s34, 1
        %s704 = scalar_lea.vmem %s8, %s703
        %p705 = scmp.lt.s32.totalorder %s34, 1
        %s706 = scalar_select %p705, %s34, 1
        %s707 = smul.addr %s706, 4
        %s708 = smul.addr %s707, 4
        %s709 = scalar_lea.vmem %s9, %s708
        %p710 = scmp.lt.s32.totalorder %s34, 1
        %s711 = scalar_select %p710, %s34, 1
        %s712 = scalar_lea.vmem %s10, %s711
        %p713 = scmp.lt.s32.totalorder %s34, 1
        %s714 = scalar_select %p713, %s34, 1
        %s715 = smul.addr %s714, 8
        %s716 = smul.addr %s715, 4
        %s717 = scalar_lea.vmem %s11, %s716
        %p718 = scmp.lt.s32.totalorder %s34, 1
        %s719 = scalar_select %p718, %s34, 1
        %s720 = scalar_lea.vmem %s12, %s719
        %p722 = scmp.eq.s32.totalorder %s34, 0
        // Predicated region
        $region89: #{tpu_custom_call.1} parent=87 // pred_check
          %p723 = pneg %p722
        $region90: #{tpu_custom_call.1} parent=87 // pred_check_branch
          %725 = sbr.rel (%p723) target = $region92
        $region91: #{tpu_custom_call.1} parent=87 // pred_region
          %v726 = vld [vmem:[%s681] sm:$0xf]
          %v727 = vld [vmem:[%s681 + $0x4] sm:$0xf]
          %v728 = vld [vmem:[%s681 + $0x8] sm:$0xf]
          %v729 = vld [vmem:[%s681 + $0xc] sm:$0xf]
          %v730 = vld [vmem:[%s681 + $0x10] sm:$0xf]
          %v731 = vld [vmem:[%s681 + $0x14] sm:$0xf]
          %v732 = vld [vmem:[%s681 + $0x18] sm:$0xf]
          %v733 = vld [vmem:[%s681 + $0x1c] sm:$0xf]
          %v734 = vld [vmem:[%s681 + $0x20] sm:$0xf]
          %v735 = vld [vmem:[%s681 + $0x24] sm:$0xf]
          %v736 = vld [vmem:[%s681 + $0x28] sm:$0xf]
          %v737 = vld [vmem:[%s681 + $0x2c] sm:$0xf]
          %v738 = vld [vmem:[%s681 + $0x30] sm:$0xf]
          %v739 = vld [vmem:[%s681 + $0x34] sm:$0xf]
          %v740 = vld [vmem:[%s681 + $0x38] sm:$0xf]
          %v741 = vld [vmem:[%s681 + $0x3c] sm:$0xf]
          %v742 = vld [vmem:[%s1] sm:$0xf]
          %v743 = vld [vmem:[%s1 + $0x4] sm:$0xf]
          %v744 = vld [vmem:[%s1 + $0x8] sm:$0xf]
          %v745 = vld [vmem:[%s1 + $0xc] sm:$0xf]
          %v746 = vld [vmem:[%s1 + $0x10] sm:$0xf]
          %v747 = vld [vmem:[%s1 + $0x14] sm:$0xf]
          %v748 = vld [vmem:[%s2] sm:$0x1]
          %v750 = vlaneseq
          %v751 = vshrl.u32 %v750, 7
          %v752 = vsub.s32 0, %v751
          %v753 = vrot.slane %v748, %v752
          %v771 = vunpack.c.l.b16 %v726
          %v772 = vunpack.c.l.b16 %v727
          %v773 = vunpack.c.l.b16 %v728
          %v774 = vunpack.c.l.b16 %v729
          %v775 = vunpack.c.l.b16 %v730
          %v776 = vunpack.c.l.b16 %v731
          %v777 = vunpack.c.l.b16 %v732
          %v778 = vunpack.c.l.b16 %v733
          %v779 = vunpack.c.l.b16 %v734
          %v780 = vunpack.c.l.b16 %v735
          %v781 = vunpack.c.l.b16 %v736
          %v782 = vunpack.c.l.b16 %v737
          %v783 = vunpack.c.l.b16 %v738
          %v784 = vunpack.c.l.b16 %v739
          %v785 = vunpack.c.l.b16 %v740
          %v786 = vunpack.c.l.b16 %v741
          %v787 = vpack.c.b16 %v772, %v771
          %v788 = vpack.c.b16 %v774, %v773
          %v789 = vpack.c.b16 %v776, %v775
          %v790 = vpack.c.b16 %v778, %v777
          %v791 = vpack.c.b16 %v780, %v779
          %v792 = vpack.c.b16 %v782, %v781
          %v793 = vpack.c.b16 %v784, %v783
          %v794 = vpack.c.b16 %v786, %v785
          %v801 = vunpack.c.l.b16 %v742
          %v802 = vunpack.c.l.b16 %v743
          %v803 = vunpack.c.l.b16 %v744
          %v804 = vunpack.c.l.b16 %v745
          %v805 = vunpack.c.l.b16 %v746
          %v806 = vunpack.c.l.b16 %v747
          %v807 = vpack.c.b16 %v802, %v801
          %v808 = vpack.c.b16 %v804, %v803
          %v809 = vpack.c.b16 %v806, %v805
          %vm813 = vcmask 392192
          %v815 = vsel %vm813, %v787, 0
          %v818 = vsel %vm813, %v788, 0
          %v821 = vsel %vm813, %v789, 0
          %v824 = vsel %vm813, %v790, 0
          %v827 = vsel %vm813, %v791, 0
          %v830 = vsel %vm813, %v792, 0
          %v833 = vsel %vm813, %v793, 0
          %v836 = vsel %vm813, %v794, 0
          %838 = vmatprep.subr.bf16.mxu0 0
          %839 = vmatpush1.bf16.msra.mxu0 0
          %840 = vmatprep.subr.bf16.mxu0 0
          %841 = vmatpush1.bf16.msra.mxu0 0
          %842 = vmatprep.subr.bf16.mxu0 0
          %843 = vmatpush1.bf16.msra.mxu0 0
          %844 = vmatprep.subr.bf16.mxu0 0
          %845 = vmatpush1.bf16.msra.mxu0 0
          %846 = vmatprep.subr.bf16.mxu0 0
          %847 = vmatpush1.bf16.msra.mxu0 0
          %848 = vmatprep.subr.bf16.mxu0 0
          %849 = vmatpush1.bf16.msra.mxu0 %v809
          %850 = vmatprep.subr.bf16.mxu0 0
          %851 = vmatpush1.bf16.msra.mxu0 %v808
          %852 = vmatprep.subr.bf16.mxu0 0
          %853 = vmatpush1.bf16.msra.mxu0 %v807
          %854 = vmatprep.subr.bf16.mxu0 0
          %855 = vmatpush2.bf16.msra.mxu0 0
          %856 = vmatprep.subr.bf16.mxu0 0
          %857 = vmatpush2.bf16.msra.mxu0 0
          %858 = vmatprep.subr.bf16.mxu0 0
          %859 = vmatpush2.bf16.msra.mxu0 0
          %860 = vmatprep.subr.bf16.mxu0 0
          %861 = vmatpush2.bf16.msra.mxu0 0
          %862 = vmatprep.subr.bf16.mxu0 0
          %863 = vmatpush2.bf16.msra.mxu0 0
          %864 = vmatprep.subr.bf16.mxu0 0
          %865 = vmatpush2.bf16.msra.mxu0 0
          %866 = vmatprep.subr.bf16.mxu0 0
          %867 = vmatpush2.bf16.msra.mxu0 0
          %868 = vmatprep.subr.bf16.mxu0 0
          %869 = vmatpush2.bf16.msra.mxu0 0
          %870 = vmatprep.mubr.bf16.mxu0 0
          %871 = vmatmul.mubr.bf16.gmra.mxu0 %v815
          %v872 = vpop.f32.mrf.mxu0
          %v873 = vadd.f32 %v753, %v872
          %v874 = vpop.f32.mrf.mxu0
          %v875 = vpop.f32.mrf.mxu0
          %v876 = vadd.f32 %v753, %v875
          %v877 = vpop.f32.mrf.mxu0
          %878 = vmatprep.mubr.bf16.mxu0 0
          %879 = vmatmul.mubr.bf16.gmra.mxu0 %v818
          %v880 = vpop.f32.mrf.mxu0
          %v881 = vadd.f32 %v753, %v880
          %v882 = vpop.f32.mrf.mxu0
          %v883 = vpop.f32.mrf.mxu0
          %v884 = vadd.f32 %v753, %v883
          %v885 = vpop.f32.mrf.mxu0
          %886 = vmatprep.mubr.bf16.mxu0 0
          %887 = vmatmul.mubr.bf16.gmra.mxu0 %v821
          %v888 = vpop.f32.mrf.mxu0
          %v889 = vadd.f32 %v753, %v888
          %v890 = vpop.f32.mrf.mxu0
          %v891 = vpop.f32.mrf.mxu0
          %v892 = vadd.f32 %v753, %v891
          %v893 = vpop.f32.mrf.mxu0
          %894 = vmatprep.mubr.bf16.mxu0 0
          %895 = vmatmul.mubr.bf16.gmra.mxu0 %v824
          %v896 = vpop.f32.mrf.mxu0
          %v897 = vadd.f32 %v753, %v896
          %v898 = vpop.f32.mrf.mxu0
          %v899 = vpop.f32.mrf.mxu0
          %v900 = vadd.f32 %v753, %v899
          %v901 = vpop.f32.mrf.mxu0
          %902 = vmatprep.mubr.bf16.mxu0 0
          %903 = vmatmul.mubr.bf16.gmra.mxu0 %v827
          %v904 = vpop.f32.mrf.mxu0
          %v905 = vadd.f32 %v753, %v904
          %v906 = vpop.f32.mrf.mxu0
          %v907 = vpop.f32.mrf.mxu0
          %v908 = vadd.f32 %v753, %v907
          %v909 = vpop.f32.mrf.mxu0
          %910 = vmatprep.mubr.bf16.mxu0 0
          %911 = vmatmul.mubr.bf16.gmra.mxu0 %v830
          %v912 = vpop.f32.mrf.mxu0
          %v913 = vadd.f32 %v753, %v912
          %v914 = vpop.f32.mrf.mxu0
          %v915 = vpop.f32.mrf.mxu0
          %v916 = vadd.f32 %v753, %v915
          %v917 = vpop.f32.mrf.mxu0
          %918 = vmatprep.mubr.bf16.mxu0 0
          %919 = vmatmul.mubr.bf16.gmra.mxu0 %v833
          %v920 = vpop.f32.mrf.mxu0
          %v921 = vadd.f32 %v753, %v920
          %v922 = vpop.f32.mrf.mxu0
          %v923 = vpop.f32.mrf.mxu0
          %v924 = vadd.f32 %v753, %v923
          %v925 = vpop.f32.mrf.mxu0
          %926 = vmatprep.mubr.bf16.mxu0 0
          %927 = vmatmul.mubr.bf16.gmra.mxu0 %v836
          %v928 = vpop.f32.mrf.mxu0
          %v929 = vadd.f32 %v753, %v928
          %v930 = vpop.f32.mrf.mxu0
          %v931 = vpop.f32.mrf.mxu0
          %v932 = vadd.f32 %v753, %v931
          %v933 = vpop.f32.mrf.mxu0
          %934 = vdwg.mxu0
          %vm935 = vcmask 261120
          %936 = vst.msk [vmem:[#allocation2] sm:$0xff] %vm935, %v873
          %937 = vst.msk [vmem:[#allocation2 + $0x8] sm:$0xff] %vm935, %v876
          %938 = vst.msk [vmem:[#allocation2 + $0x10] sm:$0xff] %vm935, %v881
          %939 = vst.msk [vmem:[#allocation2 + $0x18] sm:$0xff] %vm935, %v884
          %940 = vst.msk [vmem:[#allocation2 + $0x20] sm:$0xff] %vm935, %v889
          %941 = vst.msk [vmem:[#allocation2 + $0x28] sm:$0xff] %vm935, %v892
          %942 = vst.msk [vmem:[#allocation2 + $0x30] sm:$0xff] %vm935, %v897
          %943 = vst.msk [vmem:[#allocation2 + $0x38] sm:$0xff] %vm935, %v900
          %944 = vst.msk [vmem:[#allocation2 + $0x40] sm:$0xff] %vm935, %v905
          %945 = vst.msk [vmem:[#allocation2 + $0x48] sm:$0xff] %vm935, %v908
          %946 = vst.msk [vmem:[#allocation2 + $0x50] sm:$0xff] %vm935, %v913
          %947 = vst.msk [vmem:[#allocation2 + $0x58] sm:$0xff] %vm935, %v916
          %948 = vst.msk [vmem:[#allocation2 + $0x60] sm:$0xff] %vm935, %v921
          %949 = vst.msk [vmem:[#allocation2 + $0x68] sm:$0xff] %vm935, %v924
          %950 = vst.msk [vmem:[#allocation2 + $0x70] sm:$0xff] %vm935, %v929
          %951 = vst.msk [vmem:[#allocation2 + $0x78] sm:$0xff] %vm935, %v932
        $region92: #{tpu_custom_call.1} parent=87 // pred_fallthru
          _
        %v952 = vld [vmem:[#allocation2] sm:$0xff]
        %v953 = vld [vmem:[#allocation2 + $0x8] sm:$0xff]
        %v954 = vld [vmem:[#allocation2 + $0x10] sm:$0xff]
        %v955 = vld [vmem:[#allocation2 + $0x18] sm:$0xff]
        %v956 = vld [vmem:[#allocation2 + $0x20] sm:$0xff]
        %v957 = vld [vmem:[#allocation2 + $0x28] sm:$0xff]
        %v958 = vld [vmem:[#allocation2 + $0x30] sm:$0xff]
        %v959 = vld [vmem:[#allocation2 + $0x38] sm:$0xff]
        %v960 = vld [vmem:[#allocation2 + $0x40] sm:$0xff]
        %v961 = vld [vmem:[#allocation2 + $0x48] sm:$0xff]
        %v962 = vld [vmem:[#allocation2 + $0x50] sm:$0xff]
        %v963 = vld [vmem:[#allocation2 + $0x58] sm:$0xff]
        %v964 = vld [vmem:[#allocation2 + $0x60] sm:$0xff]
        %v965 = vld [vmem:[#allocation2 + $0x68] sm:$0xff]
        %v966 = vld [vmem:[#allocation2 + $0x70] sm:$0xff]
        %v967 = vld [vmem:[#allocation2 + $0x78] sm:$0xff]
        %v968 = vld [vmem:[%s685] sm:$0x1]
        %v969 = vld [vmem:[%s688] sm:$0x1]
        %vm970 = vcmask 261120
        %v971 = vsel %vm970, %v952, 0.0
        %972 = vadd.xlane.f32.xlu0 %v971
        %v973 = vpop.xlane.xlu0 %972
        %v974 = vsel %vm970, %v953, 0.0
        %975 = vadd.xlane.f32.xlu0 %v974
        %v976 = vpop.xlane.xlu0 %975
        %v977 = vsel %vm970, %v954, 0.0
        %978 = vadd.xlane.f32.xlu0 %v977
        %v979 = vpop.xlane.xlu0 %978
        %v980 = vsel %vm970, %v955, 0.0
        %981 = vadd.xlane.f32.xlu0 %v980
        %v982 = vpop.xlane.xlu0 %981
        %v983 = vsel %vm970, %v956, 0.0
        %984 = vadd.xlane.f32.xlu0 %v983
        %v985 = vpop.xlane.xlu0 %984
        %v986 = vsel %vm970, %v957, 0.0
        %987 = vadd.xlane.f32.xlu0 %v986
        %v988 = vpop.xlane.xlu0 %987
        %v989 = vsel %vm970, %v958, 0.0
        %990 = vadd.xlane.f32.xlu0 %v989
        %v991 = vpop.xlane.xlu0 %990
        %v992 = vsel %vm970, %v959, 0.0
        %993 = vadd.xlane.f32.xlu0 %v992
        %v994 = vpop.xlane.xlu0 %993
        %v995 = vsel %vm970, %v960, 0.0
        %996 = vadd.xlane.f32.xlu0 %v995
        %v997 = vpop.xlane.xlu0 %996
        %v998 = vsel %vm970, %v961, 0.0
        %999 = vadd.xlane.f32.xlu0 %v998
        %v1000 = vpop.xlane.xlu0 %999
        %v1001 = vsel %vm970, %v962, 0.0
        %1002 = vadd.xlane.f32.xlu0 %v1001
        %v1003 = vpop.xlane.xlu0 %1002
        %v1004 = vsel %vm970, %v963, 0.0
        %1005 = vadd.xlane.f32.xlu0 %v1004
        %v1006 = vpop.xlane.xlu0 %1005
        %v1007 = vsel %vm970, %v964, 0.0
        %1008 = vadd.xlane.f32.xlu0 %v1007
        %v1009 = vpop.xlane.xlu0 %1008
        %v1010 = vsel %vm970, %v965, 0.0
        %1011 = vadd.xlane.f32.xlu0 %v1010
        %v1012 = vpop.xlane.xlu0 %1011
        %v1013 = vsel %vm970, %v966, 0.0
        %1014 = vadd.xlane.f32.xlu0 %v1013
        %v1015 = vpop.xlane.xlu0 %1014
        %v1016 = vsel %vm970, %v967, 0.0
        %1017 = vadd.xlane.f32.xlu0 %v1016
        %v1018 = vpop.xlane.xlu0 %1017
        %v1019 = vrcp.pop 32.0
        %v1020 = vmul.f32 %v973, %v1019
        %v1021 = vmul.f32 %v976, %v1019
        %v1022 = vmul.f32 %v979, %v1019
        %v1023 = vmul.f32 %v982, %v1019
        %v1024 = vmul.f32 %v985, %v1019
        %v1025 = vmul.f32 %v988, %v1019
        %v1026 = vmul.f32 %v991, %v1019
        %v1027 = vmul.f32 %v994, %v1019
        %v1028 = vmul.f32 %v997, %v1019
        %v1029 = vmul.f32 %v1000, %v1019
        %v1030 = vmul.f32 %v1003, %v1019
        %v1031 = vmul.f32 %v1006, %v1019
        %v1032 = vmul.f32 %v1009, %v1019
        %v1033 = vmul.f32 %v1012, %v1019
        %v1034 = vmul.f32 %v1015, %v1019
        %v1035 = vmul.f32 %v1018, %v1019
        %v1036 = vsub.f32 %v952, %v1020
        %v1037 = vsub.f32 %v953, %v1021
        %v1038 = vsub.f32 %v954, %v1022
        %v1039 = vsub.f32 %v955, %v1023
        %v1040 = vsub.f32 %v956, %v1024
        %v1041 = vsub.f32 %v957, %v1025
        %v1042 = vsub.f32 %v958, %v1026
        %v1043 = vsub.f32 %v959, %v1027
        %v1044 = vsub.f32 %v960, %v1028
        %v1045 = vsub.f32 %v961, %v1029
        %v1046 = vsub.f32 %v962, %v1030
        %v1047 = vsub.f32 %v963, %v1031
        %v1048 = vsub.f32 %v964, %v1032
        %v1049 = vsub.f32 %v965, %v1033
        %v1050 = vsub.f32 %v966, %v1034
        %v1051 = vsub.f32 %v967, %v1035
        %v1052 = vmul.f32 %v1036, %v1036
        %v1053 = vmul.f32 %v1037, %v1037
        %v1054 = vmul.f32 %v1038, %v1038
        %v1055 = vmul.f32 %v1039, %v1039
        %v1056 = vmul.f32 %v1040, %v1040
        %v1057 = vmul.f32 %v1041, %v1041
        %v1058 = vmul.f32 %v1042, %v1042
        %v1059 = vmul.f32 %v1043, %v1043
        %v1060 = vmul.f32 %v1044, %v1044
        %v1061 = vmul.f32 %v1045, %v1045
        %v1062 = vmul.f32 %v1046, %v1046
        %v1063 = vmul.f32 %v1047, %v1047
        %v1064 = vmul.f32 %v1048, %v1048
        %v1065 = vmul.f32 %v1049, %v1049
        %v1066 = vmul.f32 %v1050, %v1050
        %v1067 = vmul.f32 %v1051, %v1051
        %v1068 = vsel %vm970, %v1052, 0.0
        %1069 = vadd.xlane.f32.xlu0 %v1068
        %v1070 = vpop.xlane.xlu0 %1069
        %v1071 = vsel %vm970, %v1053, 0.0
        %1072 = vadd.xlane.f32.xlu0 %v1071
        %v1073 = vpop.xlane.xlu0 %1072
        %v1074 = vsel %vm970, %v1054, 0.0
        %1075 = vadd.xlane.f32.xlu0 %v1074
        %v1076 = vpop.xlane.xlu0 %1075
        %v1077 = vsel %vm970, %v1055, 0.0
        %1078 = vadd.xlane.f32.xlu0 %v1077
        %v1079 = vpop.xlane.xlu0 %1078
        %v1080 = vsel %vm970, %v1056, 0.0
        %1081 = vadd.xlane.f32.xlu0 %v1080
        %v1082 = vpop.xlane.xlu0 %1081
        %v1083 = vsel %vm970, %v1057, 0.0
        %1084 = vadd.xlane.f32.xlu0 %v1083
        %v1085 = vpop.xlane.xlu0 %1084
        %v1086 = vsel %vm970, %v1058, 0.0
        %1087 = vadd.xlane.f32.xlu0 %v1086
        %v1088 = vpop.xlane.xlu0 %1087
        %v1089 = vsel %vm970, %v1059, 0.0
        %1090 = vadd.xlane.f32.xlu0 %v1089
        %v1091 = vpop.xlane.xlu0 %1090
        %v1092 = vsel %vm970, %v1060, 0.0
        %1093 = vadd.xlane.f32.xlu0 %v1092
        %v1094 = vpop.xlane.xlu0 %1093
        %v1095 = vsel %vm970, %v1061, 0.0
        %1096 = vadd.xlane.f32.xlu0 %v1095
        %v1097 = vpop.xlane.xlu0 %1096
        %v1098 = vsel %vm970, %v1062, 0.0
        %1099 = vadd.xlane.f32.xlu0 %v1098
        %v1100 = vpop.xlane.xlu0 %1099
        %v1101 = vsel %vm970, %v1063, 0.0
        %1102 = vadd.xlane.f32.xlu0 %v1101
        %v1103 = vpop.xlane.xlu0 %1102
        %v1104 = vsel %vm970, %v1064, 0.0
        %1105 = vadd.xlane.f32.xlu0 %v1104
        %v1106 = vpop.xlane.xlu0 %1105
        %v1107 = vsel %vm970, %v1065, 0.0
        %1108 = vadd.xlane.f32.xlu0 %v1107
        %v1109 = vpop.xlane.xlu0 %1108
        %v1110 = vsel %vm970, %v1066, 0.0
        %1111 = vadd.xlane.f32.xlu0 %v1110
        %v1112 = vpop.xlane.xlu0 %1111
        %v1113 = vsel %vm970, %v1067, 0.0
        %1114 = vadd.xlane.f32.xlu0 %v1113
        %v1115 = vpop.xlane.xlu0 %1114
        %v1116 = vmul.f32 %v1070, %v1019
        %v1117 = vmul.f32 %v1073, %v1019
        %v1118 = vmul.f32 %v1076, %v1019
        %v1119 = vmul.f32 %v1079, %v1019
        %v1120 = vmul.f32 %v1082, %v1019
        %v1121 = vmul.f32 %v1085, %v1019
        %v1122 = vmul.f32 %v1088, %v1019
        %v1123 = vmul.f32 %v1091, %v1019
        %v1124 = vmul.f32 %v1094, %v1019
        %v1125 = vmul.f32 %v1097, %v1019
        %v1126 = vmul.f32 %v1100, %v1019
        %v1127 = vmul.f32 %v1103, %v1019
        %v1128 = vmul.f32 %v1106, %v1019
        %v1129 = vmul.f32 %v1109, %v1019
        %v1130 = vmul.f32 %v1112, %v1019
        %v1131 = vmul.f32 %v1115, %v1019
        %v1132 = vadd.f32 %v1116, 1e-05
        %v1133 = vadd.f32 %v1117, 1e-05
        %v1134 = vadd.f32 %v1118, 1e-05
        %v1135 = vadd.f32 %v1119, 1e-05
        %v1136 = vadd.f32 %v1120, 1e-05
        %v1137 = vadd.f32 %v1121, 1e-05
        %v1138 = vadd.f32 %v1122, 1e-05
        %v1139 = vadd.f32 %v1123, 1e-05
        %v1140 = vadd.f32 %v1124, 1e-05
        %v1141 = vadd.f32 %v1125, 1e-05
        %v1142 = vadd.f32 %v1126, 1e-05
        %v1143 = vadd.f32 %v1127, 1e-05
        %v1144 = vadd.f32 %v1128, 1e-05
        %v1145 = vadd.f32 %v1129, 1e-05
        %v1146 = vadd.f32 %v1130, 1e-05
        %v1147 = vadd.f32 %v1131, 1e-05
        %v1148 = vrsqrt.pop %v1132
        %v1149 = vrsqrt.pop %v1133
        %v1150 = vrsqrt.pop %v1134
        %v1151 = vrsqrt.pop %v1135
        %v1152 = vrsqrt.pop %v1136
        %v1153 = vrsqrt.pop %v1137
        %v1154 = vrsqrt.pop %v1138
        %v1155 = vrsqrt.pop %v1139
        %v1156 = vrsqrt.pop %v1140
        %v1157 = vrsqrt.pop %v1141
        %v1158 = vrsqrt.pop %v1142
        %v1159 = vrsqrt.pop %v1143
        %v1160 = vrsqrt.pop %v1144
        %v1161 = vrsqrt.pop %v1145
        %v1162 = vrsqrt.pop %v1146
        %v1163 = vrsqrt.pop %v1147
        %v1164 = vmul.f32 %v1036, %v1148
        %v1165 = vmul.f32 %v1037, %v1149
        %v1166 = vmul.f32 %v1038, %v1150
        %v1167 = vmul.f32 %v1039, %v1151
        %v1168 = vmul.f32 %v1040, %v1152
        %v1169 = vmul.f32 %v1041, %v1153
        %v1170 = vmul.f32 %v1042, %v1154
        %v1171 = vmul.f32 %v1043, %v1155
        %v1172 = vmul.f32 %v1044, %v1156
        %v1173 = vmul.f32 %v1045, %v1157
        %v1174 = vmul.f32 %v1046, %v1158
        %v1175 = vmul.f32 %v1047, %v1159
        %v1176 = vmul.f32 %v1048, %v1160
        %v1177 = vmul.f32 %v1049, %v1161
        %v1178 = vmul.f32 %v1050, %v1162
        %v1179 = vmul.f32 %v1051, %v1163
        %v1181 = vlaneseq
        %v1182 = vshrl.u32 %v1181, 7
        %v1183 = vsub.s32 0, %v1182
        %v1184 = vrot.slane %v968, %v1183
        %v1186 = vmul.f32 %v1164, %v1184
        %v1187 = vmul.f32 %v1165, %v1184
        %v1188 = vmul.f32 %v1166, %v1184
        %v1189 = vmul.f32 %v1167, %v1184
        %v1190 = vmul.f32 %v1168, %v1184
        %v1191 = vmul.f32 %v1169, %v1184
        %v1192 = vmul.f32 %v1170, %v1184
        %v1193 = vmul.f32 %v1171, %v1184
        %v1194 = vmul.f32 %v1172, %v1184
        %v1195 = vmul.f32 %v1173, %v1184
        %v1196 = vmul.f32 %v1174, %v1184
        %v1197 = vmul.f32 %v1175, %v1184
        %v1198 = vmul.f32 %v1176, %v1184
        %v1199 = vmul.f32 %v1177, %v1184
        %v1200 = vmul.f32 %v1178, %v1184
        %v1201 = vmul.f32 %v1179, %v1184
        %v1203 = vlaneseq
        %v1204 = vshrl.u32 %v1203, 7
        %v1205 = vsub.s32 0, %v1204
        %v1206 = vrot.slane %v969, %v1205
        %v1208 = vadd.f32 %v1186, %v1206
        %v1209 = vadd.f32 %v1187, %v1206
        %v1210 = vadd.f32 %v1188, %v1206
        %v1211 = vadd.f32 %v1189, %v1206
        %v1212 = vadd.f32 %v1190, %v1206
        %v1213 = vadd.f32 %v1191, %v1206
        %v1214 = vadd.f32 %v1192, %v1206
        %v1215 = vadd.f32 %v1193, %v1206
        %v1216 = vadd.f32 %v1194, %v1206
        %v1217 = vadd.f32 %v1195, %v1206
        %v1218 = vadd.f32 %v1196, %v1206
        %v1219 = vadd.f32 %v1197, %v1206
        %v1220 = vadd.f32 %v1198, %v1206
        %v1221 = vadd.f32 %v1199, %v1206
        %v1222 = vadd.f32 %v1200, %v1206
        %v1223 = vadd.f32 %v1201, %v1206
        %1224 = vxpose.xlu0.b32.start [1/16] %v1208, 128
        %1225 = vxpose.xlu0.b32.cont [2/16] %v1209, 128
        %1226 = vxpose.xlu0.b32.cont [3/16] 0.0, 128
        %1227 = vxpose.xlu0.b32.cont [4/16] 0.0, 128
        %1228 = vxpose.xlu0.b32.cont [5/16] 0.0, 128
        %1229 = vxpose.xlu0.b32.cont [6/16] 0.0, 128
        %1230 = vxpose.xlu0.b32.cont [7/16] 0.0, 128
        %1231 = vxpose.xlu0.b32.cont [8/16] 0.0, 128
        %1232 = vxpose.xlu0.b32.cont [9/16] 0.0, 128
        %1233 = vxpose.xlu0.b32.cont [10/16] 0.0, 128
        %1234 = vxpose.xlu0.b32.cont [11/16] 0.0, 128
        %1235 = vxpose.xlu0.b32.cont [12/16] 0.0, 128
        %1236 = vxpose.xlu0.b32.cont [13/16] 0.0, 128
        %1237 = vxpose.xlu0.b32.cont [14/16] 0.0, 128
        %1238 = vxpose.xlu0.b32.cont [15/16] 0.0, 128
        %1239 = vxpose.xlu0.b32.end [16/16] 0.0, 128
        %v1240 = vpop.trf.xlu0
        %v1241 = vpop.trf.xlu0
        %v1242 = vpop.trf.xlu0
        %v1243 = vpop.trf.xlu0
        %v1244 = vpop.trf.xlu0
        %v1245 = vpop.trf.xlu0
        %v1246 = vpop.trf.xlu0
        %v1247 = vpop.trf.xlu0
        %v1248 = vpop.trf.xlu0
        %v1249 = vpop.trf.xlu0
        %v1250 = vpop.trf.xlu0
        %v1251 = vpop.trf.xlu0
        %v1252 = vpop.trf.xlu0
        %v1253 = vpop.trf.xlu0
        %v1254 = vpop.trf.xlu0
        %v1255 = vpop.trf.xlu0
        %1256 = vxpose.xlu0.b32.start [1/16] %v1210, 128
        %1257 = vxpose.xlu0.b32.cont [2/16] %v1211, 128
        %1258 = vxpose.xlu0.b32.cont [3/16] 0.0, 128
        %1259 = vxpose.xlu0.b32.cont [4/16] 0.0, 128
        %1260 = vxpose.xlu0.b32.cont [5/16] 0.0, 128
        %1261 = vxpose.xlu0.b32.cont [6/16] 0.0, 128
        %1262 = vxpose.xlu0.b32.cont [7/16] 0.0, 128
        %1263 = vxpose.xlu0.b32.cont [8/16] 0.0, 128
        %1264 = vxpose.xlu0.b32.cont [9/16] 0.0, 128
        %1265 = vxpose.xlu0.b32.cont [10/16] 0.0, 128
        %1266 = vxpose.xlu0.b32.cont [11/16] 0.0, 128
        %1267 = vxpose.xlu0.b32.cont [12/16] 0.0, 128
        %1268 = vxpose.xlu0.b32.cont [13/16] 0.0, 128
        %1269 = vxpose.xlu0.b32.cont [14/16] 0.0, 128
        %1270 = vxpose.xlu0.b32.cont [15/16] 0.0, 128
        %1271 = vxpose.xlu0.b32.end [16/16] 0.0, 128
        %v1272 = vpop.trf.xlu0
        %v1273 = vpop.trf.xlu0
        %v1274 = vpop.trf.xlu0
        %v1275 = vpop.trf.xlu0
        %v1276 = vpop.trf.xlu0
        %v1277 = vpop.trf.xlu0
        %v1278 = vpop.trf.xlu0
        %v1279 = vpop.trf.xlu0
        %v1280 = vpop.trf.xlu0
        %v1281 = vpop.trf.xlu0
        %v1282 = vpop.trf.xlu0
        %v1283 = vpop.trf.xlu0
        %v1284 = vpop.trf.xlu0
        %v1285 = vpop.trf.xlu0
        %v1286 = vpop.trf.xlu0
        %v1287 = vpop.trf.xlu0
        %1288 = vxpose.xlu0.b32.start [1/16] %v1212, 128
        %1289 = vxpose.xlu0.b32.cont [2/16] %v1213, 128
        %1290 = vxpose.xlu0.b32.cont [3/16] 0.0, 128
        %1291 = vxpose.xlu0.b32.cont [4/16] 0.0, 128
        %1292 = vxpose.xlu0.b32.cont [5/16] 0.0, 128
        %1293 = vxpose.xlu0.b32.cont [6/16] 0.0, 128
        %1294 = vxpose.xlu0.b32.cont [7/16] 0.0, 128
        %1295 = vxpose.xlu0.b32.cont [8/16] 0.0, 128
        %1296 = vxpose.xlu0.b32.cont [9/16] 0.0, 128
        %1297 = vxpose.xlu0.b32.cont [10/16] 0.0, 128
        %1298 = vxpose.xlu0.b32.cont [11/16] 0.0, 128
        %1299 = vxpose.xlu0.b32.cont [12/16] 0.0, 128
        %1300 = vxpose.xlu0.b32.cont [13/16] 0.0, 128
        %1301 = vxpose.xlu0.b32.cont [14/16] 0.0, 128
        %1302 = vxpose.xlu0.b32.cont [15/16] 0.0, 128
        %1303 = vxpose.xlu0.b32.end [16/16] 0.0, 128
        %v1304 = vpop.trf.xlu0
        %v1305 = vpop.trf.xlu0
        %v1306 = vpop.trf.xlu0
        %v1307 = vpop.trf.xlu0
        %v1308 = vpop.trf.xlu0
        %v1309 = vpop.trf.xlu0
        %v1310 = vpop.trf.xlu0
        %v1311 = vpop.trf.xlu0
        %v1312 = vpop.trf.xlu0
        %v1313 = vpop.trf.xlu0
        %v1314 = vpop.trf.xlu0
        %v1315 = vpop.trf.xlu0
        %v1316 = vpop.trf.xlu0
        %v1317 = vpop.trf.xlu0
        %v1318 = vpop.trf.xlu0
        %v1319 = vpop.trf.xlu0
        %1320 = vxpose.xlu0.b32.start [1/16] %v1214, 128
        %1321 = vxpose.xlu0.b32.cont [2/16] %v1215, 128
        %1322 = vxpose.xlu0.b32.cont [3/16] 0.0, 128
        %1323 = vxpose.xlu0.b32.cont [4/16] 0.0, 128
        %1324 = vxpose.xlu0.b32.cont [5/16] 0.0, 128
        %1325 = vxpose.xlu0.b32.cont [6/16] 0.0, 128
        %1326 = vxpose.xlu0.b32.cont [7/16] 0.0, 128
        %1327 = vxpose.xlu0.b32.cont [8/16] 0.0, 128
        %1328 = vxpose.xlu0.b32.cont [9/16] 0.0, 128
        %1329 = vxpose.xlu0.b32.cont [10/16] 0.0, 128
        %1330 = vxpose.xlu0.b32.cont [11/16] 0.0, 128
        %1331 = vxpose.xlu0.b32.cont [12/16] 0.0, 128
        %1332 = vxpose.xlu0.b32.cont [13/16] 0.0, 128
        %1333 = vxpose.xlu0.b32.cont [14/16] 0.0, 128
        %1334 = vxpose.xlu0.b32.cont [15/16] 0.0, 128
        %1335 = vxpose.xlu0.b32.end [16/16] 0.0, 128
        %v1336 = vpop.trf.xlu0
        %v1337 = vpop.trf.xlu0
        %v1338 = vpop.trf.xlu0
        %v1339 = vpop.trf.xlu0
        %v1340 = vpop.trf.xlu0
        %v1341 = vpop.trf.xlu0
        %v1342 = vpop.trf.xlu0
        %v1343 = vpop.trf.xlu0
        %v1344 = vpop.trf.xlu0
        %v1345 = vpop.trf.xlu0
        %v1346 = vpop.trf.xlu0
        %v1347 = vpop.trf.xlu0
        %v1348 = vpop.trf.xlu0
        %v1349 = vpop.trf.xlu0
        %v1350 = vpop.trf.xlu0
        %v1351 = vpop.trf.xlu0
        %1352 = vxpose.xlu0.b32.start [1/16] %v1216, 128
        %1353 = vxpose.xlu0.b32.cont [2/16] %v1217, 128
        %1354 = vxpose.xlu0.b32.cont [3/16] 0.0, 128
        %1355 = vxpose.xlu0.b32.cont [4/16] 0.0, 128
        %1356 = vxpose.xlu0.b32.cont [5/16] 0.0, 128
        %1357 = vxpose.xlu0.b32.cont [6/16] 0.0, 128
        %1358 = vxpose.xlu0.b32.cont [7/16] 0.0, 128
        %1359 = vxpose.xlu0.b32.cont [8/16] 0.0, 128
        %1360 = vxpose.xlu0.b32.cont [9/16] 0.0, 128
        %1361 = vxpose.xlu0.b32.cont [10/16] 0.0, 128
        %1362 = vxpose.xlu0.b32.cont [11/16] 0.0, 128
        %1363 = vxpose.xlu0.b32.cont [12/16] 0.0, 128
        %1364 = vxpose.xlu0.b32.cont [13/16] 0.0, 128
        %1365 = vxpose.xlu0.b32.cont [14/16] 0.0, 128
        %1366 = vxpose.xlu0.b32.cont [15/16] 0.0, 128
        %1367 = vxpose.xlu0.b32.end [16/16] 0.0, 128
        %v1368 = vpop.trf.xlu0
        %v1369 = vpop.trf.xlu0
        %v1370 = vpop.trf.xlu0
        %v1371 = vpop.trf.xlu0
        %v1372 = vpop.trf.xlu0
        %v1373 = vpop.trf.xlu0
        %v1374 = vpop.trf.xlu0
        %v1375 = vpop.trf.xlu0
        %v1376 = vpop.trf.xlu0
        %v1377 = vpop.trf.xlu0
        %v1378 = vpop.trf.xlu0
        %v1379 = vpop.trf.xlu0
        %v1380 = vpop.trf.xlu0
        %v1381 = vpop.trf.xlu0
        %v1382 = vpop.trf.xlu0
        %v1383 = vpop.trf.xlu0
        %1384 = vxpose.xlu0.b32.start [1/16] %v1218, 128
        %1385 = vxpose.xlu0.b32.cont [2/16] %v1219, 128
        %1386 = vxpose.xlu0.b32.cont [3/16] 0.0, 128
        %1387 = vxpose.xlu0.b32.cont [4/16] 0.0, 128
        %1388 = vxpose.xlu0.b32.cont [5/16] 0.0, 128
        %1389 = vxpose.xlu0.b32.cont [6/16] 0.0, 128
        %1390 = vxpose.xlu0.b32.cont [7/16] 0.0, 128
        %1391 = vxpose.xlu0.b32.cont [8/16] 0.0, 128
        %1392 = vxpose.xlu0.b32.cont [9/16] 0.0, 128
        %1393 = vxpose.xlu0.b32.cont [10/16] 0.0, 128
        %1394 = vxpose.xlu0.b32.cont [11/16] 0.0, 128
        %1395 = vxpose.xlu0.b32.cont [12/16] 0.0, 128
        %1396 = vxpose.xlu0.b32.cont [13/16] 0.0, 128
        %1397 = vxpose.xlu0.b32.cont [14/16] 0.0, 128
        %1398 = vxpose.xlu0.b32.cont [15/16] 0.0, 128
        %1399 = vxpose.xlu0.b32.end [16/16] 0.0, 128
        %v1400 = vpop.trf.xlu0
        %v1401 = vpop.trf.xlu0
        %v1402 = vpop.trf.xlu0
        %v1403 = vpop.trf.xlu0
        %v1404 = vpop.trf.xlu0
        %v1405 = vpop.trf.xlu0
        %v1406 = vpop.trf.xlu0
        %v1407 = vpop.trf.xlu0
        %v1408 = vpop.trf.xlu0
        %v1409 = vpop.trf.xlu0
        %v1410 = vpop.trf.xlu0
        %v1411 = vpop.trf.xlu0
        %v1412 = vpop.trf.xlu0
        %v1413 = vpop.trf.xlu0
        %v1414 = vpop.trf.xlu0
        %v1415 = vpop.trf.xlu0
        %1416 = vxpose.xlu0.b32.start [1/16] %v1220, 128
        %1417 = vxpose.xlu0.b32.cont [2/16] %v1221, 128
        %1418 = vxpose.xlu0.b32.cont [3/16] 0.0, 128
        %1419 = vxpose.xlu0.b32.cont [4/16] 0.0, 128
        %1420 = vxpose.xlu0.b32.cont [5/16] 0.0, 128
        %1421 = vxpose.xlu0.b32.cont [6/16] 0.0, 128
        %1422 = vxpose.xlu0.b32.cont [7/16] 0.0, 128
        %1423 = vxpose.xlu0.b32.cont [8/16] 0.0, 128
        %1424 = vxpose.xlu0.b32.cont [9/16] 0.0, 128
        %1425 = vxpose.xlu0.b32.cont [10/16] 0.0, 128
        %1426 = vxpose.xlu0.b32.cont [11/16] 0.0, 128
        %1427 = vxpose.xlu0.b32.cont [12/16] 0.0, 128
        %1428 = vxpose.xlu0.b32.cont [13/16] 0.0, 128
        %1429 = vxpose.xlu0.b32.cont [14/16] 0.0, 128
        %1430 = vxpose.xlu0.b32.cont [15/16] 0.0, 128
        %1431 = vxpose.xlu0.b32.end [16/16] 0.0, 128
        %v1432 = vpop.trf.xlu0
        %v1433 = vpop.trf.xlu0
        %v1434 = vpop.trf.xlu0
        %v1435 = vpop.trf.xlu0
        %v1436 = vpop.trf.xlu0
        %v1437 = vpop.trf.xlu0
        %v1438 = vpop.trf.xlu0
        %v1439 = vpop.trf.xlu0
        %v1440 = vpop.trf.xlu0
        %v1441 = vpop.trf.xlu0
        %v1442 = vpop.trf.xlu0
        %v1443 = vpop.trf.xlu0
        %v1444 = vpop.trf.xlu0
        %v1445 = vpop.trf.xlu0
        %v1446 = vpop.trf.xlu0
        %v1447 = vpop.trf.xlu0
        %1448 = vxpose.xlu0.b32.start [1/16] %v1222, 128
        %1449 = vxpose.xlu0.b32.cont [2/16] %v1223, 128
        %1450 = vxpose.xlu0.b32.cont [3/16] 0.0, 128
        %1451 = vxpose.xlu0.b32.cont [4/16] 0.0, 128
        %1452 = vxpose.xlu0.b32.cont [5/16] 0.0, 128
        %1453 = vxpose.xlu0.b32.cont [6/16] 0.0, 128
        %1454 = vxpose.xlu0.b32.cont [7/16] 0.0, 128
        %1455 = vxpose.xlu0.b32.cont [8/16] 0.0, 128
        %1456 = vxpose.xlu0.b32.cont [9/16] 0.0, 128
        %1457 = vxpose.xlu0.b32.cont [10/16] 0.0, 128
        %1458 = vxpose.xlu0.b32.cont [11/16] 0.0, 128
        %1459 = vxpose.xlu0.b32.cont [12/16] 0.0, 128
        %1460 = vxpose.xlu0.b32.cont [13/16] 0.0, 128
        %1461 = vxpose.xlu0.b32.cont [14/16] 0.0, 128
        %1462 = vxpose.xlu0.b32.cont [15/16] 0.0, 128
        %1463 = vxpose.xlu0.b32.end [16/16] 0.0, 128
        %v1464 = vpop.trf.xlu0
        %v1465 = vpop.trf.xlu0
        %v1466 = vpop.trf.xlu0
        %v1467 = vpop.trf.xlu0
        %v1468 = vpop.trf.xlu0
        %v1469 = vpop.trf.xlu0
        %v1470 = vpop.trf.xlu0
        %v1471 = vpop.trf.xlu0
        %v1472 = vpop.trf.xlu0
        %v1473 = vpop.trf.xlu0
        %v1474 = vpop.trf.xlu0
        %v1475 = vpop.trf.xlu0
        %v1476 = vpop.trf.xlu0
        %v1477 = vpop.trf.xlu0
        %v1478 = vpop.trf.xlu0
        %v1479 = vpop.trf.xlu0
        %v1480 = vpack.c.bf16 %v1241, %v1240
        %v1481 = vpack.c.bf16 %v1243, %v1242
        %v1482 = vpack.c.bf16 %v1273, %v1272
        %v1483 = vpack.c.bf16 %v1275, %v1274
        %v1484 = vpack.c.bf16 %v1305, %v1304
        %v1485 = vpack.c.bf16 %v1307, %v1306
        %v1486 = vpack.c.bf16 %v1337, %v1336
        %v1487 = vpack.c.bf16 %v1339, %v1338
        %v1488 = vpack.c.bf16 %v1369, %v1368
        %v1489 = vpack.c.bf16 %v1371, %v1370
        %v1490 = vpack.c.bf16 %v1401, %v1400
        %v1491 = vpack.c.bf16 %v1403, %v1402
        %v1492 = vpack.c.bf16 %v1433, %v1432
        %v1493 = vpack.c.bf16 %v1435, %v1434
        %v1494 = vpack.c.bf16 %v1465, %v1464
        %v1495 = vpack.c.bf16 %v1467, %v1466
        %v1496 = vld [vmem:[%s693] sm:$0xf]
        %v1497 = vld [vmem:[%s693 + $0x4] sm:$0xf]
        %v1498 = vld [vmem:[%s696] sm:$0x1]
        %v1500 = vlaneseq
        %v1501 = vshrl.u32 %v1500, 7
        %v1502 = vsub.s32 0, %v1501
        %v1503 = vrot.slane %v1498, %v1502
        %v1507 = vunpack.c.l.b16 %v1496
        %v1508 = vunpack.c.l.b16 %v1497
        %v1509 = vpack.c.b16 %v1508, %v1507
        %vm1511 = vcmask 130048
        %v1513 = vsel %vm1511, %v1480, 0
        %v1516 = vsel %vm1511, %v1481, 0
        %v1519 = vsel %vm1511, %v1482, 0
        %v1522 = vsel %vm1511, %v1483, 0
        %v1525 = vsel %vm1511, %v1484, 0
        %v1528 = vsel %vm1511, %v1485, 0
        %v1531 = vsel %vm1511, %v1486, 0
        %v1534 = vsel %vm1511, %v1487, 0
        %v1537 = vsel %vm1511, %v1488, 0
        %v1540 = vsel %vm1511, %v1489, 0
        %v1543 = vsel %vm1511, %v1490, 0
        %v1546 = vsel %vm1511, %v1491, 0
        %v1549 = vsel %vm1511, %v1492, 0
        %v1552 = vsel %vm1511, %v1493, 0
        %v1555 = vsel %vm1511, %v1494, 0
        %v1558 = vsel %vm1511, %v1495, 0
        %1560 = vmatprep.subr.bf16.mxu0 0
        %1561 = vmatpush1.bf16.msra.mxu0 0
        %1562 = vmatprep.subr.bf16.mxu0 0
        %1563 = vmatpush1.bf16.msra.mxu0 0
        %1564 = vmatprep.subr.bf16.mxu0 0
        %1565 = vmatpush1.bf16.msra.mxu0 0
        %1566 = vmatprep.subr.bf16.mxu0 0
        %1567 = vmatpush1.bf16.msra.mxu0 0
        %1568 = vmatprep.subr.bf16.mxu0 0
        %1569 = vmatpush1.bf16.msra.mxu0 0
        %1570 = vmatprep.subr.bf16.mxu0 0
        %1571 = vmatpush1.bf16.msra.mxu0 0
        %1572 = vmatprep.subr.bf16.mxu0 0
        %1573 = vmatpush1.bf16.msra.mxu0 0
        %1574 = vmatprep.subr.bf16.mxu0 0
        %1575 = vmatpush1.bf16.msra.mxu0 %v1509
        %1576 = vmatprep.subr.bf16.mxu0 0
        %1577 = vmatpush2.bf16.msra.mxu0 0
        %1578 = vmatprep.subr.bf16.mxu0 0
        %1579 = vmatpush2.bf16.msra.mxu0 0
        %1580 = vmatprep.subr.bf16.mxu0 0
        %1581 = vmatpush2.bf16.msra.mxu0 0
        %1582 = vmatprep.subr.bf16.mxu0 0
        %1583 = vmatpush2.bf16.msra.mxu0 0
        %1584 = vmatprep.subr.bf16.mxu0 0
        %1585 = vmatpush2.bf16.msra.mxu0 0
        %1586 = vmatprep.subr.bf16.mxu0 0
        %1587 = vmatpush2.bf16.msra.mxu0 0
        %1588 = vmatprep.subr.bf16.mxu0 0
        %1589 = vmatpush2.bf16.msra.mxu0 0
        %1590 = vmatprep.subr.bf16.mxu0 0
        %1591 = vmatpush2.bf16.msra.mxu0 0
        %1592 = vmatprep.mubr.bf16.mxu0 0
        %1593 = vmatmul.mubr.bf16.gmra.mxu0 %v1513
        %v1594 = vpop.f32.mrf.mxu0
        %v1595 = vadd.f32 %v1503, %v1594
        %v1596 = vpop.f32.mrf.mxu0
        %v1597 = vpop.f32.mrf.mxu0
        %v1598 = vadd.f32 %v1503, %v1597
        %v1599 = vpop.f32.mrf.mxu0
        %1600 = vmatprep.mubr.bf16.mxu0 0
        %1601 = vmatmul.mubr.bf16.gmra.mxu0 %v1516
        %v1602 = vpop.f32.mrf.mxu0
        %v1603 = vadd.f32 %v1503, %v1602
        %v1604 = vpop.f32.mrf.mxu0
        %v1605 = vpop.f32.mrf.mxu0
        %v1606 = vadd.f32 %v1503, %v1605
        %v1607 = vpop.f32.mrf.mxu0
        %1608 = vmatprep.mubr.bf16.mxu0 0
        %1609 = vmatmul.mubr.bf16.gmra.mxu0 %v1519
        %v1610 = vpop.f32.mrf.mxu0
        %v1611 = vadd.f32 %v1503, %v1610
        %v1612 = vpop.f32.mrf.mxu0
        %v1613 = vpop.f32.mrf.mxu0
        %v1614 = vadd.f32 %v1503, %v1613
        %v1615 = vpop.f32.mrf.mxu0
        %1616 = vmatprep.mubr.bf16.mxu0 0
        %1617 = vmatmul.mubr.bf16.gmra.mxu0 %v1522
        %v1618 = vpop.f32.mrf.mxu0
        %v1619 = vadd.f32 %v1503, %v1618
        %v1620 = vpop.f32.mrf.mxu0
        %v1621 = vpop.f32.mrf.mxu0
        %v1622 = vadd.f32 %v1503, %v1621
        %v1623 = vpop.f32.mrf.mxu0
        %1624 = vmatprep.mubr.bf16.mxu0 0
        %1625 = vmatmul.mubr.bf16.gmra.mxu0 %v1525
        %v1626 = vpop.f32.mrf.mxu0
        %v1627 = vadd.f32 %v1503, %v1626
        %v1628 = vpop.f32.mrf.mxu0
        %v1629 = vpop.f32.mrf.mxu0
        %v1630 = vadd.f32 %v1503, %v1629
        %v1631 = vpop.f32.mrf.mxu0
        %1632 = vmatprep.mubr.bf16.mxu0 0
        %1633 = vmatmul.mubr.bf16.gmra.mxu0 %v1528
        %v1634 = vpop.f32.mrf.mxu0
        %v1635 = vadd.f32 %v1503, %v1634
        %v1636 = vpop.f32.mrf.mxu0
        %v1637 = vpop.f32.mrf.mxu0
        %v1638 = vadd.f32 %v1503, %v1637
        %v1639 = vpop.f32.mrf.mxu0
        %1640 = vmatprep.mubr.bf16.mxu0 0
        %1641 = vmatmul.mubr.bf16.gmra.mxu0 %v1531
        %v1642 = vpop.f32.mrf.mxu0
        %v1643 = vadd.f32 %v1503, %v1642
        %v1644 = vpop.f32.mrf.mxu0
        %v1645 = vpop.f32.mrf.mxu0
        %v1646 = vadd.f32 %v1503, %v1645
        %v1647 = vpop.f32.mrf.mxu0
        %1648 = vmatprep.mubr.bf16.mxu0 0
        %1649 = vmatmul.mubr.bf16.gmra.mxu0 %v1534
        %v1650 = vpop.f32.mrf.mxu0
        %v1651 = vadd.f32 %v1503, %v1650
        %v1652 = vpop.f32.mrf.mxu0
        %v1653 = vpop.f32.mrf.mxu0
        %v1654 = vadd.f32 %v1503, %v1653
        %v1655 = vpop.f32.mrf.mxu0
        %1656 = vmatprep.mubr.bf16.mxu0 0
        %1657 = vmatmul.mubr.bf16.gmra.mxu0 %v1537
        %v1658 = vpop.f32.mrf.mxu0
        %v1659 = vadd.f32 %v1503, %v1658
        %v1660 = vpop.f32.mrf.mxu0
        %v1661 = vpop.f32.mrf.mxu0
        %v1662 = vadd.f32 %v1503, %v1661
        %v1663 = vpop.f32.mrf.mxu0
        %1664 = vmatprep.mubr.bf16.mxu0 0
        %1665 = vmatmul.mubr.bf16.gmra.mxu0 %v1540
        %v1666 = vpop.f32.mrf.mxu0
        %v1667 = vadd.f32 %v1503, %v1666
        %v1668 = vpop.f32.mrf.mxu0
        %v1669 = vpop.f32.mrf.mxu0
        %v1670 = vadd.f32 %v1503, %v1669
        %v1671 = vpop.f32.mrf.mxu0
        %1672 = vmatprep.mubr.bf16.mxu0 0
        %1673 = vmatmul.mubr.bf16.gmra.mxu0 %v1543
        %v1674 = vpop.f32.mrf.mxu0
        %v1675 = vadd.f32 %v1503, %v1674
        %v1676 = vpop.f32.mrf.mxu0
        %v1677 = vpop.f32.mrf.mxu0
        %v1678 = vadd.f32 %v1503, %v1677
        %v1679 = vpop.f32.mrf.mxu0
        %1680 = vmatprep.mubr.bf16.mxu0 0
        %1681 = vmatmul.mubr.bf16.gmra.mxu0 %v1546
        %v1682 = vpop.f32.mrf.mxu0
        %v1683 = vadd.f32 %v1503, %v1682
        %v1684 = vpop.f32.mrf.mxu0
        %v1685 = vpop.f32.mrf.mxu0
        %v1686 = vadd.f32 %v1503, %v1685
        %v1687 = vpop.f32.mrf.mxu0
        %1688 = vmatprep.mubr.bf16.mxu0 0
        %1689 = vmatmul.mubr.bf16.gmra.mxu0 %v1549
        %v1690 = vpop.f32.mrf.mxu0
        %v1691 = vadd.f32 %v1503, %v1690
        %v1692 = vpop.f32.mrf.mxu0
        %v1693 = vpop.f32.mrf.mxu0
        %v1694 = vadd.f32 %v1503, %v1693
        %v1695 = vpop.f32.mrf.mxu0
        %1696 = vmatprep.mubr.bf16.mxu0 0
        %1697 = vmatmul.mubr.bf16.gmra.mxu0 %v1552
        %v1698 = vpop.f32.mrf.mxu0
        %v1699 = vadd.f32 %v1503, %v1698
        %v1700 = vpop.f32.mrf.mxu0
        %v1701 = vpop.f32.mrf.mxu0
        %v1702 = vadd.f32 %v1503, %v1701
        %v1703 = vpop.f32.mrf.mxu0
        %1704 = vmatprep.mubr.bf16.mxu0 0
        %1705 = vmatmul.mubr.bf16.gmra.mxu0 %v1555
        %v1706 = vpop.f32.mrf.mxu0
        %v1707 = vadd.f32 %v1503, %v1706
        %v1708 = vpop.f32.mrf.mxu0
        %v1709 = vpop.f32.mrf.mxu0
        %v1710 = vadd.f32 %v1503, %v1709
        %v1711 = vpop.f32.mrf.mxu0
        %1712 = vmatprep.mubr.bf16.mxu0 0
        %1713 = vmatmul.mubr.bf16.gmra.mxu0 %v1558
        %v1714 = vpop.f32.mrf.mxu0
        %v1715 = vadd.f32 %v1503, %v1714
        %v1716 = vpop.f32.mrf.mxu0
        %v1717 = vpop.f32.mrf.mxu0
        %v1718 = vadd.f32 %v1503, %v1717
        %v1719 = vpop.f32.mrf.mxu0
        %1720 = vdwg.mxu0
        %v1721 = vmul.f32 %v1595, 0.5
        %v1722 = vmul.f32 %v1598, 0.5
        %v1723 = vmul.f32 %v1603, 0.5
        %v1724 = vmul.f32 %v1606, 0.5
        %v1725 = vmul.f32 %v1611, 0.5
        %v1726 = vmul.f32 %v1614, 0.5
        %v1727 = vmul.f32 %v1619, 0.5
        %v1728 = vmul.f32 %v1622, 0.5
        %v1729 = vmul.f32 %v1627, 0.5
        %v1730 = vmul.f32 %v1630, 0.5
        %v1731 = vmul.f32 %v1635, 0.5
        %v1732 = vmul.f32 %v1638, 0.5
        %v1733 = vmul.f32 %v1643, 0.5
        %v1734 = vmul.f32 %v1646, 0.5
        %v1735 = vmul.f32 %v1651, 0.5
        %v1736 = vmul.f32 %v1654, 0.5
        %v1737 = vmul.f32 %v1659, 0.5
        %v1738 = vmul.f32 %v1662, 0.5
        %v1739 = vmul.f32 %v1667, 0.5
        %v1740 = vmul.f32 %v1670, 0.5
        %v1741 = vmul.f32 %v1675, 0.5
        %v1742 = vmul.f32 %v1678, 0.5
        %v1743 = vmul.f32 %v1683, 0.5
        %v1744 = vmul.f32 %v1686, 0.5
        %v1745 = vmul.f32 %v1691, 0.5
        %v1746 = vmul.f32 %v1694, 0.5
        %v1747 = vmul.f32 %v1699, 0.5
        %v1748 = vmul.f32 %v1702, 0.5
        %v1749 = vmul.f32 %v1707, 0.5
        %v1750 = vmul.f32 %v1710, 0.5
        %v1751 = vmul.f32 %v1715, 0.5
        %v1752 = vmul.f32 %v1718, 0.5
        %v1753 = vmul.f32 %v1595, 0.70710677
        %v1754 = vmul.f32 %v1598, 0.70710677
        %v1755 = vmul.f32 %v1603, 0.70710677
        %v1756 = vmul.f32 %v1606, 0.70710677
        %v1757 = vmul.f32 %v1611, 0.70710677
        %v1758 = vmul.f32 %v1614, 0.70710677
        %v1759 = vmul.f32 %v1619, 0.70710677
        %v1760 = vmul.f32 %v1622, 0.70710677
        %v1761 = vmul.f32 %v1627, 0.70710677
        %v1762 = vmul.f32 %v1630, 0.70710677
        %v1763 = vmul.f32 %v1635, 0.70710677
        %v1764 = vmul.f32 %v1638, 0.70710677
        %v1765 = vmul.f32 %v1643, 0.70710677
        %v1766 = vmul.f32 %v1646, 0.70710677
        %v1767 = vmul.f32 %v1651, 0.70710677
        %v1768 = vmul.f32 %v1654, 0.70710677
        %v1769 = vmul.f32 %v1659, 0.70710677
        %v1770 = vmul.f32 %v1662, 0.70710677
        %v1771 = vmul.f32 %v1667, 0.70710677
        %v1772 = vmul.f32 %v1670, 0.70710677
        %v1773 = vmul.f32 %v1675, 0.70710677
        %v1774 = vmul.f32 %v1678, 0.70710677
        %v1775 = vmul.f32 %v1683, 0.70710677
        %v1776 = vmul.f32 %v1686, 0.70710677
        %v1777 = vmul.f32 %v1691, 0.70710677
        %v1778 = vmul.f32 %v1694, 0.70710677
        %v1779 = vmul.f32 %v1699, 0.70710677
        %v1780 = vmul.f32 %v1702, 0.70710677
        %v1781 = vmul.f32 %v1707, 0.70710677
        %v1782 = vmul.f32 %v1710, 0.70710677
        %v1783 = vmul.f32 %v1715, 0.70710677
        %v1784 = vmul.f32 %v1718, 0.70710677
        %v1785 = verf.f32.pop %v1753
        %v1786 = verf.f32.pop %v1754
        %v1787 = verf.f32.pop %v1755
        %v1788 = verf.f32.pop %v1756
        %v1789 = verf.f32.pop %v1757
        %v1790 = verf.f32.pop %v1758
        %v1791 = verf.f32.pop %v1759
        %v1792 = verf.f32.pop %v1760
        %v1793 = verf.f32.pop %v1761
        %v1794 = verf.f32.pop %v1762
        %v1795 = verf.f32.pop %v1763
        %v1796 = verf.f32.pop %v1764
        %v1797 = verf.f32.pop %v1765
        %v1798 = verf.f32.pop %v1766
        %v1799 = verf.f32.pop %v1767
        %v1800 = verf.f32.pop %v1768
        %v1801 = verf.f32.pop %v1769
        %v1802 = verf.f32.pop %v1770
        %v1803 = verf.f32.pop %v1771
        %v1804 = verf.f32.pop %v1772
        %v1805 = verf.f32.pop %v1773
        %v1806 = verf.f32.pop %v1774
        %v1807 = verf.f32.pop %v1775
        %v1808 = verf.f32.pop %v1776
        %v1809 = verf.f32.pop %v1777
        %v1810 = verf.f32.pop %v1778
        %v1811 = verf.f32.pop %v1779
        %v1812 = verf.f32.pop %v1780
        %v1813 = verf.f32.pop %v1781
        %v1814 = verf.f32.pop %v1782
        %v1815 = verf.f32.pop %v1783
        %v1816 = verf.f32.pop %v1784
        %v1817 = vadd.f32 %v1785, 1.0
        %v1818 = vadd.f32 %v1786, 1.0
        %v1819 = vadd.f32 %v1787, 1.0
        %v1820 = vadd.f32 %v1788, 1.0
        %v1821 = vadd.f32 %v1789, 1.0
        %v1822 = vadd.f32 %v1790, 1.0
        %v1823 = vadd.f32 %v1791, 1.0
        %v1824 = vadd.f32 %v1792, 1.0
        %v1825 = vadd.f32 %v1793, 1.0
        %v1826 = vadd.f32 %v1794, 1.0
        %v1827 = vadd.f32 %v1795, 1.0
        %v1828 = vadd.f32 %v1796, 1.0
        %v1829 = vadd.f32 %v1797, 1.0
        %v1830 = vadd.f32 %v1798, 1.0
        %v1831 = vadd.f32 %v1799, 1.0
        %v1832 = vadd.f32 %v1800, 1.0
        %v1833 = vadd.f32 %v1801, 1.0
        %v1834 = vadd.f32 %v1802, 1.0
        %v1835 = vadd.f32 %v1803, 1.0
        %v1836 = vadd.f32 %v1804, 1.0
        %v1837 = vadd.f32 %v1805, 1.0
        %v1838 = vadd.f32 %v1806, 1.0
        %v1839 = vadd.f32 %v1807, 1.0
        %v1840 = vadd.f32 %v1808, 1.0
        %v1841 = vadd.f32 %v1809, 1.0
        %v1842 = vadd.f32 %v1810, 1.0
        %v1843 = vadd.f32 %v1811, 1.0
        %v1844 = vadd.f32 %v1812, 1.0
        %v1845 = vadd.f32 %v1813, 1.0
        %v1846 = vadd.f32 %v1814, 1.0
        %v1847 = vadd.f32 %v1815, 1.0
        %v1848 = vadd.f32 %v1816, 1.0
        %v1849 = vmul.f32 %v1721, %v1817
        %v1850 = vmul.f32 %v1722, %v1818
        %v1851 = vmul.f32 %v1723, %v1819
        %v1852 = vmul.f32 %v1724, %v1820
        %v1853 = vmul.f32 %v1725, %v1821
        %v1854 = vmul.f32 %v1726, %v1822
        %v1855 = vmul.f32 %v1727, %v1823
        %v1856 = vmul.f32 %v1728, %v1824
        %v1857 = vmul.f32 %v1729, %v1825
        %v1858 = vmul.f32 %v1730, %v1826
        %v1859 = vmul.f32 %v1731, %v1827
        %v1860 = vmul.f32 %v1732, %v1828
        %v1861 = vmul.f32 %v1733, %v1829
        %v1862 = vmul.f32 %v1734, %v1830
        %v1863 = vmul.f32 %v1735, %v1831
        %v1864 = vmul.f32 %v1736, %v1832
        %v1865 = vmul.f32 %v1737, %v1833
        %v1866 = vmul.f32 %v1738, %v1834
        %v1867 = vmul.f32 %v1739, %v1835
        %v1868 = vmul.f32 %v1740, %v1836
        %v1869 = vmul.f32 %v1741, %v1837
        %v1870 = vmul.f32 %v1742, %v1838
        %v1871 = vmul.f32 %v1743, %v1839
        %v1872 = vmul.f32 %v1744, %v1840
        %v1873 = vmul.f32 %v1745, %v1841
        %v1874 = vmul.f32 %v1746, %v1842
        %v1875 = vmul.f32 %v1747, %v1843
        %v1876 = vmul.f32 %v1748, %v1844
        %v1877 = vmul.f32 %v1749, %v1845
        %v1878 = vmul.f32 %v1750, %v1846
        %v1879 = vmul.f32 %v1751, %v1847
        %v1880 = vmul.f32 %v1752, %v1848
        %v1881 = vpack.c.bf16 %v1850, %v1849
        %v1882 = vpack.c.bf16 %v1852, %v1851
        %v1883 = vpack.c.bf16 %v1854, %v1853
        %v1884 = vpack.c.bf16 %v1856, %v1855
        %v1885 = vpack.c.bf16 %v1858, %v1857
        %v1886 = vpack.c.bf16 %v1860, %v1859
        %v1887 = vpack.c.bf16 %v1862, %v1861
        %v1888 = vpack.c.bf16 %v1864, %v1863
        %v1889 = vpack.c.bf16 %v1866, %v1865
        %v1890 = vpack.c.bf16 %v1868, %v1867
        %v1891 = vpack.c.bf16 %v1870, %v1869
        %v1892 = vpack.c.bf16 %v1872, %v1871
        %v1893 = vpack.c.bf16 %v1874, %v1873
        %v1894 = vpack.c.bf16 %v1876, %v1875
        %v1895 = vpack.c.bf16 %v1878, %v1877
        %v1896 = vpack.c.bf16 %v1880, %v1879
        %v1897 = vld [vmem:[%s701] sm:$0xf]
        %v1898 = vld [vmem:[%s701 + $0x4] sm:$0xf]
        %v1899 = vld [vmem:[%s701 + $0x8] sm:$0xf]
        %v1900 = vld [vmem:[%s701 + $0xc] sm:$0xf]
        %v1901 = vld [vmem:[%s704] sm:$0x1]
        %v1903 = vlaneseq
        %v1904 = vshrl.u32 %v1903, 7
        %v1905 = vsub.s32 0, %v1904
        %v1906 = vrot.slane %v1901, %v1905
        %v1912 = vunpack.c.l.b16 %v1897
        %v1913 = vunpack.c.l.b16 %v1898
        %v1914 = vunpack.c.l.b16 %v1899
        %v1915 = vunpack.c.l.b16 %v1900
        %v1916 = vpack.c.b16 %v1913, %v1912
        %v1917 = vpack.c.b16 %v1915, %v1914
        %v1921 = vsel %vm970, %v1881, 0
        %v1924 = vsel %vm970, %v1882, 0
        %v1927 = vsel %vm970, %v1883, 0
        %v1930 = vsel %vm970, %v1884, 0
        %v1933 = vsel %vm970, %v1885, 0
        %v1936 = vsel %vm970, %v1886, 0
        %v1939 = vsel %vm970, %v1887, 0
        %v1942 = vsel %vm970, %v1888, 0
        %v1945 = vsel %vm970, %v1889, 0
        %v1948 = vsel %vm970, %v1890, 0
        %v1951 = vsel %vm970, %v1891, 0
        %v1954 = vsel %vm970, %v1892, 0
        %v1957 = vsel %vm970, %v1893, 0
        %v1960 = vsel %vm970, %v1894, 0
        %v1963 = vsel %vm970, %v1895, 0
        %v1966 = vsel %vm970, %v1896, 0
        %1968 = vmatprep.subr.bf16.mxu0 0
        %1969 = vmatpush1.bf16.msra.mxu0 0
        %1970 = vmatprep.subr.bf16.mxu0 0
        %1971 = vmatpush1.bf16.msra.mxu0 0
        %1972 = vmatprep.subr.bf16.mxu0 0
        %1973 = vmatpush1.bf16.msra.mxu0 0
        %1974 = vmatprep.subr.bf16.mxu0 0
        %1975 = vmatpush1.bf16.msra.mxu0 0
        %1976 = vmatprep.subr.bf16.mxu0 0
        %1977 = vmatpush1.bf16.msra.mxu0 0
        %1978 = vmatprep.subr.bf16.mxu0 0
        %1979 = vmatpush1.bf16.msra.mxu0 0
        %1980 = vmatprep.subr.bf16.mxu0 0
        %1981 = vmatpush1.bf16.msra.mxu0 %v1917
        %1982 = vmatprep.subr.bf16.mxu0 0
        %1983 = vmatpush1.bf16.msra.mxu0 %v1916
        %1984 = vmatprep.subr.bf16.mxu0 0
        %1985 = vmatpush2.bf16.msra.mxu0 0
        %1986 = vmatprep.subr.bf16.mxu0 0
        %1987 = vmatpush2.bf16.msra.mxu0 0
        %1988 = vmatprep.subr.bf16.mxu0 0
        %1989 = vmatpush2.bf16.msra.mxu0 0
        %1990 = vmatprep.subr.bf16.mxu0 0
        %1991 = vmatpush2.bf16.msra.mxu0 0
        %1992 = vmatprep.subr.bf16.mxu0 0
        %1993 = vmatpush2.bf16.msra.mxu0 0
        %1994 = vmatprep.subr.bf16.mxu0 0
        %1995 = vmatpush2.bf16.msra.mxu0 0
        %1996 = vmatprep.subr.bf16.mxu0 0
        %1997 = vmatpush2.bf16.msra.mxu0 0
        %1998 = vmatprep.subr.bf16.mxu0 0
        %1999 = vmatpush2.bf16.msra.mxu0 0
        %2000 = vmatprep.mubr.bf16.mxu0 0
        %2001 = vmatmul.mubr.bf16.gmra.mxu0 %v1921
        %v2002 = vpop.f32.mrf.mxu0
        %v2003 = vadd.f32 %v1906, %v2002
        %v2004 = vpop.f32.mrf.mxu0
        %v2005 = vpop.f32.mrf.mxu0
        %v2006 = vadd.f32 %v1906, %v2005
        %v2007 = vpop.f32.mrf.mxu0
        %2008 = vmatprep.mubr.bf16.mxu0 0
        %2009 = vmatmul.mubr.bf16.gmra.mxu0 %v1924
        %v2010 = vpop.f32.mrf.mxu0
        %v2011 = vadd.f32 %v1906, %v2010
        %v2012 = vpop.f32.mrf.mxu0
        %v2013 = vpop.f32.mrf.mxu0
        %v2014 = vadd.f32 %v1906, %v2013
        %v2015 = vpop.f32.mrf.mxu0
        %2016 = vmatprep.mubr.bf16.mxu0 0
        %2017 = vmatmul.mubr.bf16.gmra.mxu0 %v1927
        %v2018 = vpop.f32.mrf.mxu0
        %v2019 = vadd.f32 %v1906, %v2018
        %v2020 = vpop.f32.mrf.mxu0
        %v2021 = vpop.f32.mrf.mxu0
        %v2022 = vadd.f32 %v1906, %v2021
        %v2023 = vpop.f32.mrf.mxu0
        %2024 = vmatprep.mubr.bf16.mxu0 0
        %2025 = vmatmul.mubr.bf16.gmra.mxu0 %v1930
        %v2026 = vpop.f32.mrf.mxu0
        %v2027 = vadd.f32 %v1906, %v2026
        %v2028 = vpop.f32.mrf.mxu0
        %v2029 = vpop.f32.mrf.mxu0
        %v2030 = vadd.f32 %v1906, %v2029
        %v2031 = vpop.f32.mrf.mxu0
        %2032 = vmatprep.mubr.bf16.mxu0 0
        %2033 = vmatmul.mubr.bf16.gmra.mxu0 %v1933
        %v2034 = vpop.f32.mrf.mxu0
        %v2035 = vadd.f32 %v1906, %v2034
        %v2036 = vpop.f32.mrf.mxu0
        %v2037 = vpop.f32.mrf.mxu0
        %v2038 = vadd.f32 %v1906, %v2037
        %v2039 = vpop.f32.mrf.mxu0
        %2040 = vmatprep.mubr.bf16.mxu0 0
        %2041 = vmatmul.mubr.bf16.gmra.mxu0 %v1936
        %v2042 = vpop.f32.mrf.mxu0
        %v2043 = vadd.f32 %v1906, %v2042
        %v2044 = vpop.f32.mrf.mxu0
        %v2045 = vpop.f32.mrf.mxu0
        %v2046 = vadd.f32 %v1906, %v2045
        %v2047 = vpop.f32.mrf.mxu0
        %2048 = vmatprep.mubr.bf16.mxu0 0
        %2049 = vmatmul.mubr.bf16.gmra.mxu0 %v1939
        %v2050 = vpop.f32.mrf.mxu0
        %v2051 = vadd.f32 %v1906, %v2050
        %v2052 = vpop.f32.mrf.mxu0
        %v2053 = vpop.f32.mrf.mxu0
        %v2054 = vadd.f32 %v1906, %v2053
        %v2055 = vpop.f32.mrf.mxu0
        %2056 = vmatprep.mubr.bf16.mxu0 0
        %2057 = vmatmul.mubr.bf16.gmra.mxu0 %v1942
        %v2058 = vpop.f32.mrf.mxu0
        %v2059 = vadd.f32 %v1906, %v2058
        %v2060 = vpop.f32.mrf.mxu0
        %v2061 = vpop.f32.mrf.mxu0
        %v2062 = vadd.f32 %v1906, %v2061
        %v2063 = vpop.f32.mrf.mxu0
        %2064 = vmatprep.mubr.bf16.mxu0 0
        %2065 = vmatmul.mubr.bf16.gmra.mxu0 %v1945
        %v2066 = vpop.f32.mrf.mxu0
        %v2067 = vadd.f32 %v1906, %v2066
        %v2068 = vpop.f32.mrf.mxu0
        %v2069 = vpop.f32.mrf.mxu0
        %v2070 = vadd.f32 %v1906, %v2069
        %v2071 = vpop.f32.mrf.mxu0
        %2072 = vmatprep.mubr.bf16.mxu0 0
        %2073 = vmatmul.mubr.bf16.gmra.mxu0 %v1948
        %v2074 = vpop.f32.mrf.mxu0
        %v2075 = vadd.f32 %v1906, %v2074
        %v2076 = vpop.f32.mrf.mxu0
        %v2077 = vpop.f32.mrf.mxu0
        %v2078 = vadd.f32 %v1906, %v2077
        %v2079 = vpop.f32.mrf.mxu0
        %2080 = vmatprep.mubr.bf16.mxu0 0
        %2081 = vmatmul.mubr.bf16.gmra.mxu0 %v1951
        %v2082 = vpop.f32.mrf.mxu0
        %v2083 = vadd.f32 %v1906, %v2082
        %v2084 = vpop.f32.mrf.mxu0
        %v2085 = vpop.f32.mrf.mxu0
        %v2086 = vadd.f32 %v1906, %v2085
        %v2087 = vpop.f32.mrf.mxu0
        %2088 = vmatprep.mubr.bf16.mxu0 0
        %2089 = vmatmul.mubr.bf16.gmra.mxu0 %v1954
        %v2090 = vpop.f32.mrf.mxu0
        %v2091 = vadd.f32 %v1906, %v2090
        %v2092 = vpop.f32.mrf.mxu0
        %v2093 = vpop.f32.mrf.mxu0
        %v2094 = vadd.f32 %v1906, %v2093
        %v2095 = vpop.f32.mrf.mxu0
        %2096 = vmatprep.mubr.bf16.mxu0 0
        %2097 = vmatmul.mubr.bf16.gmra.mxu0 %v1957
        %v2098 = vpop.f32.mrf.mxu0
        %v2099 = vadd.f32 %v1906, %v2098
        %v2100 = vpop.f32.mrf.mxu0
        %v2101 = vpop.f32.mrf.mxu0
        %v2102 = vadd.f32 %v1906, %v2101
        %v2103 = vpop.f32.mrf.mxu0
        %2104 = vmatprep.mubr.bf16.mxu0 0
        %2105 = vmatmul.mubr.bf16.gmra.mxu0 %v1960
        %v2106 = vpop.f32.mrf.mxu0
        %v2107 = vadd.f32 %v1906, %v2106
        %v2108 = vpop.f32.mrf.mxu0
        %v2109 = vpop.f32.mrf.mxu0
        %v2110 = vadd.f32 %v1906, %v2109
        %v2111 = vpop.f32.mrf.mxu0
        %2112 = vmatprep.mubr.bf16.mxu0 0
        %2113 = vmatmul.mubr.bf16.gmra.mxu0 %v1963
        %v2114 = vpop.f32.mrf.mxu0
        %v2115 = vadd.f32 %v1906, %v2114
        %v2116 = vpop.f32.mrf.mxu0
        %v2117 = vpop.f32.mrf.mxu0
        %v2118 = vadd.f32 %v1906, %v2117
        %v2119 = vpop.f32.mrf.mxu0
        %2120 = vmatprep.mubr.bf16.mxu0 0
        %2121 = vmatmul.mubr.bf16.gmra.mxu0 %v1966
        %v2122 = vpop.f32.mrf.mxu0
        %v2123 = vadd.f32 %v1906, %v2122
        %v2124 = vpop.f32.mrf.mxu0
        %v2125 = vpop.f32.mrf.mxu0
        %v2126 = vadd.f32 %v1906, %v2125
        %v2127 = vpop.f32.mrf.mxu0
        %2128 = vdwg.mxu0
        %2129 = vxpose.xlu0.b32.start [1/16] %v2003, 128
        %2130 = vxpose.xlu0.b32.cont [2/16] %v2006, 128
        %2131 = vxpose.xlu0.b32.cont [3/16] %v2011, 128
        %2132 = vxpose.xlu0.b32.cont [4/16] %v2014, 128
        %2133 = vxpose.xlu0.b32.cont [5/16] 0.0, 128
        %2134 = vxpose.xlu0.b32.cont [6/16] 0.0, 128
        %2135 = vxpose.xlu0.b32.cont [7/16] 0.0, 128
        %2136 = vxpose.xlu0.b32.cont [8/16] 0.0, 128
        %2137 = vxpose.xlu0.b32.cont [9/16] 0.0, 128
        %2138 = vxpose.xlu0.b32.cont [10/16] 0.0, 128
        %2139 = vxpose.xlu0.b32.cont [11/16] 0.0, 128
        %2140 = vxpose.xlu0.b32.cont [12/16] 0.0, 128
        %2141 = vxpose.xlu0.b32.cont [13/16] 0.0, 128
        %2142 = vxpose.xlu0.b32.cont [14/16] 0.0, 128
        %2143 = vxpose.xlu0.b32.cont [15/16] 0.0, 128
        %2144 = vxpose.xlu0.b32.end [16/16] 0.0, 128
        %v2145 = vpop.trf.xlu0
        %v2146 = vpop.trf.xlu0
        %v2147 = vpop.trf.xlu0
        %v2148 = vpop.trf.xlu0
        %v2149 = vpop.trf.xlu0
        %v2150 = vpop.trf.xlu0
        %v2151 = vpop.trf.xlu0
        %v2152 = vpop.trf.xlu0
        %v2153 = vpop.trf.xlu0
        %v2154 = vpop.trf.xlu0
        %v2155 = vpop.trf.xlu0
        %v2156 = vpop.trf.xlu0
        %v2157 = vpop.trf.xlu0
        %v2158 = vpop.trf.xlu0
        %v2159 = vpop.trf.xlu0
        %v2160 = vpop.trf.xlu0
        %2161 = vxpose.xlu0.b32.start [1/16] %v2019, 128
        %2162 = vxpose.xlu0.b32.cont [2/16] %v2022, 128
        %2163 = vxpose.xlu0.b32.cont [3/16] %v2027, 128
        %2164 = vxpose.xlu0.b32.cont [4/16] %v2030, 128
        %2165 = vxpose.xlu0.b32.cont [5/16] 0.0, 128
        %2166 = vxpose.xlu0.b32.cont [6/16] 0.0, 128
        %2167 = vxpose.xlu0.b32.cont [7/16] 0.0, 128
        %2168 = vxpose.xlu0.b32.cont [8/16] 0.0, 128
        %2169 = vxpose.xlu0.b32.cont [9/16] 0.0, 128
        %2170 = vxpose.xlu0.b32.cont [10/16] 0.0, 128
        %2171 = vxpose.xlu0.b32.cont [11/16] 0.0, 128
        %2172 = vxpose.xlu0.b32.cont [12/16] 0.0, 128
        %2173 = vxpose.xlu0.b32.cont [13/16] 0.0, 128
        %2174 = vxpose.xlu0.b32.cont [14/16] 0.0, 128
        %2175 = vxpose.xlu0.b32.cont [15/16] 0.0, 128
        %2176 = vxpose.xlu0.b32.end [16/16] 0.0, 128
        %v2177 = vpop.trf.xlu0
        %v2178 = vpop.trf.xlu0
        %v2179 = vpop.trf.xlu0
        %v2180 = vpop.trf.xlu0
        %v2181 = vpop.trf.xlu0
        %v2182 = vpop.trf.xlu0
        %v2183 = vpop.trf.xlu0
        %v2184 = vpop.trf.xlu0
        %v2185 = vpop.trf.xlu0
        %v2186 = vpop.trf.xlu0
        %v2187 = vpop.trf.xlu0
        %v2188 = vpop.trf.xlu0
        %v2189 = vpop.trf.xlu0
        %v2190 = vpop.trf.xlu0
        %v2191 = vpop.trf.xlu0
        %v2192 = vpop.trf.xlu0
        %2193 = vxpose.xlu0.b32.start [1/16] %v2035, 128
        %2194 = vxpose.xlu0.b32.cont [2/16] %v2038, 128
        %2195 = vxpose.xlu0.b32.cont [3/16] %v2043, 128
        %2196 = vxpose.xlu0.b32.cont [4/16] %v2046, 128
        %2197 = vxpose.xlu0.b32.cont [5/16] 0.0, 128
        %2198 = vxpose.xlu0.b32.cont [6/16] 0.0, 128
        %2199 = vxpose.xlu0.b32.cont [7/16] 0.0, 128
        %2200 = vxpose.xlu0.b32.cont [8/16] 0.0, 128
        %2201 = vxpose.xlu0.b32.cont [9/16] 0.0, 128
        %2202 = vxpose.xlu0.b32.cont [10/16] 0.0, 128
        %2203 = vxpose.xlu0.b32.cont [11/16] 0.0, 128
        %2204 = vxpose.xlu0.b32.cont [12/16] 0.0, 128
        %2205 = vxpose.xlu0.b32.cont [13/16] 0.0, 128
        %2206 = vxpose.xlu0.b32.cont [14/16] 0.0, 128
        %2207 = vxpose.xlu0.b32.cont [15/16] 0.0, 128
        %2208 = vxpose.xlu0.b32.end [16/16] 0.0, 128
        %v2209 = vpop.trf.xlu0
        %v2210 = vpop.trf.xlu0
        %v2211 = vpop.trf.xlu0
        %v2212 = vpop.trf.xlu0
        %v2213 = vpop.trf.xlu0
        %v2214 = vpop.trf.xlu0
        %v2215 = vpop.trf.xlu0
        %v2216 = vpop.trf.xlu0
        %v2217 = vpop.trf.xlu0
        %v2218 = vpop.trf.xlu0
        %v2219 = vpop.trf.xlu0
        %v2220 = vpop.trf.xlu0
        %v2221 = vpop.trf.xlu0
        %v2222 = vpop.trf.xlu0
        %v2223 = vpop.trf.xlu0
        %v2224 = vpop.trf.xlu0
        %2225 = vxpose.xlu0.b32.start [1/16] %v2051, 128
        %2226 = vxpose.xlu0.b32.cont [2/16] %v2054, 128
        %2227 = vxpose.xlu0.b32.cont [3/16] %v2059, 128
        %2228 = vxpose.xlu0.b32.cont [4/16] %v2062, 128
        %2229 = vxpose.xlu0.b32.cont [5/16] 0.0, 128
        %2230 = vxpose.xlu0.b32.cont [6/16] 0.0, 128
        %2231 = vxpose.xlu0.b32.cont [7/16] 0.0, 128
        %2232 = vxpose.xlu0.b32.cont [8/16] 0.0, 128
        %2233 = vxpose.xlu0.b32.cont [9/16] 0.0, 128
        %2234 = vxpose.xlu0.b32.cont [10/16] 0.0, 128
        %2235 = vxpose.xlu0.b32.cont [11/16] 0.0, 128
        %2236 = vxpose.xlu0.b32.cont [12/16] 0.0, 128
        %2237 = vxpose.xlu0.b32.cont [13/16] 0.0, 128
        %2238 = vxpose.xlu0.b32.cont [14/16] 0.0, 128
        %2239 = vxpose.xlu0.b32.cont [15/16] 0.0, 128
        %2240 = vxpose.xlu0.b32.end [16/16] 0.0, 128
        %v2241 = vpop.trf.xlu0
        %v2242 = vpop.trf.xlu0
        %v2243 = vpop.trf.xlu0
        %v2244 = vpop.trf.xlu0
        %v2245 = vpop.trf.xlu0
        %v2246 = vpop.trf.xlu0
        %v2247 = vpop.trf.xlu0
        %v2248 = vpop.trf.xlu0
        %v2249 = vpop.trf.xlu0
        %v2250 = vpop.trf.xlu0
        %v2251 = vpop.trf.xlu0
        %v2252 = vpop.trf.xlu0
        %v2253 = vpop.trf.xlu0
        %v2254 = vpop.trf.xlu0
        %v2255 = vpop.trf.xlu0
        %v2256 = vpop.trf.xlu0
        %2257 = vxpose.xlu0.b32.start [1/16] %v2067, 128
        %2258 = vxpose.xlu0.b32.cont [2/16] %v2070, 128
        %2259 = vxpose.xlu0.b32.cont [3/16] %v2075, 128
        %2260 = vxpose.xlu0.b32.cont [4/16] %v2078, 128
        %2261 = vxpose.xlu0.b32.cont [5/16] 0.0, 128
        %2262 = vxpose.xlu0.b32.cont [6/16] 0.0, 128
        %2263 = vxpose.xlu0.b32.cont [7/16] 0.0, 128
        %2264 = vxpose.xlu0.b32.cont [8/16] 0.0, 128
        %2265 = vxpose.xlu0.b32.cont [9/16] 0.0, 128
        %2266 = vxpose.xlu0.b32.cont [10/16] 0.0, 128
        %2267 = vxpose.xlu0.b32.cont [11/16] 0.0, 128
        %2268 = vxpose.xlu0.b32.cont [12/16] 0.0, 128
        %2269 = vxpose.xlu0.b32.cont [13/16] 0.0, 128
        %2270 = vxpose.xlu0.b32.cont [14/16] 0.0, 128
        %2271 = vxpose.xlu0.b32.cont [15/16] 0.0, 128
        %2272 = vxpose.xlu0.b32.end [16/16] 0.0, 128
        %v2273 = vpop.trf.xlu0
        %v2274 = vpop.trf.xlu0
        %v2275 = vpop.trf.xlu0
        %v2276 = vpop.trf.xlu0
        %v2277 = vpop.trf.xlu0
        %v2278 = vpop.trf.xlu0
        %v2279 = vpop.trf.xlu0
        %v2280 = vpop.trf.xlu0
        %v2281 = vpop.trf.xlu0
        %v2282 = vpop.trf.xlu0
        %v2283 = vpop.trf.xlu0
        %v2284 = vpop.trf.xlu0
        %v2285 = vpop.trf.xlu0
        %v2286 = vpop.trf.xlu0
        %v2287 = vpop.trf.xlu0
        %v2288 = vpop.trf.xlu0
        %2289 = vxpose.xlu0.b32.start [1/16] %v2083, 128
        %2290 = vxpose.xlu0.b32.cont [2/16] %v2086, 128
        %2291 = vxpose.xlu0.b32.cont [3/16] %v2091, 128
        %2292 = vxpose.xlu0.b32.cont [4/16] %v2094, 128
        %2293 = vxpose.xlu0.b32.cont [5/16] 0.0, 128
        %2294 = vxpose.xlu0.b32.cont [6/16] 0.0, 128
        %2295 = vxpose.xlu0.b32.cont [7/16] 0.0, 128
        %2296 = vxpose.xlu0.b32.cont [8/16] 0.0, 128
        %2297 = vxpose.xlu0.b32.cont [9/16] 0.0, 128
        %2298 = vxpose.xlu0.b32.cont [10/16] 0.0, 128
        %2299 = vxpose.xlu0.b32.cont [11/16] 0.0, 128
        %2300 = vxpose.xlu0.b32.cont [12/16] 0.0, 128
        %2301 = vxpose.xlu0.b32.cont [13/16] 0.0, 128
        %2302 = vxpose.xlu0.b32.cont [14/16] 0.0, 128
        %2303 = vxpose.xlu0.b32.cont [15/16] 0.0, 128
        %2304 = vxpose.xlu0.b32.end [16/16] 0.0, 128
        %v2305 = vpop.trf.xlu0
        %v2306 = vpop.trf.xlu0
        %v2307 = vpop.trf.xlu0
        %v2308 = vpop.trf.xlu0
        %v2309 = vpop.trf.xlu0
        %v2310 = vpop.trf.xlu0
        %v2311 = vpop.trf.xlu0
        %v2312 = vpop.trf.xlu0
        %v2313 = vpop.trf.xlu0
        %v2314 = vpop.trf.xlu0
        %v2315 = vpop.trf.xlu0
        %v2316 = vpop.trf.xlu0
        %v2317 = vpop.trf.xlu0
        %v2318 = vpop.trf.xlu0
        %v2319 = vpop.trf.xlu0
        %v2320 = vpop.trf.xlu0
        %2321 = vxpose.xlu0.b32.start [1/16] %v2099, 128
        %2322 = vxpose.xlu0.b32.cont [2/16] %v2102, 128
        %2323 = vxpose.xlu0.b32.cont [3/16] %v2107, 128
        %2324 = vxpose.xlu0.b32.cont [4/16] %v2110, 128
        %2325 = vxpose.xlu0.b32.cont [5/16] 0.0, 128
        %2326 = vxpose.xlu0.b32.cont [6/16] 0.0, 128
        %2327 = vxpose.xlu0.b32.cont [7/16] 0.0, 128
        %2328 = vxpose.xlu0.b32.cont [8/16] 0.0, 128
        %2329 = vxpose.xlu0.b32.cont [9/16] 0.0, 128
        %2330 = vxpose.xlu0.b32.cont [10/16] 0.0, 128
        %2331 = vxpose.xlu0.b32.cont [11/16] 0.0, 128
        %2332 = vxpose.xlu0.b32.cont [12/16] 0.0, 128
        %2333 = vxpose.xlu0.b32.cont [13/16] 0.0, 128
        %2334 = vxpose.xlu0.b32.cont [14/16] 0.0, 128
        %2335 = vxpose.xlu0.b32.cont [15/16] 0.0, 128
        %2336 = vxpose.xlu0.b32.end [16/16] 0.0, 128
        %v2337 = vpop.trf.xlu0
        %v2338 = vpop.trf.xlu0
        %v2339 = vpop.trf.xlu0
        %v2340 = vpop.trf.xlu0
        %v2341 = vpop.trf.xlu0
        %v2342 = vpop.trf.xlu0
        %v2343 = vpop.trf.xlu0
        %v2344 = vpop.trf.xlu0
        %v2345 = vpop.trf.xlu0
        %v2346 = vpop.trf.xlu0
        %v2347 = vpop.trf.xlu0
        %v2348 = vpop.trf.xlu0
        %v2349 = vpop.trf.xlu0
        %v2350 = vpop.trf.xlu0
        %v2351 = vpop.trf.xlu0
        %v2352 = vpop.trf.xlu0
        %2353 = vxpose.xlu0.b32.start [1/16] %v2115, 128
        %2354 = vxpose.xlu0.b32.cont [2/16] %v2118, 128
        %2355 = vxpose.xlu0.b32.cont [3/16] %v2123, 128
        %2356 = vxpose.xlu0.b32.cont [4/16] %v2126, 128
        %2357 = vxpose.xlu0.b32.cont [5/16] 0.0, 128
        %2358 = vxpose.xlu0.b32.cont [6/16] 0.0, 128
        %2359 = vxpose.xlu0.b32.cont [7/16] 0.0, 128
        %2360 = vxpose.xlu0.b32.cont [8/16] 0.0, 128
        %2361 = vxpose.xlu0.b32.cont [9/16] 0.0, 128
        %2362 = vxpose.xlu0.b32.cont [10/16] 0.0, 128
        %2363 = vxpose.xlu0.b32.cont [11/16] 0.0, 128
        %2364 = vxpose.xlu0.b32.cont [12/16] 0.0, 128
        %2365 = vxpose.xlu0.b32.cont [13/16] 0.0, 128
        %2366 = vxpose.xlu0.b32.cont [14/16] 0.0, 128
        %2367 = vxpose.xlu0.b32.cont [15/16] 0.0, 128
        %2368 = vxpose.xlu0.b32.end [16/16] 0.0, 128
        %v2369 = vpop.trf.xlu0
        %v2370 = vpop.trf.xlu0
        %v2371 = vpop.trf.xlu0
        %v2372 = vpop.trf.xlu0
        %v2373 = vpop.trf.xlu0
        %v2374 = vpop.trf.xlu0
        %v2375 = vpop.trf.xlu0
        %v2376 = vpop.trf.xlu0
        %v2377 = vpop.trf.xlu0
        %v2378 = vpop.trf.xlu0
        %v2379 = vpop.trf.xlu0
        %v2380 = vpop.trf.xlu0
        %v2381 = vpop.trf.xlu0
        %v2382 = vpop.trf.xlu0
        %v2383 = vpop.trf.xlu0
        %v2384 = vpop.trf.xlu0
        %v2385 = vadd.f32 %v952, %v2145
        %v2386 = vadd.f32 %v953, %v2146
        %v2387 = vadd.f32 %v954, %v2177
        %v2388 = vadd.f32 %v955, %v2178
        %v2389 = vadd.f32 %v956, %v2209
        %v2390 = vadd.f32 %v957, %v2210
        %v2391 = vadd.f32 %v958, %v2241
        %v2392 = vadd.f32 %v959, %v2242
        %v2393 = vadd.f32 %v960, %v2273
        %v2394 = vadd.f32 %v961, %v2274
        %v2395 = vadd.f32 %v962, %v2305
        %v2396 = vadd.f32 %v963, %v2306
        %v2397 = vadd.f32 %v964, %v2337
        %v2398 = vadd.f32 %v965, %v2338
        %v2399 = vadd.f32 %v966, %v2369
        %v2400 = vadd.f32 %v967, %v2370
        %v2401 = vsel %vm970, %v2385, 0.0
        %2402 = vadd.xlane.f32.xlu0 %v2401
        %v2403 = vpop.xlane.xlu0 %2402
        %v2404 = vsel %vm970, %v2386, 0.0
        %2405 = vadd.xlane.f32.xlu0 %v2404
        %v2406 = vpop.xlane.xlu0 %2405
        %v2407 = vsel %vm970, %v2387, 0.0
        %2408 = vadd.xlane.f32.xlu0 %v2407
        %v2409 = vpop.xlane.xlu0 %2408
        %v2410 = vsel %vm970, %v2388, 0.0
        %2411 = vadd.xlane.f32.xlu0 %v2410
        %v2412 = vpop.xlane.xlu0 %2411
        %v2413 = vsel %vm970, %v2389, 0.0
        %2414 = vadd.xlane.f32.xlu0 %v2413
        %v2415 = vpop.xlane.xlu0 %2414
        %v2416 = vsel %vm970, %v2390, 0.0
        %2417 = vadd.xlane.f32.xlu0 %v2416
        %v2418 = vpop.xlane.xlu0 %2417
        %v2419 = vsel %vm970, %v2391, 0.0
        %2420 = vadd.xlane.f32.xlu0 %v2419
        %v2421 = vpop.xlane.xlu0 %2420
        %v2422 = vsel %vm970, %v2392, 0.0
        %2423 = vadd.xlane.f32.xlu0 %v2422
        %v2424 = vpop.xlane.xlu0 %2423
        %v2425 = vsel %vm970, %v2393, 0.0
        %2426 = vadd.xlane.f32.xlu0 %v2425
        %v2427 = vpop.xlane.xlu0 %2426
        %v2428 = vsel %vm970, %v2394, 0.0
        %2429 = vadd.xlane.f32.xlu0 %v2428
        %v2430 = vpop.xlane.xlu0 %2429
        %v2431 = vsel %vm970, %v2395, 0.0
        %2432 = vadd.xlane.f32.xlu0 %v2431
        %v2433 = vpop.xlane.xlu0 %2432
        %v2434 = vsel %vm970, %v2396, 0.0
        %2435 = vadd.xlane.f32.xlu0 %v2434
        %v2436 = vpop.xlane.xlu0 %2435
        %v2437 = vsel %vm970, %v2397, 0.0
        %2438 = vadd.xlane.f32.xlu0 %v2437
        %v2439 = vpop.xlane.xlu0 %2438
        %v2440 = vsel %vm970, %v2398, 0.0
        %2441 = vadd.xlane.f32.xlu0 %v2440
        %v2442 = vpop.xlane.xlu0 %2441
        %v2443 = vsel %vm970, %v2399, 0.0
        %2444 = vadd.xlane.f32.xlu0 %v2443
        %v2445 = vpop.xlane.xlu0 %2444
        %v2446 = vsel %vm970, %v2400, 0.0
        %2447 = vadd.xlane.f32.xlu0 %v2446
        %v2448 = vpop.xlane.xlu0 %2447
        %v2449 = vmul.f32 %v2403, %v1019
        %v2450 = vmul.f32 %v2406, %v1019
        %v2451 = vmul.f32 %v2409, %v1019
        %v2452 = vmul.f32 %v2412, %v1019
        %v2453 = vmul.f32 %v2415, %v1019
        %v2454 = vmul.f32 %v2418, %v1019
        %v2455 = vmul.f32 %v2421, %v1019
        %v2456 = vmul.f32 %v2424, %v1019
        %v2457 = vmul.f32 %v2427, %v1019
        %v2458 = vmul.f32 %v2430, %v1019
        %v2459 = vmul.f32 %v2433, %v1019
        %v2460 = vmul.f32 %v2436, %v1019
        %v2461 = vmul.f32 %v2439, %v1019
        %v2462 = vmul.f32 %v2442, %v1019
        %v2463 = vmul.f32 %v2445, %v1019
        %v2464 = vmul.f32 %v2448, %v1019
        %v2465 = vsub.f32 %v2385, %v2449
        %v2466 = vsub.f32 %v2386, %v2450
        %v2467 = vsub.f32 %v2387, %v2451
        %v2468 = vsub.f32 %v2388, %v2452
        %v2469 = vsub.f32 %v2389, %v2453
        %v2470 = vsub.f32 %v2390, %v2454
        %v2471 = vsub.f32 %v2391, %v2455
        %v2472 = vsub.f32 %v2392, %v2456
        %v2473 = vsub.f32 %v2393, %v2457
        %v2474 = vsub.f32 %v2394, %v2458
        %v2475 = vsub.f32 %v2395, %v2459
        %v2476 = vsub.f32 %v2396, %v2460
        %v2477 = vsub.f32 %v2397, %v2461
        %v2478 = vsub.f32 %v2398, %v2462
        %v2479 = vsub.f32 %v2399, %v2463
        %v2480 = vsub.f32 %v2400, %v2464
        %v2481 = vmul.f32 %v2465, %v2465
        %v2482 = vmul.f32 %v2466, %v2466
        %v2483 = vmul.f32 %v2467, %v2467
        %v2484 = vmul.f32 %v2468, %v2468
        %v2485 = vmul.f32 %v2469, %v2469
        %v2486 = vmul.f32 %v2470, %v2470
        %v2487 = vmul.f32 %v2471, %v2471
        %v2488 = vmul.f32 %v2472, %v2472
        %v2489 = vmul.f32 %v2473, %v2473
        %v2490 = vmul.f32 %v2474, %v2474
        %v2491 = vmul.f32 %v2475, %v2475
        %v2492 = vmul.f32 %v2476, %v2476
        %v2493 = vmul.f32 %v2477, %v2477
        %v2494 = vmul.f32 %v2478, %v2478
        %v2495 = vmul.f32 %v2479, %v2479
        %v2496 = vmul.f32 %v2480, %v2480
        %v2497 = vsel %vm970, %v2481, 0.0
        %2498 = vadd.xlane.f32.xlu0 %v2497
        %v2499 = vpop.xlane.xlu0 %2498
        %v2500 = vsel %vm970, %v2482, 0.0
        %2501 = vadd.xlane.f32.xlu0 %v2500
        %v2502 = vpop.xlane.xlu0 %2501
        %v2503 = vsel %vm970, %v2483, 0.0
        %2504 = vadd.xlane.f32.xlu0 %v2503
        %v2505 = vpop.xlane.xlu0 %2504
        %v2506 = vsel %vm970, %v2484, 0.0
        %2507 = vadd.xlane.f32.xlu0 %v2506
        %v2508 = vpop.xlane.xlu0 %2507
        %v2509 = vsel %vm970, %v2485, 0.0
        %2510 = vadd.xlane.f32.xlu0 %v2509
        %v2511 = vpop.xlane.xlu0 %2510
        %v2512 = vsel %vm970, %v2486, 0.0
        %2513 = vadd.xlane.f32.xlu0 %v2512
        %v2514 = vpop.xlane.xlu0 %2513
        %v2515 = vsel %vm970, %v2487, 0.0
        %2516 = vadd.xlane.f32.xlu0 %v2515
        %v2517 = vpop.xlane.xlu0 %2516
        %v2518 = vsel %vm970, %v2488, 0.0
        %2519 = vadd.xlane.f32.xlu0 %v2518
        %v2520 = vpop.xlane.xlu0 %2519
        %v2521 = vsel %vm970, %v2489, 0.0
        %2522 = vadd.xlane.f32.xlu0 %v2521
        %v2523 = vpop.xlane.xlu0 %2522
        %v2524 = vsel %vm970, %v2490, 0.0
        %2525 = vadd.xlane.f32.xlu0 %v2524
        %v2526 = vpop.xlane.xlu0 %2525
        %v2527 = vsel %vm970, %v2491, 0.0
        %2528 = vadd.xlane.f32.xlu0 %v2527
        %v2529 = vpop.xlane.xlu0 %2528
        %v2530 = vsel %vm970, %v2492, 0.0
        %2531 = vadd.xlane.f32.xlu0 %v2530
        %v2532 = vpop.xlane.xlu0 %2531
        %v2533 = vsel %vm970, %v2493, 0.0
        %2534 = vadd.xlane.f32.xlu0 %v2533
        %v2535 = vpop.xlane.xlu0 %2534
        %v2536 = vsel %vm970, %v2494, 0.0
        %2537 = vadd.xlane.f32.xlu0 %v2536
        %v2538 = vpop.xlane.xlu0 %2537
        %v2539 = vsel %vm970, %v2495, 0.0
        %2540 = vadd.xlane.f32.xlu0 %v2539
        %v2541 = vpop.xlane.xlu0 %2540
        %v2542 = vsel %vm970, %v2496, 0.0
        %2543 = vadd.xlane.f32.xlu0 %v2542
        %v2544 = vpop.xlane.xlu0 %2543
        %v2545 = vmul.f32 %v2499, %v1019
        %v2546 = vmul.f32 %v2502, %v1019
        %v2547 = vmul.f32 %v2505, %v1019
        %v2548 = vmul.f32 %v2508, %v1019
        %v2549 = vmul.f32 %v2511, %v1019
        %v2550 = vmul.f32 %v2514, %v1019
        %v2551 = vmul.f32 %v2517, %v1019
        %v2552 = vmul.f32 %v2520, %v1019
        %v2553 = vmul.f32 %v2523, %v1019
        %v2554 = vmul.f32 %v2526, %v1019
        %v2555 = vmul.f32 %v2529, %v1019
        %v2556 = vmul.f32 %v2532, %v1019
        %v2557 = vmul.f32 %v2535, %v1019
        %v2558 = vmul.f32 %v2538, %v1019
        %v2559 = vmul.f32 %v2541, %v1019
        %v2560 = vmul.f32 %v2544, %v1019
        %v2561 = vadd.f32 %v2545, 1e-05
        %v2562 = vadd.f32 %v2546, 1e-05
        %v2563 = vadd.f32 %v2547, 1e-05
        %v2564 = vadd.f32 %v2548, 1e-05
        %v2565 = vadd.f32 %v2549, 1e-05
        %v2566 = vadd.f32 %v2550, 1e-05
        %v2567 = vadd.f32 %v2551, 1e-05
        %v2568 = vadd.f32 %v2552, 1e-05
        %v2569 = vadd.f32 %v2553, 1e-05
        %v2570 = vadd.f32 %v2554, 1e-05
        %v2571 = vadd.f32 %v2555, 1e-05
        %v2572 = vadd.f32 %v2556, 1e-05
        %v2573 = vadd.f32 %v2557, 1e-05
        %v2574 = vadd.f32 %v2558, 1e-05
        %v2575 = vadd.f32 %v2559, 1e-05
        %v2576 = vadd.f32 %v2560, 1e-05
        %v2577 = vrsqrt.pop %v2561
        %v2578 = vrsqrt.pop %v2562
        %v2579 = vrsqrt.pop %v2563
        %v2580 = vrsqrt.pop %v2564
        %v2581 = vrsqrt.pop %v2565
        %v2582 = vrsqrt.pop %v2566
        %v2583 = vrsqrt.pop %v2567
        %v2584 = vrsqrt.pop %v2568
        %v2585 = vrsqrt.pop %v2569
        %v2586 = vrsqrt.pop %v2570
        %v2587 = vrsqrt.pop %v2571
        %v2588 = vrsqrt.pop %v2572
        %v2589 = vrsqrt.pop %v2573
        %v2590 = vrsqrt.pop %v2574
        %v2591 = vrsqrt.pop %v2575
        %v2592 = vrsqrt.pop %v2576
        %v2593 = vmul.f32 %v2465, %v2577
        %v2594 = vmul.f32 %v2466, %v2578
        %v2595 = vmul.f32 %v2467, %v2579
        %v2596 = vmul.f32 %v2468, %v2580
        %v2597 = vmul.f32 %v2469, %v2581
        %v2598 = vmul.f32 %v2470, %v2582
        %v2599 = vmul.f32 %v2471, %v2583
        %v2600 = vmul.f32 %v2472, %v2584
        %v2601 = vmul.f32 %v2473, %v2585
        %v2602 = vmul.f32 %v2474, %v2586
        %v2603 = vmul.f32 %v2475, %v2587
        %v2604 = vmul.f32 %v2476, %v2588
        %v2605 = vmul.f32 %v2477, %v2589
        %v2606 = vmul.f32 %v2478, %v2590
        %v2607 = vmul.f32 %v2479, %v2591
        %v2608 = vmul.f32 %v2480, %v2592
        %v2609 = vmul.f32 %v2593, %v1184
        %v2610 = vmul.f32 %v2594, %v1184
        %v2611 = vmul.f32 %v2595, %v1184
        %v2612 = vmul.f32 %v2596, %v1184
        %v2613 = vmul.f32 %v2597, %v1184
        %v2614 = vmul.f32 %v2598, %v1184
        %v2615 = vmul.f32 %v2599, %v1184
        %v2616 = vmul.f32 %v2600, %v1184
        %v2617 = vmul.f32 %v2601, %v1184
        %v2618 = vmul.f32 %v2602, %v1184
        %v2619 = vmul.f32 %v2603, %v1184
        %v2620 = vmul.f32 %v2604, %v1184
        %v2621 = vmul.f32 %v2605, %v1184
        %v2622 = vmul.f32 %v2606, %v1184
        %v2623 = vmul.f32 %v2607, %v1184
        %v2624 = vmul.f32 %v2608, %v1184
        %v2625 = vadd.f32 %v2609, %v1206
        %v2626 = vadd.f32 %v2610, %v1206
        %v2627 = vadd.f32 %v2611, %v1206
        %v2628 = vadd.f32 %v2612, %v1206
        %v2629 = vadd.f32 %v2613, %v1206
        %v2630 = vadd.f32 %v2614, %v1206
        %v2631 = vadd.f32 %v2615, %v1206
        %v2632 = vadd.f32 %v2616, %v1206
        %v2633 = vadd.f32 %v2617, %v1206
        %v2634 = vadd.f32 %v2618, %v1206
        %v2635 = vadd.f32 %v2619, %v1206
        %v2636 = vadd.f32 %v2620, %v1206
        %v2637 = vadd.f32 %v2621, %v1206
        %v2638 = vadd.f32 %v2622, %v1206
        %v2639 = vadd.f32 %v2623, %v1206
        %v2640 = vadd.f32 %v2624, %v1206
        %v2641 = vpack.c.bf16 %v2626, %v2625
        %v2642 = vpack.c.bf16 %v2628, %v2627
        %v2643 = vpack.c.bf16 %v2630, %v2629
        %v2644 = vpack.c.bf16 %v2632, %v2631
        %v2645 = vpack.c.bf16 %v2634, %v2633
        %v2646 = vpack.c.bf16 %v2636, %v2635
        %v2647 = vpack.c.bf16 %v2638, %v2637
        %v2648 = vpack.c.bf16 %v2640, %v2639
        %v2649 = vld [vmem:[%s709] sm:$0xf]
        %v2650 = vld [vmem:[%s709 + $0x4] sm:$0xf]
        %v2651 = vld [vmem:[%s709 + $0x8] sm:$0xf]
        %v2652 = vld [vmem:[%s709 + $0xc] sm:$0xf]
        %v2653 = vld [vmem:[%s712] sm:$0x1]
        %v2655 = vlaneseq
        %v2656 = vshrl.u32 %v2655, 7
        %v2657 = vsub.s32 0, %v2656
        %v2658 = vrot.slane %v2653, %v2657
        %v2664 = vunpack.c.l.b16 %v2649
        %v2665 = vunpack.c.l.b16 %v2650
        %v2666 = vunpack.c.l.b16 %v2651
        %v2667 = vunpack.c.l.b16 %v2652
        %v2668 = vpack.c.b16 %v2665, %v2664
        %v2669 = vpack.c.b16 %v2667, %v2666
        %v2673 = vsel %vm970, %v2641, 0
        %v2676 = vsel %vm970, %v2642, 0
        %v2679 = vsel %vm970, %v2643, 0
        %v2682 = vsel %vm970, %v2644, 0
        %v2685 = vsel %vm970, %v2645, 0
        %v2688 = vsel %vm970, %v2646, 0
        %v2691 = vsel %vm970, %v2647, 0
        %v2694 = vsel %vm970, %v2648, 0
        %2696 = vmatprep.subr.bf16.mxu0 0
        %2697 = vmatpush1.bf16.msra.mxu0 0
        %2698 = vmatprep.subr.bf16.mxu0 0
        %2699 = vmatpush1.bf16.msra.mxu0 0
        %2700 = vmatprep.subr.bf16.mxu0 0
        %2701 = vmatpush1.bf16.msra.mxu0 0
        %2702 = vmatprep.subr.bf16.mxu0 0
        %2703 = vmatpush1.bf16.msra.mxu0 0
        %2704 = vmatprep.subr.bf16.mxu0 0
        %2705 = vmatpush1.bf16.msra.mxu0 0
        %2706 = vmatprep.subr.bf16.mxu0 0
        %2707 = vmatpush1.bf16.msra.mxu0 0
        %2708 = vmatprep.subr.bf16.mxu0 0
        %2709 = vmatpush1.bf16.msra.mxu0 %v2669
        %2710 = vmatprep.subr.bf16.mxu0 0
        %2711 = vmatpush1.bf16.msra.mxu0 %v2668
        %2712 = vmatprep.subr.bf16.mxu0 0
        %2713 = vmatpush2.bf16.msra.mxu0 0
        %2714 = vmatprep.subr.bf16.mxu0 0
        %2715 = vmatpush2.bf16.msra.mxu0 0
        %2716 = vmatprep.subr.bf16.mxu0 0
        %2717 = vmatpush2.bf16.msra.mxu0 0
        %2718 = vmatprep.subr.bf16.mxu0 0
        %2719 = vmatpush2.bf16.msra.mxu0 0
        %2720 = vmatprep.subr.bf16.mxu0 0
        %2721 = vmatpush2.bf16.msra.mxu0 0
        %2722 = vmatprep.subr.bf16.mxu0 0
        %2723 = vmatpush2.bf16.msra.mxu0 0
        %2724 = vmatprep.subr.bf16.mxu0 0
        %2725 = vmatpush2.bf16.msra.mxu0 0
        %2726 = vmatprep.subr.bf16.mxu0 0
        %2727 = vmatpush2.bf16.msra.mxu0 0
        %2728 = vmatprep.mubr.bf16.mxu0 0
        %2729 = vmatmul.mubr.bf16.gmra.mxu0 %v2673
        %v2730 = vpop.f32.mrf.mxu0
        %v2731 = vadd.f32 %v2658, %v2730
        %v2732 = vpop.f32.mrf.mxu0
        %v2733 = vpop.f32.mrf.mxu0
        %v2734 = vadd.f32 %v2658, %v2733
        %v2735 = vpop.f32.mrf.mxu0
        %2736 = vmatprep.mubr.bf16.mxu0 0
        %2737 = vmatmul.mubr.bf16.gmra.mxu0 %v2676
        %v2738 = vpop.f32.mrf.mxu0
        %v2739 = vadd.f32 %v2658, %v2738
        %v2740 = vpop.f32.mrf.mxu0
        %v2741 = vpop.f32.mrf.mxu0
        %v2742 = vadd.f32 %v2658, %v2741
        %v2743 = vpop.f32.mrf.mxu0
        %2744 = vmatprep.mubr.bf16.mxu0 0
        %2745 = vmatmul.mubr.bf16.gmra.mxu0 %v2679
        %v2746 = vpop.f32.mrf.mxu0
        %v2747 = vadd.f32 %v2658, %v2746
        %v2748 = vpop.f32.mrf.mxu0
        %v2749 = vpop.f32.mrf.mxu0
        %v2750 = vadd.f32 %v2658, %v2749
        %v2751 = vpop.f32.mrf.mxu0
        %2752 = vmatprep.mubr.bf16.mxu0 0
        %2753 = vmatmul.mubr.bf16.gmra.mxu0 %v2682
        %v2754 = vpop.f32.mrf.mxu0
        %v2755 = vadd.f32 %v2658, %v2754
        %v2756 = vpop.f32.mrf.mxu0
        %v2757 = vpop.f32.mrf.mxu0
        %v2758 = vadd.f32 %v2658, %v2757
        %v2759 = vpop.f32.mrf.mxu0
        %2760 = vmatprep.mubr.bf16.mxu0 0
        %2761 = vmatmul.mubr.bf16.gmra.mxu0 %v2685
        %v2762 = vpop.f32.mrf.mxu0
        %v2763 = vadd.f32 %v2658, %v2762
        %v2764 = vpop.f32.mrf.mxu0
        %v2765 = vpop.f32.mrf.mxu0
        %v2766 = vadd.f32 %v2658, %v2765
        %v2767 = vpop.f32.mrf.mxu0
        %2768 = vmatprep.mubr.bf16.mxu0 0
        %2769 = vmatmul.mubr.bf16.gmra.mxu0 %v2688
        %v2770 = vpop.f32.mrf.mxu0
        %v2771 = vadd.f32 %v2658, %v2770
        %v2772 = vpop.f32.mrf.mxu0
        %v2773 = vpop.f32.mrf.mxu0
        %v2774 = vadd.f32 %v2658, %v2773
        %v2775 = vpop.f32.mrf.mxu0
        %2776 = vmatprep.mubr.bf16.mxu0 0
        %2777 = vmatmul.mubr.bf16.gmra.mxu0 %v2691
        %v2778 = vpop.f32.mrf.mxu0
        %v2779 = vadd.f32 %v2658, %v2778
        %v2780 = vpop.f32.mrf.mxu0
        %v2781 = vpop.f32.mrf.mxu0
        %v2782 = vadd.f32 %v2658, %v2781
        %v2783 = vpop.f32.mrf.mxu0
        %2784 = vmatprep.mubr.bf16.mxu0 0
        %2785 = vmatmul.mubr.bf16.gmra.mxu0 %v2694
        %v2786 = vpop.f32.mrf.mxu0
        %v2787 = vadd.f32 %v2658, %v2786
        %v2788 = vpop.f32.mrf.mxu0
        %v2789 = vpop.f32.mrf.mxu0
        %v2790 = vadd.f32 %v2658, %v2789
        %v2791 = vpop.f32.mrf.mxu0
        %2792 = vdwg.mxu0
        %v2793 = vmul.f32 %v2731, 0.5
        %v2794 = vmul.f32 %v2734, 0.5
        %v2795 = vmul.f32 %v2739, 0.5
        %v2796 = vmul.f32 %v2742, 0.5
        %v2797 = vmul.f32 %v2747, 0.5
        %v2798 = vmul.f32 %v2750, 0.5
        %v2799 = vmul.f32 %v2755, 0.5
        %v2800 = vmul.f32 %v2758, 0.5
        %v2801 = vmul.f32 %v2763, 0.5
        %v2802 = vmul.f32 %v2766, 0.5
        %v2803 = vmul.f32 %v2771, 0.5
        %v2804 = vmul.f32 %v2774, 0.5
        %v2805 = vmul.f32 %v2779, 0.5
        %v2806 = vmul.f32 %v2782, 0.5
        %v2807 = vmul.f32 %v2787, 0.5
        %v2808 = vmul.f32 %v2790, 0.5
        %v2809 = vmul.f32 %v2731, 0.70710677
        %v2810 = vmul.f32 %v2734, 0.70710677
        %v2811 = vmul.f32 %v2739, 0.70710677
        %v2812 = vmul.f32 %v2742, 0.70710677
        %v2813 = vmul.f32 %v2747, 0.70710677
        %v2814 = vmul.f32 %v2750, 0.70710677
        %v2815 = vmul.f32 %v2755, 0.70710677
        %v2816 = vmul.f32 %v2758, 0.70710677
        %v2817 = vmul.f32 %v2763, 0.70710677
        %v2818 = vmul.f32 %v2766, 0.70710677
        %v2819 = vmul.f32 %v2771, 0.70710677
        %v2820 = vmul.f32 %v2774, 0.70710677
        %v2821 = vmul.f32 %v2779, 0.70710677
        %v2822 = vmul.f32 %v2782, 0.70710677
        %v2823 = vmul.f32 %v2787, 0.70710677
        %v2824 = vmul.f32 %v2790, 0.70710677
        %v2825 = verf.f32.pop %v2809
        %v2826 = verf.f32.pop %v2810
        %v2827 = verf.f32.pop %v2811
        %v2828 = verf.f32.pop %v2812
        %v2829 = verf.f32.pop %v2813
        %v2830 = verf.f32.pop %v2814
        %v2831 = verf.f32.pop %v2815
        %v2832 = verf.f32.pop %v2816
        %v2833 = verf.f32.pop %v2817
        %v2834 = verf.f32.pop %v2818
        %v2835 = verf.f32.pop %v2819
        %v2836 = verf.f32.pop %v2820
        %v2837 = verf.f32.pop %v2821
        %v2838 = verf.f32.pop %v2822
        %v2839 = verf.f32.pop %v2823
        %v2840 = verf.f32.pop %v2824
        %v2841 = vadd.f32 %v2825, 1.0
        %v2842 = vadd.f32 %v2826, 1.0
        %v2843 = vadd.f32 %v2827, 1.0
        %v2844 = vadd.f32 %v2828, 1.0
        %v2845 = vadd.f32 %v2829, 1.0
        %v2846 = vadd.f32 %v2830, 1.0
        %v2847 = vadd.f32 %v2831, 1.0
        %v2848 = vadd.f32 %v2832, 1.0
        %v2849 = vadd.f32 %v2833, 1.0
        %v2850 = vadd.f32 %v2834, 1.0
        %v2851 = vadd.f32 %v2835, 1.0
        %v2852 = vadd.f32 %v2836, 1.0
        %v2853 = vadd.f32 %v2837, 1.0
        %v2854 = vadd.f32 %v2838, 1.0
        %v2855 = vadd.f32 %v2839, 1.0
        %v2856 = vadd.f32 %v2840, 1.0
        %v2857 = vmul.f32 %v2793, %v2841
        %v2858 = vmul.f32 %v2794, %v2842
        %v2859 = vmul.f32 %v2795, %v2843
        %v2860 = vmul.f32 %v2796, %v2844
        %v2861 = vmul.f32 %v2797, %v2845
        %v2862 = vmul.f32 %v2798, %v2846
        %v2863 = vmul.f32 %v2799, %v2847
        %v2864 = vmul.f32 %v2800, %v2848
        %v2865 = vmul.f32 %v2801, %v2849
        %v2866 = vmul.f32 %v2802, %v2850
        %v2867 = vmul.f32 %v2803, %v2851
        %v2868 = vmul.f32 %v2804, %v2852
        %v2869 = vmul.f32 %v2805, %v2853
        %v2870 = vmul.f32 %v2806, %v2854
        %v2871 = vmul.f32 %v2807, %v2855
        %v2872 = vmul.f32 %v2808, %v2856
        %v2873 = vpack.c.bf16 %v2858, %v2857
        %v2874 = vpack.c.bf16 %v2860, %v2859
        %v2875 = vpack.c.bf16 %v2862, %v2861
        %v2876 = vpack.c.bf16 %v2864, %v2863
        %v2877 = vpack.c.bf16 %v2866, %v2865
        %v2878 = vpack.c.bf16 %v2868, %v2867
        %v2879 = vpack.c.bf16 %v2870, %v2869
        %v2880 = vpack.c.bf16 %v2872, %v2871
        %v2881 = vld [vmem:[%s717] sm:$0xf]
        %v2882 = vld [vmem:[%s717 + $0x4] sm:$0xf]
        %v2883 = vld [vmem:[%s717 + $0x8] sm:$0xf]
        %v2884 = vld [vmem:[%s717 + $0xc] sm:$0xf]
        %v2885 = vld [vmem:[%s717 + $0x10] sm:$0xf]
        %v2886 = vld [vmem:[%s717 + $0x14] sm:$0xf]
        %v2887 = vld [vmem:[%s717 + $0x18] sm:$0xf]
        %v2888 = vld [vmem:[%s717 + $0x1c] sm:$0xf]
        %v2889 = vld [vmem:[%s720] sm:$0x1]
        %v2891 = vlaneseq
        %v2892 = vshrl.u32 %v2891, 7
        %v2893 = vsub.s32 0, %v2892
        %v2894 = vrot.slane %v2889, %v2893
        %v2904 = vunpack.c.l.b16 %v2881
        %v2905 = vunpack.c.l.b16 %v2882
        %v2906 = vunpack.c.l.b16 %v2883
        %v2907 = vunpack.c.l.b16 %v2884
        %v2908 = vunpack.c.l.b16 %v2885
        %v2909 = vunpack.c.l.b16 %v2886
        %v2910 = vunpack.c.l.b16 %v2887
        %v2911 = vunpack.c.l.b16 %v2888
        %v2912 = vpack.c.b16 %v2905, %v2904
        %v2913 = vpack.c.b16 %v2907, %v2906
        %v2914 = vpack.c.b16 %v2909, %v2908
        %v2915 = vpack.c.b16 %v2911, %v2910
        %vm2920 = vcmask 523264
        %v2922 = vsel %vm2920, %v2873, 0
        %v2925 = vsel %vm2920, %v2874, 0
        %v2928 = vsel %vm2920, %v2875, 0
        %v2931 = vsel %vm2920, %v2876, 0
        %v2934 = vsel %vm2920, %v2877, 0
        %v2937 = vsel %vm2920, %v2878, 0
        %v2940 = vsel %vm2920, %v2879, 0
        %v2943 = vsel %vm2920, %v2880, 0
        %2945 = vmatprep.subr.bf16.mxu0 0
        %2946 = vmatpush1.bf16.msra.mxu0 0
        %2947 = vmatprep.subr.bf16.mxu0 0
        %2948 = vmatpush1.bf16.msra.mxu0 0
        %2949 = vmatprep.subr.bf16.mxu0 0
        %2950 = vmatpush1.bf16.msra.mxu0 0
        %2951 = vmatprep.subr.bf16.mxu0 0
        %2952 = vmatpush1.bf16.msra.mxu0 0
        %2953 = vmatprep.subr.bf16.mxu0 0
        %2954 = vmatpush1.bf16.msra.mxu0 %v2915
        %2955 = vmatprep.subr.bf16.mxu0 0
        %2956 = vmatpush1.bf16.msra.mxu0 %v2914
        %2957 = vmatprep.subr.bf16.mxu0 0
        %2958 = vmatpush1.bf16.msra.mxu0 %v2913
        %2959 = vmatprep.subr.bf16.mxu0 0
        %2960 = vmatpush1.bf16.msra.mxu0 %v2912
        %2961 = vmatprep.subr.bf16.mxu0 0
        %2962 = vmatpush2.bf16.msra.mxu0 0
        %2963 = vmatprep.subr.bf16.mxu0 0
        %2964 = vmatpush2.bf16.msra.mxu0 0
        %2965 = vmatprep.subr.bf16.mxu0 0
        %2966 = vmatpush2.bf16.msra.mxu0 0
        %2967 = vmatprep.subr.bf16.mxu0 0
        %2968 = vmatpush2.bf16.msra.mxu0 0
        %2969 = vmatprep.subr.bf16.mxu0 0
        %2970 = vmatpush2.bf16.msra.mxu0 0
        %2971 = vmatprep.subr.bf16.mxu0 0
        %2972 = vmatpush2.bf16.msra.mxu0 0
        %2973 = vmatprep.subr.bf16.mxu0 0
        %2974 = vmatpush2.bf16.msra.mxu0 0
        %2975 = vmatprep.subr.bf16.mxu0 0
        %2976 = vmatpush2.bf16.msra.mxu0 0
        %2977 = vmatprep.mubr.bf16.mxu0 0
        %2978 = vmatmul.mubr.bf16.gmra.mxu0 %v2922
        %v2979 = vpop.f32.mrf.mxu0
        %v2980 = vadd.f32 %v2894, %v2979
        %v2981 = vpop.f32.mrf.mxu0
        %v2982 = vpop.f32.mrf.mxu0
        %v2983 = vadd.f32 %v2894, %v2982
        %v2984 = vpop.f32.mrf.mxu0
        %2985 = vmatprep.mubr.bf16.mxu0 0
        %2986 = vmatmul.mubr.bf16.gmra.mxu0 %v2925
        %v2987 = vpop.f32.mrf.mxu0
        %v2988 = vadd.f32 %v2894, %v2987
        %v2989 = vpop.f32.mrf.mxu0
        %v2990 = vpop.f32.mrf.mxu0
        %v2991 = vadd.f32 %v2894, %v2990
        %v2992 = vpop.f32.mrf.mxu0
        %2993 = vmatprep.mubr.bf16.mxu0 0
        %2994 = vmatmul.mubr.bf16.gmra.mxu0 %v2928
        %v2995 = vpop.f32.mrf.mxu0
        %v2996 = vadd.f32 %v2894, %v2995
        %v2997 = vpop.f32.mrf.mxu0
        %v2998 = vpop.f32.mrf.mxu0
        %v2999 = vadd.f32 %v2894, %v2998
        %v3000 = vpop.f32.mrf.mxu0
        %3001 = vmatprep.mubr.bf16.mxu0 0
        %3002 = vmatmul.mubr.bf16.gmra.mxu0 %v2931
        %v3003 = vpop.f32.mrf.mxu0
        %v3004 = vadd.f32 %v2894, %v3003
        %v3005 = vpop.f32.mrf.mxu0
        %v3006 = vpop.f32.mrf.mxu0
        %v3007 = vadd.f32 %v2894, %v3006
        %v3008 = vpop.f32.mrf.mxu0
        %3009 = vmatprep.mubr.bf16.mxu0 0
        %3010 = vmatmul.mubr.bf16.gmra.mxu0 %v2934
        %v3011 = vpop.f32.mrf.mxu0
        %v3012 = vadd.f32 %v2894, %v3011
        %v3013 = vpop.f32.mrf.mxu0
        %v3014 = vpop.f32.mrf.mxu0
        %v3015 = vadd.f32 %v2894, %v3014
        %v3016 = vpop.f32.mrf.mxu0
        %3017 = vmatprep.mubr.bf16.mxu0 0
        %3018 = vmatmul.mubr.bf16.gmra.mxu0 %v2937
        %v3019 = vpop.f32.mrf.mxu0
        %v3020 = vadd.f32 %v2894, %v3019
        %v3021 = vpop.f32.mrf.mxu0
        %v3022 = vpop.f32.mrf.mxu0
        %v3023 = vadd.f32 %v2894, %v3022
        %v3024 = vpop.f32.mrf.mxu0
        %3025 = vmatprep.mubr.bf16.mxu0 0
        %3026 = vmatmul.mubr.bf16.gmra.mxu0 %v2940
        %v3027 = vpop.f32.mrf.mxu0
        %v3028 = vadd.f32 %v2894, %v3027
        %v3029 = vpop.f32.mrf.mxu0
        %v3030 = vpop.f32.mrf.mxu0
        %v3031 = vadd.f32 %v2894, %v3030
        %v3032 = vpop.f32.mrf.mxu0
        %3033 = vmatprep.mubr.bf16.mxu0 0
        %3034 = vmatmul.mubr.bf16.gmra.mxu0 %v2943
        %v3035 = vpop.f32.mrf.mxu0
        %v3036 = vadd.f32 %v2894, %v3035
        %v3037 = vpop.f32.mrf.mxu0
        %v3038 = vpop.f32.mrf.mxu0
        %v3039 = vadd.f32 %v2894, %v3038
        %v3040 = vpop.f32.mrf.mxu0
        %3041 = vdwg.mxu0
        %v3042 = vadd.f32 %v2385, %v2980
        %v3043 = vadd.f32 %v2386, %v2983
        %v3044 = vadd.f32 %v2387, %v2988
        %v3045 = vadd.f32 %v2388, %v2991
        %v3046 = vadd.f32 %v2389, %v2996
        %v3047 = vadd.f32 %v2390, %v2999
        %v3048 = vadd.f32 %v2391, %v3004
        %v3049 = vadd.f32 %v2392, %v3007
        %v3050 = vadd.f32 %v2393, %v3012
        %v3051 = vadd.f32 %v2394, %v3015
        %v3052 = vadd.f32 %v2395, %v3020
        %v3053 = vadd.f32 %v2396, %v3023
        %v3054 = vadd.f32 %v2397, %v3028
        %v3055 = vadd.f32 %v2398, %v3031
        %v3056 = vadd.f32 %v2399, %v3036
        %v3057 = vadd.f32 %v2400, %v3039
        %3058 = vst.msk [vmem:[#allocation2] sm:$0xff] %vm970, %v3042
        %3059 = vst.msk [vmem:[#allocation2 + $0x8] sm:$0xff] %vm970, %v3043
        %3060 = vst.msk [vmem:[#allocation2 + $0x10] sm:$0xff] %vm970, %v3044
        %3061 = vst.msk [vmem:[#allocation2 + $0x18] sm:$0xff] %vm970, %v3045
        %3062 = vst.msk [vmem:[#allocation2 + $0x20] sm:$0xff] %vm970, %v3046
        %3063 = vst.msk [vmem:[#allocation2 + $0x28] sm:$0xff] %vm970, %v3047
        %3064 = vst.msk [vmem:[#allocation2 + $0x30] sm:$0xff] %vm970, %v3048
        %3065 = vst.msk [vmem:[#allocation2 + $0x38] sm:$0xff] %vm970, %v3049
        %3066 = vst.msk [vmem:[#allocation2 + $0x40] sm:$0xff] %vm970, %v3050
        %3067 = vst.msk [vmem:[#allocation2 + $0x48] sm:$0xff] %vm970, %v3051
        %3068 = vst.msk [vmem:[#allocation2 + $0x50] sm:$0xff] %vm970, %v3052
        %3069 = vst.msk [vmem:[#allocation2 + $0x58] sm:$0xff] %vm970, %v3053
        %3070 = vst.msk [vmem:[#allocation2 + $0x60] sm:$0xff] %vm970, %v3054
        %3071 = vst.msk [vmem:[#allocation2 + $0x68] sm:$0xff] %vm970, %v3055
        %3072 = vst.msk [vmem:[#allocation2 + $0x70] sm:$0xff] %vm970, %v3056
        %3073 = vst.msk [vmem:[#allocation2 + $0x78] sm:$0xff] %vm970, %v3057
        %p3074 = scmp.eq.s32.totalorder %s34, 1
        // Predicated region
        $region93: #{tpu_custom_call.1} parent=87 // pred_check
          %p3075 = pneg %p3074
        $region94: #{tpu_custom_call.1} parent=87 // pred_check_branch
          %3077 = sbr.rel (%p3075) target = $region96
        $region95: #{tpu_custom_call.1} parent=87 // pred_region
          %v3078 = vld [vmem:[%s13] sm:$0x1]
          %v3079 = vld [vmem:[%s14] sm:$0x1]
          %v3080 = vsel %vm970, %v3042, 0.0
          %3081 = vadd.xlane.f32.xlu0 %v3080
          %v3082 = vpop.xlane.xlu0 %3081
          %v3083 = vsel %vm970, %v3043, 0.0
          %3084 = vadd.xlane.f32.xlu0 %v3083
          %v3085 = vpop.xlane.xlu0 %3084
          %v3086 = vsel %vm970, %v3044, 0.0
          %3087 = vadd.xlane.f32.xlu0 %v3086
          %v3088 = vpop.xlane.xlu0 %3087
          %v3089 = vsel %vm970, %v3045, 0.0
          %3090 = vadd.xlane.f32.xlu0 %v3089
          %v3091 = vpop.xlane.xlu0 %3090
          %v3092 = vsel %vm970, %v3046, 0.0
          %3093 = vadd.xlane.f32.xlu0 %v3092
          %v3094 = vpop.xlane.xlu0 %3093
          %v3095 = vsel %vm970, %v3047, 0.0
          %3096 = vadd.xlane.f32.xlu0 %v3095
          %v3097 = vpop.xlane.xlu0 %3096
          %v3098 = vsel %vm970, %v3048, 0.0
          %3099 = vadd.xlane.f32.xlu0 %v3098
          %v3100 = vpop.xlane.xlu0 %3099
          %v3101 = vsel %vm970, %v3049, 0.0
          %3102 = vadd.xlane.f32.xlu0 %v3101
          %v3103 = vpop.xlane.xlu0 %3102
          %v3104 = vsel %vm970, %v3050, 0.0
          %3105 = vadd.xlane.f32.xlu0 %v3104
          %v3106 = vpop.xlane.xlu0 %3105
          %v3107 = vsel %vm970, %v3051, 0.0
          %3108 = vadd.xlane.f32.xlu0 %v3107
          %v3109 = vpop.xlane.xlu0 %3108
          %v3110 = vsel %vm970, %v3052, 0.0
          %3111 = vadd.xlane.f32.xlu0 %v3110
          %v3112 = vpop.xlane.xlu0 %3111
          %v3113 = vsel %vm970, %v3053, 0.0
          %3114 = vadd.xlane.f32.xlu0 %v3113
          %v3115 = vpop.xlane.xlu0 %3114
          %v3116 = vsel %vm970, %v3054, 0.0
          %3117 = vadd.xlane.f32.xlu0 %v3116
          %v3118 = vpop.xlane.xlu0 %3117
          %v3119 = vsel %vm970, %v3055, 0.0
          %3120 = vadd.xlane.f32.xlu0 %v3119
          %v3121 = vpop.xlane.xlu0 %3120
          %v3122 = vsel %vm970, %v3056, 0.0
          %3123 = vadd.xlane.f32.xlu0 %v3122
          %v3124 = vpop.xlane.xlu0 %3123
          %v3125 = vsel %vm970, %v3057, 0.0
          %3126 = vadd.xlane.f32.xlu0 %v3125
          %v3127 = vpop.xlane.xlu0 %3126
          %v3128 = vmul.f32 %v3082, %v1019
          %v3129 = vmul.f32 %v3085, %v1019
          %v3130 = vmul.f32 %v3088, %v1019
          %v3131 = vmul.f32 %v3091, %v1019
          %v3132 = vmul.f32 %v3094, %v1019
          %v3133 = vmul.f32 %v3097, %v1019
          %v3134 = vmul.f32 %v3100, %v1019
          %v3135 = vmul.f32 %v3103, %v1019
          %v3136 = vmul.f32 %v3106, %v1019
          %v3137 = vmul.f32 %v3109, %v1019
          %v3138 = vmul.f32 %v3112, %v1019
          %v3139 = vmul.f32 %v3115, %v1019
          %v3140 = vmul.f32 %v3118, %v1019
          %v3141 = vmul.f32 %v3121, %v1019
          %v3142 = vmul.f32 %v3124, %v1019
          %v3143 = vmul.f32 %v3127, %v1019
          %v3144 = vsub.f32 %v3042, %v3128
          %v3145 = vsub.f32 %v3043, %v3129
          %v3146 = vsub.f32 %v3044, %v3130
          %v3147 = vsub.f32 %v3045, %v3131
          %v3148 = vsub.f32 %v3046, %v3132
          %v3149 = vsub.f32 %v3047, %v3133
          %v3150 = vsub.f32 %v3048, %v3134
          %v3151 = vsub.f32 %v3049, %v3135
          %v3152 = vsub.f32 %v3050, %v3136
          %v3153 = vsub.f32 %v3051, %v3137
          %v3154 = vsub.f32 %v3052, %v3138
          %v3155 = vsub.f32 %v3053, %v3139
          %v3156 = vsub.f32 %v3054, %v3140
          %v3157 = vsub.f32 %v3055, %v3141
          %v3158 = vsub.f32 %v3056, %v3142
          %v3159 = vsub.f32 %v3057, %v3143
          %v3160 = vmul.f32 %v3144, %v3144
          %v3161 = vmul.f32 %v3145, %v3145
          %v3162 = vmul.f32 %v3146, %v3146
          %v3163 = vmul.f32 %v3147, %v3147
          %v3164 = vmul.f32 %v3148, %v3148
          %v3165 = vmul.f32 %v3149, %v3149
          %v3166 = vmul.f32 %v3150, %v3150
          %v3167 = vmul.f32 %v3151, %v3151
          %v3168 = vmul.f32 %v3152, %v3152
          %v3169 = vmul.f32 %v3153, %v3153
          %v3170 = vmul.f32 %v3154, %v3154
          %v3171 = vmul.f32 %v3155, %v3155
          %v3172 = vmul.f32 %v3156, %v3156
          %v3173 = vmul.f32 %v3157, %v3157
          %v3174 = vmul.f32 %v3158, %v3158
          %v3175 = vmul.f32 %v3159, %v3159
          %v3176 = vsel %vm970, %v3160, 0.0
          %3177 = vadd.xlane.f32.xlu0 %v3176
          %v3178 = vpop.xlane.xlu0 %3177
          %v3179 = vsel %vm970, %v3161, 0.0
          %3180 = vadd.xlane.f32.xlu0 %v3179
          %v3181 = vpop.xlane.xlu0 %3180
          %v3182 = vsel %vm970, %v3162, 0.0
          %3183 = vadd.xlane.f32.xlu0 %v3182
          %v3184 = vpop.xlane.xlu0 %3183
          %v3185 = vsel %vm970, %v3163, 0.0
          %3186 = vadd.xlane.f32.xlu0 %v3185
          %v3187 = vpop.xlane.xlu0 %3186
          %v3188 = vsel %vm970, %v3164, 0.0
          %3189 = vadd.xlane.f32.xlu0 %v3188
          %v3190 = vpop.xlane.xlu0 %3189
          %v3191 = vsel %vm970, %v3165, 0.0
          %3192 = vadd.xlane.f32.xlu0 %v3191
          %v3193 = vpop.xlane.xlu0 %3192
          %v3194 = vsel %vm970, %v3166, 0.0
          %3195 = vadd.xlane.f32.xlu0 %v3194
          %v3196 = vpop.xlane.xlu0 %3195
          %v3197 = vsel %vm970, %v3167, 0.0
          %3198 = vadd.xlane.f32.xlu0 %v3197
          %v3199 = vpop.xlane.xlu0 %3198
          %v3200 = vsel %vm970, %v3168, 0.0
          %3201 = vadd.xlane.f32.xlu0 %v3200
          %v3202 = vpop.xlane.xlu0 %3201
          %v3203 = vsel %vm970, %v3169, 0.0
          %3204 = vadd.xlane.f32.xlu0 %v3203
          %v3205 = vpop.xlane.xlu0 %3204
          %v3206 = vsel %vm970, %v3170, 0.0
          %3207 = vadd.xlane.f32.xlu0 %v3206
          %v3208 = vpop.xlane.xlu0 %3207
          %v3209 = vsel %vm970, %v3171, 0.0
          %3210 = vadd.xlane.f32.xlu0 %v3209
          %v3211 = vpop.xlane.xlu0 %3210
          %v3212 = vsel %vm970, %v3172, 0.0
          %3213 = vadd.xlane.f32.xlu0 %v3212
          %v3214 = vpop.xlane.xlu0 %3213
          %v3215 = vsel %vm970, %v3173, 0.0
          %3216 = vadd.xlane.f32.xlu0 %v3215
          %v3217 = vpop.xlane.xlu0 %3216
          %v3218 = vsel %vm970, %v3174, 0.0
          %3219 = vadd.xlane.f32.xlu0 %v3218
          %v3220 = vpop.xlane.xlu0 %3219
          %v3221 = vsel %vm970, %v3175, 0.0
          %3222 = vadd.xlane.f32.xlu0 %v3221
          %v3223 = vpop.xlane.xlu0 %3222
          %v3224 = vmul.f32 %v3178, %v1019
          %v3225 = vmul.f32 %v3181, %v1019
          %v3226 = vmul.f32 %v3184, %v1019
          %v3227 = vmul.f32 %v3187, %v1019
          %v3228 = vmul.f32 %v3190, %v1019
          %v3229 = vmul.f32 %v3193, %v1019
          %v3230 = vmul.f32 %v3196, %v1019
          %v3231 = vmul.f32 %v3199, %v1019
          %v3232 = vmul.f32 %v3202, %v1019
          %v3233 = vmul.f32 %v3205, %v1019
          %v3234 = vmul.f32 %v3208, %v1019
          %v3235 = vmul.f32 %v3211, %v1019
          %v3236 = vmul.f32 %v3214, %v1019
          %v3237 = vmul.f32 %v3217, %v1019
          %v3238 = vmul.f32 %v3220, %v1019
          %v3239 = vmul.f32 %v3223, %v1019
          %v3240 = vadd.f32 %v3224, 1e-05
          %v3241 = vadd.f32 %v3225, 1e-05
          %v3242 = vadd.f32 %v3226, 1e-05
          %v3243 = vadd.f32 %v3227, 1e-05
          %v3244 = vadd.f32 %v3228, 1e-05
          %v3245 = vadd.f32 %v3229, 1e-05
          %v3246 = vadd.f32 %v3230, 1e-05
          %v3247 = vadd.f32 %v3231, 1e-05
          %v3248 = vadd.f32 %v3232, 1e-05
          %v3249 = vadd.f32 %v3233, 1e-05
          %v3250 = vadd.f32 %v3234, 1e-05
          %v3251 = vadd.f32 %v3235, 1e-05
          %v3252 = vadd.f32 %v3236, 1e-05
          %v3253 = vadd.f32 %v3237, 1e-05
          %v3254 = vadd.f32 %v3238, 1e-05
          %v3255 = vadd.f32 %v3239, 1e-05
          %v3256 = vrsqrt.pop %v3240
          %v3257 = vrsqrt.pop %v3241
          %v3258 = vrsqrt.pop %v3242
          %v3259 = vrsqrt.pop %v3243
          %v3260 = vrsqrt.pop %v3244
          %v3261 = vrsqrt.pop %v3245
          %v3262 = vrsqrt.pop %v3246
          %v3263 = vrsqrt.pop %v3247
          %v3264 = vrsqrt.pop %v3248
          %v3265 = vrsqrt.pop %v3249
          %v3266 = vrsqrt.pop %v3250
          %v3267 = vrsqrt.pop %v3251
          %v3268 = vrsqrt.pop %v3252
          %v3269 = vrsqrt.pop %v3253
          %v3270 = vrsqrt.pop %v3254
          %v3271 = vrsqrt.pop %v3255
          %v3272 = vmul.f32 %v3144, %v3256
          %v3273 = vmul.f32 %v3145, %v3257
          %v3274 = vmul.f32 %v3146, %v3258
          %v3275 = vmul.f32 %v3147, %v3259
          %v3276 = vmul.f32 %v3148, %v3260
          %v3277 = vmul.f32 %v3149, %v3261
          %v3278 = vmul.f32 %v3150, %v3262
          %v3279 = vmul.f32 %v3151, %v3263
          %v3280 = vmul.f32 %v3152, %v3264
          %v3281 = vmul.f32 %v3153, %v3265
          %v3282 = vmul.f32 %v3154, %v3266
          %v3283 = vmul.f32 %v3155, %v3267
          %v3284 = vmul.f32 %v3156, %v3268
          %v3285 = vmul.f32 %v3157, %v3269
          %v3286 = vmul.f32 %v3158, %v3270
          %v3287 = vmul.f32 %v3159, %v3271
          %v3289 = vlaneseq
          %v3290 = vshrl.u32 %v3289, 7
          %v3291 = vsub.s32 0, %v3290
          %v3292 = vrot.slane %v3078, %v3291
          %v3294 = vmul.f32 %v3272, %v3292
          %v3295 = vmul.f32 %v3273, %v3292
          %v3296 = vmul.f32 %v3274, %v3292
          %v3297 = vmul.f32 %v3275, %v3292
          %v3298 = vmul.f32 %v3276, %v3292
          %v3299 = vmul.f32 %v3277, %v3292
          %v3300 = vmul.f32 %v3278, %v3292
          %v3301 = vmul.f32 %v3279, %v3292
          %v3302 = vmul.f32 %v3280, %v3292
          %v3303 = vmul.f32 %v3281, %v3292
          %v3304 = vmul.f32 %v3282, %v3292
          %v3305 = vmul.f32 %v3283, %v3292
          %v3306 = vmul.f32 %v3284, %v3292
          %v3307 = vmul.f32 %v3285, %v3292
          %v3308 = vmul.f32 %v3286, %v3292
          %v3309 = vmul.f32 %v3287, %v3292
          %v3311 = vlaneseq
          %v3312 = vshrl.u32 %v3311, 7
          %v3313 = vsub.s32 0, %v3312
          %v3314 = vrot.slane %v3079, %v3313
          %v3316 = vadd.f32 %v3294, %v3314
          %v3317 = vadd.f32 %v3295, %v3314
          %v3318 = vadd.f32 %v3296, %v3314
          %v3319 = vadd.f32 %v3297, %v3314
          %v3320 = vadd.f32 %v3298, %v3314
          %v3321 = vadd.f32 %v3299, %v3314
          %v3322 = vadd.f32 %v3300, %v3314
          %v3323 = vadd.f32 %v3301, %v3314
          %v3324 = vadd.f32 %v3302, %v3314
          %v3325 = vadd.f32 %v3303, %v3314
          %v3326 = vadd.f32 %v3304, %v3314
          %v3327 = vadd.f32 %v3305, %v3314
          %v3328 = vadd.f32 %v3306, %v3314
          %v3329 = vadd.f32 %v3307, %v3314
          %v3330 = vadd.f32 %v3308, %v3314
          %v3331 = vadd.f32 %v3309, %v3314
          %v3332 = vsel %vm970, %v3316, 0.0
          %v3333 = vsel %vm970, %v3317, 0.0
          %v3334 = vadd.f32 %v3332, %v3333
          %v3335 = vrot.slane %v3334, 4
          %v3336 = vadd.f32 %v3334, %v3335
          %v3337 = vrot.slane %v3336, 2
          %v3338 = vadd.f32 %v3336, %v3337
          %v3339 = vrot.slane %v3338, 1
          %v3340 = vadd.f32 %v3338, %v3339
          %v3341 = vsel %vm970, %v3318, 0.0
          %v3342 = vsel %vm970, %v3319, 0.0
          %v3343 = vadd.f32 %v3341, %v3342
          %v3344 = vrot.slane %v3343, 4
          %v3345 = vadd.f32 %v3343, %v3344
          %v3346 = vrot.slane %v3345, 2
          %v3347 = vadd.f32 %v3345, %v3346
          %v3348 = vrot.slane %v3347, 1
          %v3349 = vadd.f32 %v3347, %v3348
          %v3350 = vsel %vm970, %v3320, 0.0
          %v3351 = vsel %vm970, %v3321, 0.0
          %v3352 = vadd.f32 %v3350, %v3351
          %v3353 = vrot.slane %v3352, 4
          %v3354 = vadd.f32 %v3352, %v3353
          %v3355 = vrot.slane %v3354, 2
          %v3356 = vadd.f32 %v3354, %v3355
          %v3357 = vrot.slane %v3356, 1
          %v3358 = vadd.f32 %v3356, %v3357
          %v3359 = vsel %vm970, %v3322, 0.0
          %v3360 = vsel %vm970, %v3323, 0.0
          %v3361 = vadd.f32 %v3359, %v3360
          %v3362 = vrot.slane %v3361, 4
          %v3363 = vadd.f32 %v3361, %v3362
          %v3364 = vrot.slane %v3363, 2
          %v3365 = vadd.f32 %v3363, %v3364
          %v3366 = vrot.slane %v3365, 1
          %v3367 = vadd.f32 %v3365, %v3366
          %v3368 = vsel %vm970, %v3324, 0.0
          %v3369 = vsel %vm970, %v3325, 0.0
          %v3370 = vadd.f32 %v3368, %v3369
          %v3371 = vrot.slane %v3370, 4
          %v3372 = vadd.f32 %v3370, %v3371
          %v3373 = vrot.slane %v3372, 2
          %v3374 = vadd.f32 %v3372, %v3373
          %v3375 = vrot.slane %v3374, 1
          %v3376 = vadd.f32 %v3374, %v3375
          %v3377 = vsel %vm970, %v3326, 0.0
          %v3378 = vsel %vm970, %v3327, 0.0
          %v3379 = vadd.f32 %v3377, %v3378
          %v3380 = vrot.slane %v3379, 4
          %v3381 = vadd.f32 %v3379, %v3380
          %v3382 = vrot.slane %v3381, 2
          %v3383 = vadd.f32 %v3381, %v3382
          %v3384 = vrot.slane %v3383, 1
          %v3385 = vadd.f32 %v3383, %v3384
          %v3386 = vsel %vm970, %v3328, 0.0
          %v3387 = vsel %vm970, %v3329, 0.0
          %v3388 = vadd.f32 %v3386, %v3387
          %v3389 = vrot.slane %v3388, 4
          %v3390 = vadd.f32 %v3388, %v3389
          %v3391 = vrot.slane %v3390, 2
          %v3392 = vadd.f32 %v3390, %v3391
          %v3393 = vrot.slane %v3392, 1
          %v3394 = vadd.f32 %v3392, %v3393
          %v3395 = vsel %vm970, %v3330, 0.0
          %v3396 = vsel %vm970, %v3331, 0.0
          %v3397 = vadd.f32 %v3395, %v3396
          %v3398 = vrot.slane %v3397, 4
          %v3399 = vadd.f32 %v3397, %v3398
          %v3400 = vrot.slane %v3399, 2
          %v3401 = vadd.f32 %v3399, %v3400
          %v3402 = vrot.slane %v3401, 1
          %v3403 = vadd.f32 %v3401, %v3402
          %v3404 = vrcp.pop 16.0
          %v3405 = vmul.f32 %v3340, %v3404
          %v3406 = vmul.f32 %v3349, %v3404
          %v3407 = vmul.f32 %v3358, %v3404
          %v3408 = vmul.f32 %v3367, %v3404
          %v3409 = vmul.f32 %v3376, %v3404
          %v3410 = vmul.f32 %v3385, %v3404
          %v3411 = vmul.f32 %v3394, %v3404
          %v3412 = vmul.f32 %v3403, %v3404
          %v3413 = vpack.c.bf16 %v3405, %v3405
          %v3414 = vpack.c.bf16 %v3406, %v3406
          %v3415 = vpack.c.bf16 %v3407, %v3407
          %v3416 = vpack.c.bf16 %v3408, %v3408
          %v3417 = vpack.c.bf16 %v3409, %v3409
          %v3418 = vpack.c.bf16 %v3410, %v3410
          %v3419 = vpack.c.bf16 %v3411, %v3411
          %v3420 = vpack.c.bf16 %v3412, %v3412
          %v3421 = vld [vmem:[%s15] sm:$0xf]
          %v3422 = vld [vmem:[%s15 + $0x4] sm:$0xf]
          %v3423 = vld [vmem:[%s15 + $0x8] sm:$0xf]
          %v3424 = vld [vmem:[%s15 + $0xc] sm:$0xf]
          %v3425 = vld [vmem:[%s16] sm:$0x1]
          %v3427 = vlaneseq
          %v3428 = vshrl.u32 %v3427, 7
          %v3429 = vsub.s32 0, %v3428
          %v3430 = vrot.slane %v3425, %v3429
          %v3440 = vunpack.c.l.b16 %v3413
          %v3441 = vunpack.c.l.b16 %v3414
          %v3442 = vunpack.c.l.b16 %v3415
          %v3443 = vunpack.c.l.b16 %v3416
          %v3444 = vunpack.c.l.b16 %v3417
          %v3445 = vunpack.c.l.b16 %v3418
          %v3446 = vunpack.c.l.b16 %v3419
          %v3447 = vunpack.c.l.b16 %v3420
          %vm3448 = vcmask 1041409
          %v3449 = vsel %vm3448, %v3441, %v3440
          %vm3450 = vcmask 1042434
          %v3451 = vsel %vm3450, %v3442, %v3449
          %vm3452 = vcmask 1043459
          %v3453 = vsel %vm3452, %v3443, %v3451
          %vm3454 = vcmask 1044484
          %v3455 = vsel %vm3454, %v3444, %v3453
          %vm3456 = vcmask 1045509
          %v3457 = vsel %vm3456, %v3445, %v3455
          %vm3458 = vcmask 1046534
          %v3459 = vsel %vm3458, %v3446, %v3457
          %vm3460 = vcmask 1047559
          %v3461 = vsel %vm3460, %v3447, %v3459
          %v3462 = vpack.c.b16 %v3461, %v3461
          %v3467 = vunpack.c.l.b16 %v3421
          %v3468 = vunpack.c.l.b16 %v3422
          %v3469 = vunpack.c.l.b16 %v3423
          %v3470 = vunpack.c.l.b16 %v3424
          %v3471 = vpack.c.b16 %v3468, %v3467
          %v3472 = vpack.c.b16 %v3470, %v3469
          %v3476 = vsel %vm970, %v3462, 0
          %3478 = vmatprep.subr.bf16.mxu0 0
          %3479 = vmatpush1.bf16.msra.mxu0 0
          %3480 = vmatprep.subr.bf16.mxu0 0
          %3481 = vmatpush1.bf16.msra.mxu0 0
          %3482 = vmatprep.subr.bf16.mxu0 0
          %3483 = vmatpush1.bf16.msra.mxu0 0
          %3484 = vmatprep.subr.bf16.mxu0 0
          %3485 = vmatpush1.bf16.msra.mxu0 0
          %3486 = vmatprep.subr.bf16.mxu0 0
          %3487 = vmatpush1.bf16.msra.mxu0 0
          %3488 = vmatprep.subr.bf16.mxu0 0
          %3489 = vmatpush1.bf16.msra.mxu0 0
          %3490 = vmatprep.subr.bf16.mxu0 0
          %3491 = vmatpush1.bf16.msra.mxu0 %v3472
          %3492 = vmatprep.subr.bf16.mxu0 0
          %3493 = vmatpush1.bf16.msra.mxu0 %v3471
          %3494 = vmatprep.subr.bf16.mxu0 0
          %3495 = vmatpush2.bf16.msra.mxu0 0
          %3496 = vmatprep.subr.bf16.mxu0 0
          %3497 = vmatpush2.bf16.msra.mxu0 0
          %3498 = vmatprep.subr.bf16.mxu0 0
          %3499 = vmatpush2.bf16.msra.mxu0 0
          %3500 = vmatprep.subr.bf16.mxu0 0
          %3501 = vmatpush2.bf16.msra.mxu0 0
          %3502 = vmatprep.subr.bf16.mxu0 0
          %3503 = vmatpush2.bf16.msra.mxu0 0
          %3504 = vmatprep.subr.bf16.mxu0 0
          %3505 = vmatpush2.bf16.msra.mxu0 0
          %3506 = vmatprep.subr.bf16.mxu0 0
          %3507 = vmatpush2.bf16.msra.mxu0 0
          %3508 = vmatprep.subr.bf16.mxu0 0
          %3509 = vmatpush2.bf16.msra.mxu0 0
          %3510 = vmatprep.mubr.bf16.mxu0 0
          %3511 = vmatmul.mubr.bf16.gmra.mxu0 %v3476
          %v3512 = vpop.f32.mrf.mxu0
          %v3513 = vadd.f32 %v3430, %v3512
          %v3514 = vpop.f32.mrf.mxu0
          %v3515 = vpop.f32.mrf.mxu0
          %v3516 = vpop.f32.mrf.mxu0
          %3517 = vdwg.mxu0
          %3518 = vst [vmem:[#allocation3] sm:$0xff] %v3513
        $region96: #{tpu_custom_call.1} parent=87 // pred_fallthru
          _
        // Predicated region
        $region97: #{tpu_custom_call.1} parent=87 // pred_check
          %p3519 = pneg %p471
        $region98: #{tpu_custom_call.1} parent=87 // pred_check_branch
          %3521 = sbr.rel (%p3519) target = $region100
        $region99: #{tpu_custom_call.1} parent=87 // pred_region
          %s3523 = ssub.s32 128, 128
          %3524 = vsyncadd [#allocation4], %s3523
          %s3525 = smul.addr %s33, 128
          %s3526 = scalar_lea.hbm %s17, %s3525
          %s3528 = sshll.u32 [#allocation3], 4
          %s3529 = int_to_ptr.vmem [resolvable:$true] %s3528
          %3531 = dma.vmem_to_hbm [thread:$0]  %s3529, 128, %s3526, [#allocation4]
        $region100: #{tpu_custom_call.1} parent=87 // pred_fallthru
          _
        // Predicated region
        $region101: #{tpu_custom_call.1} parent=87 // pred_check
          %p3532 = pneg %p471
        $region102: #{tpu_custom_call.1} parent=87 // pred_check_branch
          %3534 = sbr.rel (%p3532) target = $region104
        $region103: #{tpu_custom_call.1} parent=87 // pred_region
          %3535 = dma.done [#allocation4], 128
        $region104: #{tpu_custom_call.1} parent=87 // pred_fallthru
          _
      $region88: #{tpu_custom_call.1} parent=5 // pred_fallthru
        _
      %p3536 = scmp.le.s32.totalorder 2, %s24
      // Predicated region
      $region105: #{tpu_custom_call.1} parent=5 // pred_check
        %p3537 = pneg %p3536
      $region106: #{tpu_custom_call.1} parent=5 // pred_check_branch
        %3539 = sbr.rel (%p3537) target = $region108
      $region107: #{tpu_custom_call.1} parent=5 // pred_region
        %s3540 = ssub.s32 %s24, 2
      $region108: #{tpu_custom_call.1} parent=5 // pred_fallthru
        _
    $region6: #{tpu_custom_call.1} parent=1 // loop_footer
      %s28 = sadd.s32 1, %s24
    $region7: #{tpu_custom_call.1} parent=1 // loop_footer_branch
      %23 = sbr.rel target = $region3
    $region8: #{tpu_custom_call.1} parent=1 // loop_exit
      _
    %3541 = vsyncpa [#allocation4], 1
    %s3542 = scalar_lea.sflag [#allocation4], 1
    %3543 = vsyncpa %s3542, 1

</llo_original>
